<compile_context>
chip_gen: v5e
topology: v5e:2x2
jax: 0.10.0
libtpu: 0.0.40
codegen_flags: <defaults>
</compile_context>

<pallas_src>
import functools

import jax
import jax.numpy as jnp
import numpy as np
from jax import lax
from jax.experimental import pallas as pl
from jax.experimental.pallas import tpu as pltpu

EPS = 1e-5
LANES = 128
VMEM_LIMIT = 32 * 1024 * 1024  # safe on v5e/v6e/v7x; tiles are budgeted << this


def _round_up(x, m):
    return (x + m - 1) // m * m


def _pick_tile_h(H, W, c_pad, budget_bytes=2 * 1024 * 1024):
    """Largest divisor of H whose input tile + im2col buffer fit the budget."""
    best = 1
    for th in range(1, H + 1):
        if H % th:
            continue
        tile_b = (th + 2) * (W + 2) * c_pad * 4     # f32 input tile
        im2col_b = th * W * 9 * c_pad * 2           # bf16 im2col matrix
        if tile_b + im2col_b <= budget_bytes:
            best = th
    return best


# ----------------------------------------------------------------------------
# Kernel 1: fused [optional BN-fold+ReLU on input] -> 3x3 SAME conv (im2col,
# single MXU matmul) -> per-channel sum / sum^2 partials for the next BN.
#
# Activations live in HBM as (N, H, W+2, Cpad): W-halo columns stored as zeros
# by the producer, channels padded to a lane multiple.  Each grid step (n, t)
# DMAs its tile_h+2 input rows manually (clamped top/bottom halo rows, zeroed
# when outside the image) so no wrapper-side padding pass is needed.
# ----------------------------------------------------------------------------
def _conv_bn_stats_kernel(x_hbm, w_ref, scale_ref, shift_ref,
                          y_ref, stats_ref, xtile, sem,
                          *, H, W, TH, apply_input_act):
    n = pl.program_id(0)
    t = pl.program_id(1)
    r0 = t * TH

    # --- manual halo DMA: input rows [r0-1, r0+TH] clamped to [0, H-1] ------
    top = jnp.maximum(r0 - 1, 0)
    bot = jnp.minimum(r0 + TH, H - 1)
    cp_core = pltpu.make_async_copy(
        x_hbm.at[n, pl.ds(r0, TH), :, :], xtile.at[pl.ds(1, TH), :, :], sem.at[0])
    cp_top = pltpu.make_async_copy(
        x_hbm.at[n, pl.ds(top, 1), :, :], xtile.at[pl.ds(0, 1), :, :], sem.at[1])
    cp_bot = pltpu.make_async_copy(
        x_hbm.at[n, pl.ds(bot, 1), :, :], xtile.at[pl.ds(TH + 1, 1), :, :], sem.at[2])
    cp_core.start(); cp_top.start(); cp_bot.start()
    cp_core.wait(); cp_top.wait(); cp_bot.wait()
    # TODO(synk): double-buffer xtile and prefetch the next row-tile's rows to
    # overlap this DMA with compute (currently synchronous per grid step).

    xt = xtile[...]                                     # (TH+2, W+2, Cin_p) f32
    if apply_input_act:
        # Previous block's BatchNorm (folded scale/shift) + ReLU, applied at
        # the input read.  scale/shift are zero at the W-halo columns and the
        # padded channels, so zero padding stays exactly zero.
        xt = jnp.maximum(xt * scale_ref[...] + shift_ref[...], 0.0)
    # Zero the rows that fall outside the image (top/bottom SAME padding).
    row = lax.broadcasted_iota(jnp.int32, (TH + 2, 1, 1), 0) + (r0 - 1)
    xt = jnp.where((row >= 0) & (row <= H - 1), xt, 0.0)
    xt = xt.astype(jnp.bfloat16)                        # bf16 MXU operands

    # --- im2col: one (TH*W, 9*Cin) x (9*Cin, Cout) matmul, f32 accumulate ---
    cin_p = xt.shape[-1]
    cols = []
    for ky in range(3):
        for kx in range(3):
            win = xt[ky:ky + TH, kx:kx + W, :]          # (TH, W, Cin_p)
            cols.append(win.reshape(TH * W, cin_p))
    a = jnp.concatenate(cols, axis=-1)                  # (TH*W, 9*Cin_p) bf16
    acc = jnp.dot(a, w_ref[...], preferred_element_type=jnp.float32)

    # --- fused per-channel partial sums for BatchNorm (no extra HBM pass) ---
    # TODO(synk): single-pass E[x^2]-E[x]^2 can cancel for large means; a
    # Welford-style accumulation would be more robust for extreme activations.
    s1 = jnp.sum(acc, axis=0, keepdims=True)            # (1, Cout_p)
    s2 = jnp.sum(acc * acc, axis=0, keepdims=True)      # (1, Cout_p)
    stats_ref[...] = jnp.concatenate([s1, s2], axis=0)  # (2, Cout_p)

    # --- store conv output, lane-dense, with its zero W-halo columns --------
    cout_p = y_ref.shape[-1]
    out3 = acc.reshape(TH, W, cout_p)
    zcol = jnp.zeros((TH, 1, cout_p), jnp.float32)
    y_ref[...] = jnp.concatenate([zcol, out3, zcol], axis=1).astype(y_ref.dtype)


def _conv_block(x_pad, w2d, scale_w, shift_w, *, H, W, TH, apply_input_act):
    N = x_pad.shape[0]
    cin_p = x_pad.shape[-1]
    cout_p = w2d.shape[-1]
    T = H // TH
    Wp = W + 2

    kern = functools.partial(_conv_bn_stats_kernel, H=H, W=W, TH=TH,
                             apply_input_act=apply_input_act)
    flops = 2 * N * H * W * 9 * cin_p * cout_p
    bytes_accessed = (x_pad.size * 4 + N * H * Wp * cout_p * 4 + w2d.size * 2)

    y, stats = pl.pallas_call(
        kern,
        out_shape=(
            jax.ShapeDtypeStruct((N, H, Wp, cout_p), jnp.float32),
            jax.ShapeDtypeStruct((N * T, 2, cout_p), jnp.float32),
        ),
        grid=(N, T),
        in_specs=[
            pl.BlockSpec(memory_space=pl.ANY),                       # activation (HBM)
            pl.BlockSpec((9 * cin_p, cout_p), lambda n, t: (0, 0)),  # flat weight
            pl.BlockSpec((1, Wp, cin_p), lambda n, t: (0, 0, 0)),    # BN scale (widened)
            pl.BlockSpec((1, Wp, cin_p), lambda n, t: (0, 0, 0)),    # BN shift (widened)
        ],
        out_specs=(
            pl.BlockSpec((None, TH, Wp, cout_p), lambda n, t: (n, t, 0, 0)),
            pl.BlockSpec((None, 2, cout_p), lambda n, t: (n * T + t, 0, 0)),
        ),
        scratch_shapes=[
            pltpu.VMEM((TH + 2, Wp, cin_p), jnp.float32),
            pltpu.SemaphoreType.DMA((3,)),
        ],
        compiler_params=pltpu.CompilerParams(
            dimension_semantics=("parallel", "parallel"),
            vmem_limit_bytes=VMEM_LIMIT,
        ),
        cost_estimate=pl.CostEstimate(
            flops=flops, transcendentals=0, bytes_accessed=bytes_accessed),
    )(x_pad, w2d, scale_w, shift_w)
    return y, stats


# ----------------------------------------------------------------------------
# Kernel 2: final fused BN(scale/shift) + ReLU (only the last one in the block
# chain cannot be folded into a following conv).  Fully BlockSpec-pipelined,
# lane-dense in/out.
# ----------------------------------------------------------------------------
def _bn_relu_kernel(y_ref, scale_ref, shift_ref, o_ref):
    o_ref[...] = jnp.maximum(
        y_ref[...] * scale_ref[...] + shift_ref[...], 0.0).astype(o_ref.dtype)


def _bn_relu_block(y, scale_w, shift_w, *, TH):
    N, H, Wp, cp = y.shape
    T = H // TH
    return pl.pallas_call(
        _bn_relu_kernel,
        out_shape=jax.ShapeDtypeStruct(y.shape, y.dtype),
        grid=(N, T),
        in_specs=[
            pl.BlockSpec((None, TH, Wp, cp), lambda n, t: (n, t, 0, 0)),
            pl.BlockSpec((1, Wp, cp), lambda n, t: (0, 0, 0)),
            pl.BlockSpec((1, Wp, cp), lambda n, t: (0, 0, 0)),
        ],
        out_specs=pl.BlockSpec((None, TH, Wp, cp), lambda n, t: (n, t, 0, 0)),
        compiler_params=pltpu.CompilerParams(
            dimension_semantics=("parallel", "parallel"),
            vmem_limit_bytes=VMEM_LIMIT,
        ),
    )(y, scale_w, shift_w)


# ----------------------------------------------------------------------------
# Small glue helpers (tiny per-channel vectors only; no activation traffic).
# ----------------------------------------------------------------------------
def _fold_bn(stats_part, gamma_p, beta_p, count):
    s = jnp.sum(stats_part, axis=0)                     # (2, Cpad)
    mean = s[0] / count
    var = jnp.maximum(s[1] / count - mean * mean, 0.0)  # biased var (BN training)
    scale = gamma_p * lax.rsqrt(var + EPS)              # gamma_p == 0 on padded ch.
    shift = beta_p - mean * scale
    return scale, shift


def _widen(vec_c, W):
    """(Cpad,) -> (1, W+2, Cpad) with zeros at the W-halo columns."""
    cp = vec_c.shape[-1]
    out = jnp.zeros((1, W + 2, cp), vec_c.dtype)
    return out.at[:, 1:W + 1, :].set(vec_c)


def prepare_params(params, cin_p, cmid_p, cout_p):
    """Hoisted once per parameter set: OIHW -> flattened (9*Cin_p, Cout_p) bf16
    weights and lane-padded gamma/beta."""
    def prep_w(w_oihw, ip, op):
        o, i, kh, kw = w_oihw.shape
        w = jnp.transpose(w_oihw, (2, 3, 1, 0))         # OIHW -> HWIO
        w = jnp.pad(w, ((0, 0), (0, 0), (0, ip - i), (0, op - o)))
        return w.reshape(kh * kw * ip, op).astype(jnp.bfloat16)

    def prep_v(v, p):
        return jnp.pad(v.astype(jnp.float32), (0, p - v.shape[0]))

    return {
        "w1": prep_w(params["w1"], cin_p, cmid_p),
        "g1": prep_v(params["g1"], cmid_p),
        "b1": prep_v(params["b1"], cmid_p),
        "w2": prep_w(params["w2"], cmid_p, cout_p),
        "g2": prep_v(params["g2"], cout_p),
        "b2": prep_v(params["b2"], cout_p),
    }


# ----------------------------------------------------------------------------
# DoubleConv forward (NCHW in / NCHW out, PyTorch training-mode BN semantics)
# ----------------------------------------------------------------------------
def double_conv_forward(x_nchw, prepped, *, c_out, tile_h=None):
    N, c_in, H, W = x_nchw.shape
    cin_p = prepped["w1"].shape[0] // 9
    cmid_p = prepped["w1"].shape[1]
    if tile_h is None:
        tile_h = _pick_tile_h(H, W, max(cin_p, cmid_p))
    assert H % tile_h == 0, "tile_h must divide H"
    count = N * H * W

    # Interface glue: NCHW -> NHWC, add 1-pixel W halo, pad channels to a lane
    # multiple (no-op for channel counts that are already 128-multiples).
    x = jnp.transpose(x_nchw, (0, 2, 3, 1)).astype(jnp.float32)
    x = jnp.pad(x, ((0, 0), (0, 0), (1, 1), (0, cin_p - c_in)))

    zeros_s = jnp.zeros((1, W + 2, cin_p), jnp.float32)

    # Pass 1: conv1 + BN1 batch-stat partials.
    y1, st1 = _conv_block(x, prepped["w1"], zeros_s, zeros_s,
                          H=H, W=W, TH=tile_h, apply_input_act=False)
    scale1, shift1 = _fold_bn(st1, prepped["g1"], prepped["b1"], count)

    # Pass 2: BN1+ReLU folded into conv2's input read; conv2 + BN2 partials.
    y2, st2 = _conv_block(y1, prepped["w2"], _widen(scale1, W), _widen(shift1, W),
                          H=H, W=W, TH=tile_h, apply_input_act=True)
    scale2, shift2 = _fold_bn(st2, prepped["g2"], prepped["b2"], count)

    # Pass 3: final BN2 + ReLU.
    a2 = _bn_relu_block(y2, _widen(scale2, W), _widen(shift2, W), TH=tile_h)

    out = a2[:, :, 1:W + 1, :c_out]                     # strip halo + channel pad
    return jnp.transpose(out, (0, 3, 1, 2))             # NHWC -> NCHW


# ----------------------------------------------------------------------------
# Pure-JAX f32 reference (same math) for the correctness check.
# ----------------------------------------------------------------------------
def double_conv_reference(x_nchw, params):
    def conv(x, w):
        return lax.conv_general_dilated(
            x, w, (1, 1), "SAME",
            dimension_numbers=("NCHW", "OIHW", "NCHW"))

    def bn_relu(y, g, b):
        m = y.mean(axis=(0, 2, 3), keepdims=True)
        v = ((y - m) ** 2).mean(axis=(0, 2, 3), keepdims=True)
        z = (y - m) / jnp.sqrt(v + EPS) * g[None, :, None, None] \
            + b[None, :, None, None]
        return jnp.maximum(z, 0.0)

    h = bn_relu(conv(x_nchw, params["w1"]), params["g1"], params["b1"])
    return bn_relu(conv(h, params["w2"]), params["g2"], params["b2"])


if __name__ == "__main__":
    # Small, module-consistent shapes: batch=2, in_channels=4, out_channels=8,
    # mid_channels defaults to out_channels, spatial 16x16.  tile_h=8 so the
    # self-test exercises multi-row-tile halos (T=2) on both grid axes.
    N, C_IN, C_MID, C_OUT, H, W = 2, 4, 8, 8, 16, 16

    key = jax.random.PRNGKey(0)
    kx, kw1, kg1, kb1, kw2, kg2, kb2 = jax.random.split(key, 7)

    x = jax.random.normal(kx, (N, C_IN, H, W), dtype=jnp.float32)
    params = {
        # nn.Conv2d(in, mid, 3, padding=1, bias=False).weight : (mid, in, 3, 3)
        "w1": 0.1 * jax.random.normal(kw1, (C_MID, C_IN, 3, 3), jnp.float32),
        # nn.BatchNorm2d(mid): weight/bias (mid,)
        "g1": 1.0 + 0.1 * jax.random.normal(kg1, (C_MID,), jnp.float32),
        "b1": 0.1 * jax.random.normal(kb1, (C_MID,), jnp.float32),
        # nn.Conv2d(mid, out, 3, padding=1, bias=False).weight : (out, mid, 3, 3)
        "w2": 0.1 * jax.random.normal(kw2, (C_OUT, C_MID, 3, 3), jnp.float32),
        # nn.BatchNorm2d(out): weight/bias (out,)
        "g2": 1.0 + 0.1 * jax.random.normal(kg2, (C_OUT,), jnp.float32),
        "b2": 0.1 * jax.random.normal(kb2, (C_OUT,), jnp.float32),
    }

    cin_p = _round_up(C_IN, LANES)
    cmid_p = _round_up(C_MID, LANES)
    cout_p = _round_up(C_OUT, LANES)
    prepped = prepare_params(params, cin_p, cmid_p, cout_p)  # hoisted weight prep

    fwd = jax.jit(functools.partial(double_conv_forward, c_out=C_OUT, tile_h=8))
    out = jax.block_until_ready(fwd(x, prepped))
    ref = jax.block_until_ready(double_conv_reference(x, params))

    assert out.shape == (N, C_OUT, H, W), out.shape
    # Tolerance sized for bf16 MXU operands (f32 accumulation / f32 epilogue).
    np.testing.assert_allclose(np.asarray(out), np.asarray(ref),
                               rtol=4e-2, atol=4e-2)
    print("KERNEL_OK")
</pallas_src>

<mosaic_0001>
module attributes {stable_mosaic.version = 11 : i64} {
  func.func @_conv_bn_stats_kernel(%arg0: i32, %arg1: i32, %arg2: memref<2x16x18x128xf32, #tpu.memory_space<any>>, %arg3: memref<1152x128xbf16, #tpu.memory_space<vmem>>, %arg4: memref<1x18x128xf32, #tpu.memory_space<vmem>>, %arg5: memref<1x18x128xf32, #tpu.memory_space<vmem>>, %arg6: memref<1x8x18x128xf32, #tpu.memory_space<vmem>>, %arg7: memref<1x2x128xf32, #tpu.memory_space<vmem>>, %arg8: memref<10x18x128xf32, #tpu.memory_space<vmem>>, %arg9: memref<3x!tpu.dma_semaphore, #tpu.memory_space<semaphore_mem>>) attributes {dimension_semantics = [#tpu.dimension_semantics<parallel>, #tpu.dimension_semantics<parallel>], iteration_bounds = array<i64: 2, 2>, scalar_prefetch = 0 : i64, scratch_operands = 2 : i64, tpu.core_type = #tpu.core_type<tc>, window_params = [{}, {pipeline_mode = #tpu.pipeline_mode<synchronous>, transform_indices = @transform_1, window_bounds = array<i64: 1152, 128>}, {pipeline_mode = #tpu.pipeline_mode<synchronous>, transform_indices = @transform_2, window_bounds = array<i64: 1, 18, 128>}, {pipeline_mode = #tpu.pipeline_mode<synchronous>, transform_indices = @transform_3, window_bounds = array<i64: 1, 18, 128>}, {transform_indices = @transform_4, window_bounds = array<i64: 1, 8, 18, 128>}, {transform_indices = @transform_5, window_bounds = array<i64: 1, 2, 128>}]} {
    %c8_i32 = arith.constant 8 : i32
    %0 = arith.muli %arg1, %c8_i32 : i32
    %c1_i32 = arith.constant 1 : i32
    %1 = arith.subi %0, %c1_i32 : i32
    %c0_i32 = arith.constant 0 : i32
    %2 = arith.maxsi %1, %c0_i32 : i32
    %c8_i32_0 = arith.constant 8 : i32
    %3 = arith.addi %0, %c8_i32_0 : i32
    %c15_i32 = arith.constant 15 : i32
    %4 = arith.minsi %3, %c15_i32 : i32
    %c0_i32_1 = arith.constant 0 : i32
    %c0_i32_2 = arith.constant 0 : i32
    %c0_i32_3 = arith.constant 0 : i32
    %5 = tpu.memref_slice %arg2[%arg0, %0, %c0_i32_2, %c0_i32_3] : memref<2x16x18x128xf32, #tpu.memory_space<any>> -> memref<1x8x18x128xf32, #tpu.memory_space<any>>
    %6 = tpu.memref_squeeze %5 : memref<1x8x18x128xf32, #tpu.memory_space<any>> -> memref<8x18x128xf32, #tpu.memory_space<any>>
    %c1_i32_4 = arith.constant 1 : i32
    %c0_i32_5 = arith.constant 0 : i32
    %c0_i32_6 = arith.constant 0 : i32
    %7 = tpu.memref_slice %arg8[%c1_i32_4, %c0_i32_5, %c0_i32_6] : memref<10x18x128xf32, #tpu.memory_space<vmem>> -> memref<8x18x128xf32, #tpu.memory_space<vmem>>
    %8 = tpu.memref_slice %arg9[%c0_i32_1] : memref<3x!tpu.dma_semaphore, #tpu.memory_space<semaphore_mem>> -> memref<1x!tpu.dma_semaphore, #tpu.memory_space<semaphore_mem>>
    %9 = tpu.memref_squeeze %8 : memref<1x!tpu.dma_semaphore, #tpu.memory_space<semaphore_mem>> -> memref<!tpu.dma_semaphore, #tpu.memory_space<semaphore_mem>>
    tpu.enqueue_dma source(%6 : memref<8x18x128xf32, #tpu.memory_space<any>>) target(%7 : memref<8x18x128xf32, #tpu.memory_space<vmem>>) target_semaphore(%9 : memref<!tpu.dma_semaphore, #tpu.memory_space<semaphore_mem>>)
    %c1_i32_7 = arith.constant 1 : i32
    %c0_i32_8 = arith.constant 0 : i32
    %c0_i32_9 = arith.constant 0 : i32
    %10 = tpu.memref_slice %arg2[%arg0, %2, %c0_i32_8, %c0_i32_9] : memref<2x16x18x128xf32, #tpu.memory_space<any>> -> memref<1x1x18x128xf32, #tpu.memory_space<any>>
    %11 = tpu.memref_squeeze %10 : memref<1x1x18x128xf32, #tpu.memory_space<any>> -> memref<1x18x128xf32, #tpu.memory_space<any>>
    %c0_i32_10 = arith.constant 0 : i32
    %c0_i32_11 = arith.constant 0 : i32
    %c0_i32_12 = arith.constant 0 : i32
    %12 = tpu.memref_slice %arg8[%c0_i32_10, %c0_i32_11, %c0_i32_12] : memref<10x18x128xf32, #tpu.memory_space<vmem>> -> memref<1x18x128xf32, #tpu.memory_space<vmem>>
    %13 = tpu.memref_slice %arg9[%c1_i32_7] : memref<3x!tpu.dma_semaphore, #tpu.memory_space<semaphore_mem>> -> memref<1x!tpu.dma_semaphore, #tpu.memory_space<semaphore_mem>>
    %14 = tpu.memref_squeeze %13 : memref<1x!tpu.dma_semaphore, #tpu.memory_space<semaphore_mem>> -> memref<!tpu.dma_semaphore, #tpu.memory_space<semaphore_mem>>
    tpu.enqueue_dma source(%11 : memref<1x18x128xf32, #tpu.memory_space<any>>) target(%12 : memref<1x18x128xf32, #tpu.memory_space<vmem>>) target_semaphore(%14 : memref<!tpu.dma_semaphore, #tpu.memory_space<semaphore_mem>>)
    %c2_i32 = arith.constant 2 : i32
    %c0_i32_13 = arith.constant 0 : i32
    %c0_i32_14 = arith.constant 0 : i32
    %15 = tpu.memref_slice %arg2[%arg0, %4, %c0_i32_13, %c0_i32_14] : memref<2x16x18x128xf32, #tpu.memory_space<any>> -> memref<1x1x18x128xf32, #tpu.memory_space<any>>
    %16 = tpu.memref_squeeze %15 : memref<1x1x18x128xf32, #tpu.memory_space<any>> -> memref<1x18x128xf32, #tpu.memory_space<any>>
    %c9_i32 = arith.constant 9 : i32
    %c0_i32_15 = arith.constant 0 : i32
    %c0_i32_16 = arith.constant 0 : i32
    %17 = tpu.memref_slice %arg8[%c9_i32, %c0_i32_15, %c0_i32_16] : memref<10x18x128xf32, #tpu.memory_space<vmem>> -> memref<1x18x128xf32, #tpu.memory_space<vmem>>
    %18 = tpu.memref_slice %arg9[%c2_i32] : memref<3x!tpu.dma_semaphore, #tpu.memory_space<semaphore_mem>> -> memref<1x!tpu.dma_semaphore, #tpu.memory_space<semaphore_mem>>
    %19 = tpu.memref_squeeze %18 : memref<1x!tpu.dma_semaphore, #tpu.memory_space<semaphore_mem>> -> memref<!tpu.dma_semaphore, #tpu.memory_space<semaphore_mem>>
    tpu.enqueue_dma source(%16 : memref<1x18x128xf32, #tpu.memory_space<any>>) target(%17 : memref<1x18x128xf32, #tpu.memory_space<vmem>>) target_semaphore(%19 : memref<!tpu.dma_semaphore, #tpu.memory_space<semaphore_mem>>)
    %c0_i32_17 = arith.constant 0 : i32
    %c0_i32_18 = arith.constant 0 : i32
    %c0_i32_19 = arith.constant 0 : i32
    %20 = tpu.memref_slice %arg2[%arg0, %0, %c0_i32_18, %c0_i32_19] : memref<2x16x18x128xf32, #tpu.memory_space<any>> -> memref<1x8x18x128xf32, #tpu.memory_space<any>>
    %21 = tpu.memref_squeeze %20 : memref<1x8x18x128xf32, #tpu.memory_space<any>> -> memref<8x18x128xf32, #tpu.memory_space<any>>
    %c1_i32_20 = arith.constant 1 : i32
    %c0_i32_21 = arith.constant 0 : i32
    %c0_i32_22 = arith.constant 0 : i32
    %22 = tpu.memref_slice %arg8[%c1_i32_20, %c0_i32_21, %c0_i32_22] : memref<10x18x128xf32, #tpu.memory_space<vmem>> -> memref<8x18x128xf32, #tpu.memory_space<vmem>>
    %23 = tpu.memref_slice %arg9[%c0_i32_17] : memref<3x!tpu.dma_semaphore, #tpu.memory_space<semaphore_mem>> -> memref<1x!tpu.dma_semaphore, #tpu.memory_space<semaphore_mem>>
    %24 = tpu.memref_squeeze %23 : memref<1x!tpu.dma_semaphore, #tpu.memory_space<semaphore_mem>> -> memref<!tpu.dma_semaphore, #tpu.memory_space<semaphore_mem>>
    tpu.wait_dma2 semaphore(%24 : memref<!tpu.dma_semaphore, #tpu.memory_space<semaphore_mem>>) src(%21 : memref<8x18x128xf32, #tpu.memory_space<any>>) dst(%22 : memref<8x18x128xf32, #tpu.memory_space<vmem>>)
    %c1_i32_23 = arith.constant 1 : i32
    %c0_i32_24 = arith.constant 0 : i32
    %c0_i32_25 = arith.constant 0 : i32
    %25 = tpu.memref_slice %arg2[%arg0, %2, %c0_i32_24, %c0_i32_25] : memref<2x16x18x128xf32, #tpu.memory_space<any>> -> memref<1x1x18x128xf32, #tpu.memory_space<any>>
    %26 = tpu.memref_squeeze %25 : memref<1x1x18x128xf32, #tpu.memory_space<any>> -> memref<1x18x128xf32, #tpu.memory_space<any>>
    %c0_i32_26 = arith.constant 0 : i32
    %c0_i32_27 = arith.constant 0 : i32
    %c0_i32_28 = arith.constant 0 : i32
    %27 = tpu.memref_slice %arg8[%c0_i32_26, %c0_i32_27, %c0_i32_28] : memref<10x18x128xf32, #tpu.memory_space<vmem>> -> memref<1x18x128xf32, #tpu.memory_space<vmem>>
    %28 = tpu.memref_slice %arg9[%c1_i32_23] : memref<3x!tpu.dma_semaphore, #tpu.memory_space<semaphore_mem>> -> memref<1x!tpu.dma_semaphore, #tpu.memory_space<semaphore_mem>>
    %29 = tpu.memref_squeeze %28 : memref<1x!tpu.dma_semaphore, #tpu.memory_space<semaphore_mem>> -> memref<!tpu.dma_semaphore, #tpu.memory_space<semaphore_mem>>
    tpu.wait_dma2 semaphore(%29 : memref<!tpu.dma_semaphore, #tpu.memory_space<semaphore_mem>>) src(%26 : memref<1x18x128xf32, #tpu.memory_space<any>>) dst(%27 : memref<1x18x128xf32, #tpu.memory_space<vmem>>)
    %c2_i32_29 = arith.constant 2 : i32
    %c0_i32_30 = arith.constant 0 : i32
    %c0_i32_31 = arith.constant 0 : i32
    %30 = tpu.memref_slice %arg2[%arg0, %4, %c0_i32_30, %c0_i32_31] : memref<2x16x18x128xf32, #tpu.memory_space<any>> -> memref<1x1x18x128xf32, #tpu.memory_space<any>>
    %31 = tpu.memref_squeeze %30 : memref<1x1x18x128xf32, #tpu.memory_space<any>> -> memref<1x18x128xf32, #tpu.memory_space<any>>
    %c9_i32_32 = arith.constant 9 : i32
    %c0_i32_33 = arith.constant 0 : i32
    %c0_i32_34 = arith.constant 0 : i32
    %32 = tpu.memref_slice %arg8[%c9_i32_32, %c0_i32_33, %c0_i32_34] : memref<10x18x128xf32, #tpu.memory_space<vmem>> -> memref<1x18x128xf32, #tpu.memory_space<vmem>>
    %33 = tpu.memref_slice %arg9[%c2_i32_29] : memref<3x!tpu.dma_semaphore, #tpu.memory_space<semaphore_mem>> -> memref<1x!tpu.dma_semaphore, #tpu.memory_space<semaphore_mem>>
    %34 = tpu.memref_squeeze %33 : memref<1x!tpu.dma_semaphore, #tpu.memory_space<semaphore_mem>> -> memref<!tpu.dma_semaphore, #tpu.memory_space<semaphore_mem>>
    tpu.wait_dma2 semaphore(%34 : memref<!tpu.dma_semaphore, #tpu.memory_space<semaphore_mem>>) src(%31 : memref<1x18x128xf32, #tpu.memory_space<any>>) dst(%32 : memref<1x18x128xf32, #tpu.memory_space<vmem>>)
    %c0 = arith.constant 0 : index
    %c0_35 = arith.constant 0 : index
    %c0_36 = arith.constant 0 : index
    %35 = vector.load %arg8[%c0, %c0_35, %c0_36] : memref<10x18x128xf32, #tpu.memory_space<vmem>>, vector<10x18x128xf32>
    %36 = tpu.iota {dimensions = array<i32: 0>} : vector<10x1x1xi32>
    %c1_i32_37 = arith.constant 1 : i32
    %37 = arith.subi %0, %c1_i32_37 : i32
    %38 = vector.broadcast %37 : i32 to vector<10x1x1xi32>
    %39 = arith.addi %36, %38 : vector<10x1x1xi32>
    %c0_i32_38 = arith.constant 0 : i32
    %40 = vector.broadcast %c0_i32_38 : i32 to vector<10x1x1xi32>
    %41 = arith.cmpi sge, %39, %40 : vector<10x1x1xi32>
    %c15_i32_39 = arith.constant 15 : i32
    %42 = vector.broadcast %c15_i32_39 : i32 to vector<10x1x1xi32>
    %43 = arith.cmpi sle, %39, %42 : vector<10x1x1xi32>
    %44 = arith.andi %41, %43 : vector<10x1x1xi1>
    %cst = arith.constant 0.000000e+00 : f32
    %45 = vector.shape_cast %44 : vector<10x1x1xi1> to vector<10x1x1xi1>
    %46 = vector.broadcast %45 : vector<10x1x1xi1> to vector<10x18x128xi1>
    %47 = vector.broadcast %cst : f32 to vector<10x18x128xf32>
    %48 = arith.select %46, %35, %47 : vector<10x18x128xi1>, vector<10x18x128xf32>
    %49 = arith.truncf %48 : vector<10x18x128xf32> to vector<10x18x128xbf16>
    %50 = vector.extract_strided_slice %49 {offsets = [0, 0, 0], sizes = [8, 16, 128], strides = [1, 1, 1]} : vector<10x18x128xbf16> to vector<8x16x128xbf16>
    %51 = vector.shape_cast %50 : vector<8x16x128xbf16> to vector<128x128xbf16>
    %52 = vector.extract_strided_slice %49 {offsets = [0, 1, 0], sizes = [8, 16, 128], strides = [1, 1, 1]} : vector<10x18x128xbf16> to vector<8x16x128xbf16>
    %53 = vector.shape_cast %52 : vector<8x16x128xbf16> to vector<128x128xbf16>
    %54 = vector.extract_strided_slice %49 {offsets = [0, 2, 0], sizes = [8, 16, 128], strides = [1, 1, 1]} : vector<10x18x128xbf16> to vector<8x16x128xbf16>
    %55 = vector.shape_cast %54 : vector<8x16x128xbf16> to vector<128x128xbf16>
    %56 = vector.extract_strided_slice %49 {offsets = [1, 0, 0], sizes = [8, 16, 128], strides = [1, 1, 1]} : vector<10x18x128xbf16> to vector<8x16x128xbf16>
    %57 = vector.shape_cast %56 : vector<8x16x128xbf16> to vector<128x128xbf16>
    %58 = vector.extract_strided_slice %49 {offsets = [1, 1, 0], sizes = [8, 16, 128], strides = [1, 1, 1]} : vector<10x18x128xbf16> to vector<8x16x128xbf16>
    %59 = vector.shape_cast %58 : vector<8x16x128xbf16> to vector<128x128xbf16>
    %60 = vector.extract_strided_slice %49 {offsets = [1, 2, 0], sizes = [8, 16, 128], strides = [1, 1, 1]} : vector<10x18x128xbf16> to vector<8x16x128xbf16>
    %61 = vector.shape_cast %60 : vector<8x16x128xbf16> to vector<128x128xbf16>
    %62 = vector.extract_strided_slice %49 {offsets = [2, 0, 0], sizes = [8, 16, 128], strides = [1, 1, 1]} : vector<10x18x128xbf16> to vector<8x16x128xbf16>
    %63 = vector.shape_cast %62 : vector<8x16x128xbf16> to vector<128x128xbf16>
    %64 = vector.extract_strided_slice %49 {offsets = [2, 1, 0], sizes = [8, 16, 128], strides = [1, 1, 1]} : vector<10x18x128xbf16> to vector<8x16x128xbf16>
    %65 = vector.shape_cast %64 : vector<8x16x128xbf16> to vector<128x128xbf16>
    %66 = vector.extract_strided_slice %49 {offsets = [2, 2, 0], sizes = [8, 16, 128], strides = [1, 1, 1]} : vector<10x18x128xbf16> to vector<8x16x128xbf16>
    %67 = vector.shape_cast %66 : vector<8x16x128xbf16> to vector<128x128xbf16>
    %68 = tpu.concatenate %51, %53, %55, %57, %59, %61, %63, %65, %67 in 1 : vector<128x128xbf16>, vector<128x128xbf16>, vector<128x128xbf16>, vector<128x128xbf16>, vector<128x128xbf16>, vector<128x128xbf16>, vector<128x128xbf16>, vector<128x128xbf16>, vector<128x128xbf16> -> vector<128x1152xbf16>
    %c0_40 = arith.constant 0 : index
    %c0_41 = arith.constant 0 : index
    %69 = vector.load %arg3[%c0_40, %c0_41] : memref<1152x128xbf16, #tpu.memory_space<vmem>>, vector<1152x128xbf16>
    %cst_42 = arith.constant dense<0.000000e+00> : vector<128x128xf32>
    %70 = tpu.matmul %68, %69, %cst_42 {dimension_numbers = #tpu.dot_dimension_numbers<[1], [0], [0], [1], [0, 0, 1, 1], [], []>} : vector<128x1152xbf16>, vector<1152x128xbf16>, vector<128x128xf32> -> vector<128x128xf32>
    %cst_43 = arith.constant dense<0.000000e+00> : vector<128xf32>
    %71 = vector.multi_reduction <add>, %70, %cst_43 [0] : vector<128x128xf32> to vector<128xf32>
    %72 = vector.shape_cast %71 : vector<128xf32> to vector<1x128xf32>
    %73 = arith.mulf %70, %70 : vector<128x128xf32>
    %cst_44 = arith.constant dense<0.000000e+00> : vector<128xf32>
    %74 = vector.multi_reduction <add>, %73, %cst_44 [0] : vector<128x128xf32> to vector<128xf32>
    %75 = vector.shape_cast %74 : vector<128xf32> to vector<1x128xf32>
    %76 = tpu.concatenate %72, %75 in 0 : vector<1x128xf32>, vector<1x128xf32> -> vector<2x128xf32>
    %c0_45 = arith.constant 0 : index
    %c0_46 = arith.constant 0 : index
    %c0_47 = arith.constant 0 : index
    %77 = vector.load %arg7[%c0_45, %c0_46, %c0_47] : memref<1x2x128xf32, #tpu.memory_space<vmem>>, vector<1x2x128xf32>
    %78 = vector.shape_cast %77 : vector<1x2x128xf32> to vector<2x128xf32>
    %79 = vector.shape_cast %76 : vector<2x128xf32> to vector<1x2x128xf32>
    tpu.vector_store %arg7[%c0_45, %c0_46, %c0_47], %79 {strides = array<i32>} : memref<1x2x128xf32, #tpu.memory_space<vmem>>, vector<1x2x128xf32>,
    %80 = vector.shape_cast %70 : vector<128x128xf32> to vector<8x16x128xf32>
    %cst_48 = arith.constant 0.000000e+00 : f32
    %81 = vector.broadcast %cst_48 : f32 to vector<8x1x128xf32>
    %82 = tpu.concatenate %81, %80, %81 in 1 : vector<8x1x128xf32>, vector<8x16x128xf32>, vector<8x1x128xf32> -> vector<8x18x128xf32>
    %c0_49 = arith.constant 0 : index
    %c0_50 = arith.constant 0 : index
    %c0_51 = arith.constant 0 : index
    %c0_52 = arith.constant 0 : index
    %83 = vector.load %arg6[%c0_49, %c0_50, %c0_51, %c0_52] : memref<1x8x18x128xf32, #tpu.memory_space<vmem>>, vector<1x8x18x128xf32>
    %84 = vector.shape_cast %83 : vector<1x8x18x128xf32> to vector<8x18x128xf32>
    %85 = vector.shape_cast %82 : vector<8x18x128xf32> to vector<1x8x18x128xf32>
    tpu.vector_store %arg6[%c0_49, %c0_50, %c0_51, %c0_52], %85 {strides = array<i32>} : memref<1x8x18x128xf32, #tpu.memory_space<vmem>>, vector<1x8x18x128xf32>,
    return
  }
  func.func @transform_1(%arg0: i32, %arg1: i32) -> (i32, i32) {
    %c0_i32 = arith.constant 0 : i32
    %c0_i32_0 = arith.constant 0 : i32
    %c0_i32_1 = arith.constant 0 : i32
    return %c0_i32, %c0_i32_0 : i32, i32
  }
  func.func @transform_2(%arg0: i32, %arg1: i32) -> (i32, i32, i32) {
    %c0_i32 = arith.constant 0 : i32
    %c0_i32_0 = arith.constant 0 : i32
    %c0_i32_1 = arith.constant 0 : i32
    %c0_i32_2 = arith.constant 0 : i32
    return %c0_i32, %c0_i32_0, %c0_i32_1 : i32, i32, i32
  }
  func.func @transform_3(%arg0: i32, %arg1: i32) -> (i32, i32, i32) {
    %c0_i32 = arith.constant 0 : i32
    %c0_i32_0 = arith.constant 0 : i32
    %c0_i32_1 = arith.constant 0 : i32
    %c0_i32_2 = arith.constant 0 : i32
    return %c0_i32, %c0_i32_0, %c0_i32_1 : i32, i32, i32
  }
  func.func @transform_4(%arg0: i32, %arg1: i32) -> (i32, i32, i32, i32) {
    %c0_i32 = arith.constant 0 : i32
    %c0_i32_0 = arith.constant 0 : i32
    %c0_i32_1 = arith.constant 0 : i32
    return %arg0, %arg1, %c0_i32, %c0_i32_0 : i32, i32, i32, i32
  }
  func.func @transform_5(%arg0: i32, %arg1: i32) -> (i32, i32, i32) {
    %c2_i32 = arith.constant 2 : i32
    %0 = arith.muli %arg0, %c2_i32 : i32
    %1 = arith.addi %0, %arg1 : i32
    %c0_i32 = arith.constant 0 : i32
    %c0_i32_0 = arith.constant 0 : i32
    %c0_i32_1 = arith.constant 0 : i32
    return %1, %c0_i32, %c0_i32_0 : i32, i32, i32
  }
}

module attributes {stable_mosaic.version = 11 : i64} {
  func.func @_bn_relu_kernel(%arg0: i32, %arg1: i32, %arg2: memref<1x8x18x128xf32, #tpu.memory_space<vmem>>, %arg3: memref<1x18x128xf32, #tpu.memory_space<vmem>>, %arg4: memref<1x18x128xf32, #tpu.memory_space<vmem>>, %arg5: memref<1x8x18x128xf32, #tpu.memory_space<vmem>>) attributes {dimension_semantics = [#tpu.dimension_semantics<parallel>, #tpu.dimension_semantics<parallel>], iteration_bounds = array<i64: 2, 2>, scalar_prefetch = 0 : i64, scratch_operands = 0 : i64, tpu.core_type = #tpu.core_type<tc>, window_params = [{transform_indices = @transform_0, window_bounds = array<i64: 1, 8, 18, 128>}, {pipeline_mode = #tpu.pipeline_mode<synchronous>, transform_indices = @transform_1, window_bounds = array<i64: 1, 18, 128>}, {pipeline_mode = #tpu.pipeline_mode<synchronous>, transform_indices = @transform_2, window_bounds = array<i64: 1, 18, 128>}, {transform_indices = @transform_3, window_bounds = array<i64: 1, 8, 18, 128>}]} {
    %c0 = arith.constant 0 : index
    %c0_0 = arith.constant 0 : index
    %c0_1 = arith.constant 0 : index
    %c0_2 = arith.constant 0 : index
    %0 = vector.load %arg2[%c0, %c0_0, %c0_1, %c0_2] : memref<1x8x18x128xf32, #tpu.memory_space<vmem>>, vector<1x8x18x128xf32>
    %1 = vector.shape_cast %0 : vector<1x8x18x128xf32> to vector<8x18x128xf32>
    %c0_3 = arith.constant 0 : index
    %c0_4 = arith.constant 0 : index
    %c0_5 = arith.constant 0 : index
    %2 = vector.load %arg3[%c0_3, %c0_4, %c0_5] : memref<1x18x128xf32, #tpu.memory_space<vmem>>, vector<1x18x128xf32>
    %3 = vector.broadcast %2 : vector<1x18x128xf32> to vector<8x18x128xf32>
    %4 = arith.mulf %1, %3 : vector<8x18x128xf32>
    %c0_6 = arith.constant 0 : index
    %c0_7 = arith.constant 0 : index
    %c0_8 = arith.constant 0 : index
    %5 = vector.load %arg4[%c0_6, %c0_7, %c0_8] : memref<1x18x128xf32, #tpu.memory_space<vmem>>, vector<1x18x128xf32>
    %6 = vector.broadcast %5 : vector<1x18x128xf32> to vector<8x18x128xf32>
    %7 = arith.addf %4, %6 : vector<8x18x128xf32>
    %cst = arith.constant 0.000000e+00 : f32
    %8 = vector.broadcast %cst : f32 to vector<8x18x128xf32>
    %9 = arith.maximumf %7, %8 : vector<8x18x128xf32>
    %c0_9 = arith.constant 0 : index
    %c0_10 = arith.constant 0 : index
    %c0_11 = arith.constant 0 : index
    %c0_12 = arith.constant 0 : index
    %10 = vector.load %arg5[%c0_9, %c0_10, %c0_11, %c0_12] : memref<1x8x18x128xf32, #tpu.memory_space<vmem>>, vector<1x8x18x128xf32>
    %11 = vector.shape_cast %10 : vector<1x8x18x128xf32> to vector<8x18x128xf32>
    %12 = vector.shape_cast %9 : vector<8x18x128xf32> to vector<1x8x18x128xf32>
    tpu.vector_store %arg5[%c0_9, %c0_10, %c0_11, %c0_12], %12 {strides = array<i32>} : memref<1x8x18x128xf32, #tpu.memory_space<vmem>>, vector<1x8x18x128xf32>,
    return
  }
  func.func @transform_0(%arg0: i32, %arg1: i32) -> (i32, i32, i32, i32) {
    %c0_i32 = arith.constant 0 : i32
    %c0_i32_0 = arith.constant 0 : i32
    %c0_i32_1 = arith.constant 0 : i32
    return %arg0, %arg1, %c0_i32, %c0_i32_0 : i32, i32, i32, i32
  }
  func.func @transform_1(%arg0: i32, %arg1: i32) -> (i32, i32, i32) {
    %c0_i32 = arith.constant 0 : i32
    %c0_i32_0 = arith.constant 0 : i32
    %c0_i32_1 = arith.constant 0 : i32
    %c0_i32_2 = arith.constant 0 : i32
    return %c0_i32, %c0_i32_0, %c0_i32_1 : i32, i32, i32
  }
  func.func @transform_2(%arg0: i32, %arg1: i32) -> (i32, i32, i32) {
    %c0_i32 = arith.constant 0 : i32
    %c0_i32_0 = arith.constant 0 : i32
    %c0_i32_1 = arith.constant 0 : i32
    %c0_i32_2 = arith.constant 0 : i32
    return %c0_i32, %c0_i32_0, %c0_i32_1 : i32, i32, i32
  }
  func.func @transform_3(%arg0: i32, %arg1: i32) -> (i32, i32, i32, i32) {
    %c0_i32 = arith.constant 0 : i32
    %c0_i32_0 = arith.constant 0 : i32
    %c0_i32_1 = arith.constant 0 : i32
    return %arg0, %arg1, %c0_i32, %c0_i32_0 : i32, i32, i32, i32
  }
}

module attributes {stable_mosaic.version = 11 : i64} {
  func.func @_conv_bn_stats_kernel(%arg0: i32, %arg1: i32, %arg2: memref<2x16x18x128xf32, #tpu.memory_space<any>>, %arg3: memref<1152x128xbf16, #tpu.memory_space<vmem>>, %arg4: memref<1x18x128xf32, #tpu.memory_space<vmem>>, %arg5: memref<1x18x128xf32, #tpu.memory_space<vmem>>, %arg6: memref<1x8x18x128xf32, #tpu.memory_space<vmem>>, %arg7: memref<1x2x128xf32, #tpu.memory_space<vmem>>, %arg8: memref<10x18x128xf32, #tpu.memory_space<vmem>>, %arg9: memref<3x!tpu.dma_semaphore, #tpu.memory_space<semaphore_mem>>) attributes {dimension_semantics = [#tpu.dimension_semantics<parallel>, #tpu.dimension_semantics<parallel>], iteration_bounds = array<i64: 2, 2>, scalar_prefetch = 0 : i64, scratch_operands = 2 : i64, tpu.core_type = #tpu.core_type<tc>, window_params = [{}, {pipeline_mode = #tpu.pipeline_mode<synchronous>, transform_indices = @transform_1, window_bounds = array<i64: 1152, 128>}, {pipeline_mode = #tpu.pipeline_mode<synchronous>, transform_indices = @transform_2, window_bounds = array<i64: 1, 18, 128>}, {pipeline_mode = #tpu.pipeline_mode<synchronous>, transform_indices = @transform_3, window_bounds = array<i64: 1, 18, 128>}, {transform_indices = @transform_4, window_bounds = array<i64: 1, 8, 18, 128>}, {transform_indices = @transform_5, window_bounds = array<i64: 1, 2, 128>}]} {
    %c8_i32 = arith.constant 8 : i32
    %0 = arith.muli %arg1, %c8_i32 : i32
    %c1_i32 = arith.constant 1 : i32
    %1 = arith.subi %0, %c1_i32 : i32
    %c0_i32 = arith.constant 0 : i32
    %2 = arith.maxsi %1, %c0_i32 : i32
    %c8_i32_0 = arith.constant 8 : i32
    %3 = arith.addi %0, %c8_i32_0 : i32
    %c15_i32 = arith.constant 15 : i32
    %4 = arith.minsi %3, %c15_i32 : i32
    %c0_i32_1 = arith.constant 0 : i32
    %c0_i32_2 = arith.constant 0 : i32
    %c0_i32_3 = arith.constant 0 : i32
    %5 = tpu.memref_slice %arg2[%arg0, %0, %c0_i32_2, %c0_i32_3] : memref<2x16x18x128xf32, #tpu.memory_space<any>> -> memref<1x8x18x128xf32, #tpu.memory_space<any>>
    %6 = tpu.memref_squeeze %5 : memref<1x8x18x128xf32, #tpu.memory_space<any>> -> memref<8x18x128xf32, #tpu.memory_space<any>>
    %c1_i32_4 = arith.constant 1 : i32
    %c0_i32_5 = arith.constant 0 : i32
    %c0_i32_6 = arith.constant 0 : i32
    %7 = tpu.memref_slice %arg8[%c1_i32_4, %c0_i32_5, %c0_i32_6] : memref<10x18x128xf32, #tpu.memory_space<vmem>> -> memref<8x18x128xf32, #tpu.memory_space<vmem>>
    %8 = tpu.memref_slice %arg9[%c0_i32_1] : memref<3x!tpu.dma_semaphore, #tpu.memory_space<semaphore_mem>> -> memref<1x!tpu.dma_semaphore, #tpu.memory_space<semaphore_mem>>
    %9 = tpu.memref_squeeze %8 : memref<1x!tpu.dma_semaphore, #tpu.memory_space<semaphore_mem>> -> memref<!tpu.dma_semaphore, #tpu.memory_space<semaphore_mem>>
    tpu.enqueue_dma source(%6 : memref<8x18x128xf32, #tpu.memory_space<any>>) target(%7 : memref<8x18x128xf32, #tpu.memory_space<vmem>>) target_semaphore(%9 : memref<!tpu.dma_semaphore, #tpu.memory_space<semaphore_mem>>)
    %c1_i32_7 = arith.constant 1 : i32
    %c0_i32_8 = arith.constant 0 : i32
    %c0_i32_9 = arith.constant 0 : i32
    %10 = tpu.memref_slice %arg2[%arg0, %2, %c0_i32_8, %c0_i32_9] : memref<2x16x18x128xf32, #tpu.memory_space<any>> -> memref<1x1x18x128xf32, #tpu.memory_space<any>>
    %11 = tpu.memref_squeeze %10 : memref<1x1x18x128xf32, #tpu.memory_space<any>> -> memref<1x18x128xf32, #tpu.memory_space<any>>
    %c0_i32_10 = arith.constant 0 : i32
    %c0_i32_11 = arith.constant 0 : i32
    %c0_i32_12 = arith.constant 0 : i32
    %12 = tpu.memref_slice %arg8[%c0_i32_10, %c0_i32_11, %c0_i32_12] : memref<10x18x128xf32, #tpu.memory_space<vmem>> -> memref<1x18x128xf32, #tpu.memory_space<vmem>>
    %13 = tpu.memref_slice %arg9[%c1_i32_7] : memref<3x!tpu.dma_semaphore, #tpu.memory_space<semaphore_mem>> -> memref<1x!tpu.dma_semaphore, #tpu.memory_space<semaphore_mem>>
    %14 = tpu.memref_squeeze %13 : memref<1x!tpu.dma_semaphore, #tpu.memory_space<semaphore_mem>> -> memref<!tpu.dma_semaphore, #tpu.memory_space<semaphore_mem>>
    tpu.enqueue_dma source(%11 : memref<1x18x128xf32, #tpu.memory_space<any>>) target(%12 : memref<1x18x128xf32, #tpu.memory_space<vmem>>) target_semaphore(%14 : memref<!tpu.dma_semaphore, #tpu.memory_space<semaphore_mem>>)
    %c2_i32 = arith.constant 2 : i32
    %c0_i32_13 = arith.constant 0 : i32
    %c0_i32_14 = arith.constant 0 : i32
    %15 = tpu.memref_slice %arg2[%arg0, %4, %c0_i32_13, %c0_i32_14] : memref<2x16x18x128xf32, #tpu.memory_space<any>> -> memref<1x1x18x128xf32, #tpu.memory_space<any>>
    %16 = tpu.memref_squeeze %15 : memref<1x1x18x128xf32, #tpu.memory_space<any>> -> memref<1x18x128xf32, #tpu.memory_space<any>>
    %c9_i32 = arith.constant 9 : i32
    %c0_i32_15 = arith.constant 0 : i32
    %c0_i32_16 = arith.constant 0 : i32
    %17 = tpu.memref_slice %arg8[%c9_i32, %c0_i32_15, %c0_i32_16] : memref<10x18x128xf32, #tpu.memory_space<vmem>> -> memref<1x18x128xf32, #tpu.memory_space<vmem>>
    %18 = tpu.memref_slice %arg9[%c2_i32] : memref<3x!tpu.dma_semaphore, #tpu.memory_space<semaphore_mem>> -> memref<1x!tpu.dma_semaphore, #tpu.memory_space<semaphore_mem>>
    %19 = tpu.memref_squeeze %18 : memref<1x!tpu.dma_semaphore, #tpu.memory_space<semaphore_mem>> -> memref<!tpu.dma_semaphore, #tpu.memory_space<semaphore_mem>>
    tpu.enqueue_dma source(%16 : memref<1x18x128xf32, #tpu.memory_space<any>>) target(%17 : memref<1x18x128xf32, #tpu.memory_space<vmem>>) target_semaphore(%19 : memref<!tpu.dma_semaphore, #tpu.memory_space<semaphore_mem>>)
    %c0_i32_17 = arith.constant 0 : i32
    %c0_i32_18 = arith.constant 0 : i32
    %c0_i32_19 = arith.constant 0 : i32
    %20 = tpu.memref_slice %arg2[%arg0, %0, %c0_i32_18, %c0_i32_19] : memref<2x16x18x128xf32, #tpu.memory_space<any>> -> memref<1x8x18x128xf32, #tpu.memory_space<any>>
    %21 = tpu.memref_squeeze %20 : memref<1x8x18x128xf32, #tpu.memory_space<any>> -> memref<8x18x128xf32, #tpu.memory_space<any>>
    %c1_i32_20 = arith.constant 1 : i32
    %c0_i32_21 = arith.constant 0 : i32
    %c0_i32_22 = arith.constant 0 : i32
    %22 = tpu.memref_slice %arg8[%c1_i32_20, %c0_i32_21, %c0_i32_22] : memref<10x18x128xf32, #tpu.memory_space<vmem>> -> memref<8x18x128xf32, #tpu.memory_space<vmem>>
    %23 = tpu.memref_slice %arg9[%c0_i32_17] : memref<3x!tpu.dma_semaphore, #tpu.memory_space<semaphore_mem>> -> memref<1x!tpu.dma_semaphore, #tpu.memory_space<semaphore_mem>>
    %24 = tpu.memref_squeeze %23 : memref<1x!tpu.dma_semaphore, #tpu.memory_space<semaphore_mem>> -> memref<!tpu.dma_semaphore, #tpu.memory_space<semaphore_mem>>
    tpu.wait_dma2 semaphore(%24 : memref<!tpu.dma_semaphore, #tpu.memory_space<semaphore_mem>>) src(%21 : memref<8x18x128xf32, #tpu.memory_space<any>>) dst(%22 : memref<8x18x128xf32, #tpu.memory_space<vmem>>)
    %c1_i32_23 = arith.constant 1 : i32
    %c0_i32_24 = arith.constant 0 : i32
    %c0_i32_25 = arith.constant 0 : i32
    %25 = tpu.memref_slice %arg2[%arg0, %2, %c0_i32_24, %c0_i32_25] : memref<2x16x18x128xf32, #tpu.memory_space<any>> -> memref<1x1x18x128xf32, #tpu.memory_space<any>>
    %26 = tpu.memref_squeeze %25 : memref<1x1x18x128xf32, #tpu.memory_space<any>> -> memref<1x18x128xf32, #tpu.memory_space<any>>
    %c0_i32_26 = arith.constant 0 : i32
    %c0_i32_27 = arith.constant 0 : i32
    %c0_i32_28 = arith.constant 0 : i32
    %27 = tpu.memref_slice %arg8[%c0_i32_26, %c0_i32_27, %c0_i32_28] : memref<10x18x128xf32, #tpu.memory_space<vmem>> -> memref<1x18x128xf32, #tpu.memory_space<vmem>>
    %28 = tpu.memref_slice %arg9[%c1_i32_23] : memref<3x!tpu.dma_semaphore, #tpu.memory_space<semaphore_mem>> -> memref<1x!tpu.dma_semaphore, #tpu.memory_space<semaphore_mem>>
    %29 = tpu.memref_squeeze %28 : memref<1x!tpu.dma_semaphore, #tpu.memory_space<semaphore_mem>> -> memref<!tpu.dma_semaphore, #tpu.memory_space<semaphore_mem>>
    tpu.wait_dma2 semaphore(%29 : memref<!tpu.dma_semaphore, #tpu.memory_space<semaphore_mem>>) src(%26 : memref<1x18x128xf32, #tpu.memory_space<any>>) dst(%27 : memref<1x18x128xf32, #tpu.memory_space<vmem>>)
    %c2_i32_29 = arith.constant 2 : i32
    %c0_i32_30 = arith.constant 0 : i32
    %c0_i32_31 = arith.constant 0 : i32
    %30 = tpu.memref_slice %arg2[%arg0, %4, %c0_i32_30, %c0_i32_31] : memref<2x16x18x128xf32, #tpu.memory_space<any>> -> memref<1x1x18x128xf32, #tpu.memory_space<any>>
    %31 = tpu.memref_squeeze %30 : memref<1x1x18x128xf32, #tpu.memory_space<any>> -> memref<1x18x128xf32, #tpu.memory_space<any>>
    %c9_i32_32 = arith.constant 9 : i32
    %c0_i32_33 = arith.constant 0 : i32
    %c0_i32_34 = arith.constant 0 : i32
    %32 = tpu.memref_slice %arg8[%c9_i32_32, %c0_i32_33, %c0_i32_34] : memref<10x18x128xf32, #tpu.memory_space<vmem>> -> memref<1x18x128xf32, #tpu.memory_space<vmem>>
    %33 = tpu.memref_slice %arg9[%c2_i32_29] : memref<3x!tpu.dma_semaphore, #tpu.memory_space<semaphore_mem>> -> memref<1x!tpu.dma_semaphore, #tpu.memory_space<semaphore_mem>>
    %34 = tpu.memref_squeeze %33 : memref<1x!tpu.dma_semaphore, #tpu.memory_space<semaphore_mem>> -> memref<!tpu.dma_semaphore, #tpu.memory_space<semaphore_mem>>
    tpu.wait_dma2 semaphore(%34 : memref<!tpu.dma_semaphore, #tpu.memory_space<semaphore_mem>>) src(%31 : memref<1x18x128xf32, #tpu.memory_space<any>>) dst(%32 : memref<1x18x128xf32, #tpu.memory_space<vmem>>)
    %c0 = arith.constant 0 : index
    %c0_35 = arith.constant 0 : index
    %c0_36 = arith.constant 0 : index
    %35 = vector.load %arg8[%c0, %c0_35, %c0_36] : memref<10x18x128xf32, #tpu.memory_space<vmem>>, vector<10x18x128xf32>
    %c0_37 = arith.constant 0 : index
    %c0_38 = arith.constant 0 : index
    %c0_39 = arith.constant 0 : index
    %36 = vector.load %arg4[%c0_37, %c0_38, %c0_39] : memref<1x18x128xf32, #tpu.memory_space<vmem>>, vector<1x18x128xf32>
    %37 = vector.broadcast %36 : vector<1x18x128xf32> to vector<10x18x128xf32>
    %38 = arith.mulf %35, %37 : vector<10x18x128xf32>
    %c0_40 = arith.constant 0 : index
    %c0_41 = arith.constant 0 : index
    %c0_42 = arith.constant 0 : index
    %39 = vector.load %arg5[%c0_40, %c0_41, %c0_42] : memref<1x18x128xf32, #tpu.memory_space<vmem>>, vector<1x18x128xf32>
    %40 = vector.broadcast %39 : vector<1x18x128xf32> to vector<10x18x128xf32>
    %41 = arith.addf %38, %40 : vector<10x18x128xf32>
    %cst = arith.constant 0.000000e+00 : f32
    %42 = vector.broadcast %cst : f32 to vector<10x18x128xf32>
    %43 = arith.maximumf %41, %42 : vector<10x18x128xf32>
    %44 = tpu.iota {dimensions = array<i32: 0>} : vector<10x1x1xi32>
    %c1_i32_43 = arith.constant 1 : i32
    %45 = arith.subi %0, %c1_i32_43 : i32
    %46 = vector.broadcast %45 : i32 to vector<10x1x1xi32>
    %47 = arith.addi %44, %46 : vector<10x1x1xi32>
    %c0_i32_44 = arith.constant 0 : i32
    %48 = vector.broadcast %c0_i32_44 : i32 to vector<10x1x1xi32>
    %49 = arith.cmpi sge, %47, %48 : vector<10x1x1xi32>
    %c15_i32_45 = arith.constant 15 : i32
    %50 = vector.broadcast %c15_i32_45 : i32 to vector<10x1x1xi32>
    %51 = arith.cmpi sle, %47, %50 : vector<10x1x1xi32>
    %52 = arith.andi %49, %51 : vector<10x1x1xi1>
    %cst_46 = arith.constant 0.000000e+00 : f32
    %53 = vector.shape_cast %52 : vector<10x1x1xi1> to vector<10x1x1xi1>
    %54 = vector.broadcast %53 : vector<10x1x1xi1> to vector<10x18x128xi1>
    %55 = vector.broadcast %cst_46 : f32 to vector<10x18x128xf32>
    %56 = arith.select %54, %43, %55 : vector<10x18x128xi1>, vector<10x18x128xf32>
    %57 = arith.truncf %56 : vector<10x18x128xf32> to vector<10x18x128xbf16>
    %58 = vector.extract_strided_slice %57 {offsets = [0, 0, 0], sizes = [8, 16, 128], strides = [1, 1, 1]} : vector<10x18x128xbf16> to vector<8x16x128xbf16>
    %59 = vector.shape_cast %58 : vector<8x16x128xbf16> to vector<128x128xbf16>
    %60 = vector.extract_strided_slice %57 {offsets = [0, 1, 0], sizes = [8, 16, 128], strides = [1, 1, 1]} : vector<10x18x128xbf16> to vector<8x16x128xbf16>
    %61 = vector.shape_cast %60 : vector<8x16x128xbf16> to vector<128x128xbf16>
    %62 = vector.extract_strided_slice %57 {offsets = [0, 2, 0], sizes = [8, 16, 128], strides = [1, 1, 1]} : vector<10x18x128xbf16> to vector<8x16x128xbf16>
    %63 = vector.shape_cast %62 : vector<8x16x128xbf16> to vector<128x128xbf16>
    %64 = vector.extract_strided_slice %57 {offsets = [1, 0, 0], sizes = [8, 16, 128], strides = [1, 1, 1]} : vector<10x18x128xbf16> to vector<8x16x128xbf16>
    %65 = vector.shape_cast %64 : vector<8x16x128xbf16> to vector<128x128xbf16>
    %66 = vector.extract_strided_slice %57 {offsets = [1, 1, 0], sizes = [8, 16, 128], strides = [1, 1, 1]} : vector<10x18x128xbf16> to vector<8x16x128xbf16>
    %67 = vector.shape_cast %66 : vector<8x16x128xbf16> to vector<128x128xbf16>
    %68 = vector.extract_strided_slice %57 {offsets = [1, 2, 0], sizes = [8, 16, 128], strides = [1, 1, 1]} : vector<10x18x128xbf16> to vector<8x16x128xbf16>
    %69 = vector.shape_cast %68 : vector<8x16x128xbf16> to vector<128x128xbf16>
    %70 = vector.extract_strided_slice %57 {offsets = [2, 0, 0], sizes = [8, 16, 128], strides = [1, 1, 1]} : vector<10x18x128xbf16> to vector<8x16x128xbf16>
    %71 = vector.shape_cast %70 : vector<8x16x128xbf16> to vector<128x128xbf16>
    %72 = vector.extract_strided_slice %57 {offsets = [2, 1, 0], sizes = [8, 16, 128], strides = [1, 1, 1]} : vector<10x18x128xbf16> to vector<8x16x128xbf16>
    %73 = vector.shape_cast %72 : vector<8x16x128xbf16> to vector<128x128xbf16>
    %74 = vector.extract_strided_slice %57 {offsets = [2, 2, 0], sizes = [8, 16, 128], strides = [1, 1, 1]} : vector<10x18x128xbf16> to vector<8x16x128xbf16>
    %75 = vector.shape_cast %74 : vector<8x16x128xbf16> to vector<128x128xbf16>
    %76 = tpu.concatenate %59, %61, %63, %65, %67, %69, %71, %73, %75 in 1 : vector<128x128xbf16>, vector<128x128xbf16>, vector<128x128xbf16>, vector<128x128xbf16>, vector<128x128xbf16>, vector<128x128xbf16>, vector<128x128xbf16>, vector<128x128xbf16>, vector<128x128xbf16> -> vector<128x1152xbf16>
    %c0_47 = arith.constant 0 : index
    %c0_48 = arith.constant 0 : index
    %77 = vector.load %arg3[%c0_47, %c0_48] : memref<1152x128xbf16, #tpu.memory_space<vmem>>, vector<1152x128xbf16>
    %cst_49 = arith.constant dense<0.000000e+00> : vector<128x128xf32>
    %78 = tpu.matmul %76, %77, %cst_49 {dimension_numbers = #tpu.dot_dimension_numbers<[1], [0], [0], [1], [0, 0, 1, 1], [], []>} : vector<128x1152xbf16>, vector<1152x128xbf16>, vector<128x128xf32> -> vector<128x128xf32>
    %cst_50 = arith.constant dense<0.000000e+00> : vector<128xf32>
    %79 = vector.multi_reduction <add>, %78, %cst_50 [0] : vector<128x128xf32> to vector<128xf32>
    %80 = vector.shape_cast %79 : vector<128xf32> to vector<1x128xf32>
    %81 = arith.mulf %78, %78 : vector<128x128xf32>
    %cst_51 = arith.constant dense<0.000000e+00> : vector<128xf32>
    %82 = vector.multi_reduction <add>, %81, %cst_51 [0] : vector<128x128xf32> to vector<128xf32>
    %83 = vector.shape_cast %82 : vector<128xf32> to vector<1x128xf32>
    %84 = tpu.concatenate %80, %83 in 0 : vector<1x128xf32>, vector<1x128xf32> -> vector<2x128xf32>
    %c0_52 = arith.constant 0 : index
    %c0_53 = arith.constant 0 : index
    %c0_54 = arith.constant 0 : index
    %85 = vector.load %arg7[%c0_52, %c0_53, %c0_54] : memref<1x2x128xf32, #tpu.memory_space<vmem>>, vector<1x2x128xf32>
    %86 = vector.shape_cast %85 : vector<1x2x128xf32> to vector<2x128xf32>
    %87 = vector.shape_cast %84 : vector<2x128xf32> to vector<1x2x128xf32>
    tpu.vector_store %arg7[%c0_52, %c0_53, %c0_54], %87 {strides = array<i32>} : memref<1x2x128xf32, #tpu.memory_space<vmem>>, vector<1x2x128xf32>,
    %88 = vector.shape_cast %78 : vector<128x128xf32> to vector<8x16x128xf32>
    %cst_55 = arith.constant 0.000000e+00 : f32
    %89 = vector.broadcast %cst_55 : f32 to vector<8x1x128xf32>
    %90 = tpu.concatenate %89, %88, %89 in 1 : vector<8x1x128xf32>, vector<8x16x128xf32>, vector<8x1x128xf32> -> vector<8x18x128xf32>
    %c0_56 = arith.constant 0 : index
    %c0_57 = arith.constant 0 : index
    %c0_58 = arith.constant 0 : index
    %c0_59 = arith.constant 0 : index
    %91 = vector.load %arg6[%c0_56, %c0_57, %c0_58, %c0_59] : memref<1x8x18x128xf32, #tpu.memory_space<vmem>>, vector<1x8x18x128xf32>
    %92 = vector.shape_cast %91 : vector<1x8x18x128xf32> to vector<8x18x128xf32>
    %93 = vector.shape_cast %90 : vector<8x18x128xf32> to vector<1x8x18x128xf32>
    tpu.vector_store %arg6[%c0_56, %c0_57, %c0_58, %c0_59], %93 {strides = array<i32>} : memref<1x8x18x128xf32, #tpu.memory_space<vmem>>, vector<1x8x18x128xf32>,
    return
  }
  func.func @transform_1(%arg0: i32, %arg1: i32) -> (i32, i32) {
    %c0_i32 = arith.constant 0 : i32
    %c0_i32_0 = arith.constant 0 : i32
    %c0_i32_1 = arith.constant 0 : i32
    return %c0_i32, %c0_i32_0 : i32, i32
  }
  func.func @transform_2(%arg0: i32, %arg1: i32) -> (i32, i32, i32) {
    %c0_i32 = arith.constant 0 : i32
    %c0_i32_0 = arith.constant 0 : i32
    %c0_i32_1 = arith.constant 0 : i32
    %c0_i32_2 = arith.constant 0 : i32
    return %c0_i32, %c0_i32_0, %c0_i32_1 : i32, i32, i32
  }
  func.func @transform_3(%arg0: i32, %arg1: i32) -> (i32, i32, i32) {
    %c0_i32 = arith.constant 0 : i32
    %c0_i32_0 = arith.constant 0 : i32
    %c0_i32_1 = arith.constant 0 : i32
    %c0_i32_2 = arith.constant 0 : i32
    return %c0_i32, %c0_i32_0, %c0_i32_1 : i32, i32, i32
  }
  func.func @transform_4(%arg0: i32, %arg1: i32) -> (i32, i32, i32, i32) {
    %c0_i32 = arith.constant 0 : i32
    %c0_i32_0 = arith.constant 0 : i32
    %c0_i32_1 = arith.constant 0 : i32
    return %arg0, %arg1, %c0_i32, %c0_i32_0 : i32, i32, i32, i32
  }
  func.func @transform_5(%arg0: i32, %arg1: i32) -> (i32, i32, i32) {
    %c2_i32 = arith.constant 2 : i32
    %0 = arith.muli %arg0, %c2_i32 : i32
    %1 = arith.addi %0, %arg1 : i32
    %c0_i32 = arith.constant 0 : i32
    %c0_i32_0 = arith.constant 0 : i32
    %c0_i32_1 = arith.constant 0 : i32
    return %1, %c0_i32, %c0_i32_0 : i32, i32, i32
  }
}

</mosaic_0001>

<llo_original>
// kernel: double_conv_forward.5
$region0: #{double_conv_forward.5}
  #allocation0 [shape = 'u32[]', space=smem, size = 0x4, offset = 0x4, fixed_abs, tag = 'smem constant byte address 0x4 - core index']
  #allocation1 [shape = 'u32[72,128]{1,0:T(1,128)}', space=vmem, size = 0x9000, scoped, tag = 'internal scratch']
  %s0 = inlined_call_operand.vmem [shape: f32[2,16,18,128], index: 0, kind: input, shape index: {}]
  %s1 = inlined_call_operand.vmem [shape: f32[1,18,128], index: 1, kind: input, shape index: {}]
  %s2 = inlined_call_operand.vmem [shape: f32[1,18,128], index: 2, kind: input, shape index: {}]
  %s3 = inlined_call_operand.vmem [shape: f32[2,16,18,128], index: 3, kind: output, shape index: {}]
  %s4 = sld [smem:[#allocation0]]
  $region45: #{double_conv_forward.5} parent=0
    _
  %s6 = ssub.s32 1, %s4
  %s7 = scalar_select 0, %s6, %s4
  loop: start=0, step=1, limit=6
  $region2: #{double_conv_forward.5} parent=0 // loop_pre_header
    _
  $region3: #{double_conv_forward.5} parent=0 // loop_header
    %s9 = sphi 0, %s13
    %p10 = scmp.ge.s32.totalorder %s9, 6
    %s16 = sphi 0, %s28
    %s17 = sphi 0, %s24
    %s18 = sphi 0, %s16
    %s19 = sphi 0, %s17
    %s20 = sphi 0, %s18
    %s21 = sphi 0, %s19
    %s33 = sphi 0, %s35
    %s36 = sphi 0, %s33
    %s37 = sphi 0, %s36
    %s53 = sphi 0, %s37
    %s57 = sphi 0, %s57
    %s59 = sphi 0, %s57
    %s60 = sphi 0, %s59
    %s74 = sphi 0, %s60
    %s78 = sphi 0, %s78
    %s80 = sphi 0, %s78
    %s81 = sphi 0, %s80
    %s95 = sphi 0, %s81
    %s103 = sphi 0, %s105
    %s106 = sphi 0, %s103
    %s107 = sphi 0, %s106
    %s123 = sphi 0, %s107
  $region4: #{double_conv_forward.5} parent=0 // loop_header_branch
    %12 = sbr.rel (%p10) target = $region8
  $region5: #{double_conv_forward.5} parent=0 // loop_body
    %s14 = ssub.s32 %s9, 1
    %s15 = ssub.s32 %s9, 2
    %s22 = sadd.s32 1, %s17
    %p23 = scmp.ge.s32.totalorder %s22, 2
    %s24 = scalar_select %p23, 0, %s22
    %s25 = sadd.s32 1, %s16
    %s26 = scalar_select %p23, %s25, %s16
    %p27 = scmp.ge.s32.totalorder %s26, 2
    %s28 = scalar_select %p27, 0, %s26
    %s29 = ssub.s32 %s16, %s28
    %s30 = ssub.s32 %s17, %s24
    %s31 = sor.u32 %s29, %s30
    %p32 = scmp.eq.s32.totalorder %s31, 0
    %s34 = sadd.s32 %s33, 1
    %s35 = scalar_select %p32, %s33, %s34
    %p38 = pneg %p32
    %p39 = scmp.eq.s32.totalorder %s9, 3
    %p40 = por %p38, %p39
    %p41 = scmp.ne.s32.totalorder %s33, %s36
    %p42 = scmp.eq.s32.totalorder %s9, 0
    %p43 = por %p41, %p42
    %p44 = scmp.ne.s32.totalorder %s33, %s36
    %p45 = scmp.eq.s32.totalorder %s14, 3
    %p46 = por %p44, %p45
    %p47 = scmp.ne.s32.totalorder %s36, %s37
    %p48 = scmp.eq.s32.totalorder %s14, 0
    %p49 = por %p47, %p48
    %p50 = scmp.ne.s32.totalorder %s36, %s37
    %p51 = scmp.eq.s32.totalorder %s15, 3
    %p52 = por %p50, %p51
    %p54 = scmp.ne.s32.totalorder %s37, %s53
    %p55 = scmp.eq.s32.totalorder %s15, 0
    %p56 = por %p54, %p55
    %s58 = sadd.s32 %s57, 1
    %p61 = scmp.eq.s32.totalorder %s9, 3
    %p62 = scmp.ne.s32.totalorder %s57, %s59
    %p63 = scmp.eq.s32.totalorder %s9, 0
    %p64 = por %p62, %p63
    %p65 = scmp.ne.s32.totalorder %s57, %s59
    %p66 = scmp.eq.s32.totalorder %s14, 3
    %p67 = por %p65, %p66
    %p68 = scmp.ne.s32.totalorder %s59, %s60
    %p69 = scmp.eq.s32.totalorder %s14, 0
    %p70 = por %p68, %p69
    %p71 = scmp.ne.s32.totalorder %s59, %s60
    %p72 = scmp.eq.s32.totalorder %s15, 3
    %p73 = por %p71, %p72
    %p75 = scmp.ne.s32.totalorder %s60, %s74
    %p76 = scmp.eq.s32.totalorder %s15, 0
    %p77 = por %p75, %p76
    %s79 = sadd.s32 %s78, 1
    %p82 = scmp.eq.s32.totalorder %s9, 3
    %p83 = scmp.ne.s32.totalorder %s78, %s80
    %p84 = scmp.eq.s32.totalorder %s9, 0
    %p85 = por %p83, %p84
    %p86 = scmp.ne.s32.totalorder %s78, %s80
    %p87 = scmp.eq.s32.totalorder %s14, 3
    %p88 = por %p86, %p87
    %p89 = scmp.ne.s32.totalorder %s80, %s81
    %p90 = scmp.eq.s32.totalorder %s14, 0
    %p91 = por %p89, %p90
    %p92 = scmp.ne.s32.totalorder %s80, %s81
    %p93 = scmp.eq.s32.totalorder %s15, 3
    %p94 = por %p92, %p93
    %p96 = scmp.ne.s32.totalorder %s81, %s95
    %p97 = scmp.eq.s32.totalorder %s15, 0
    %p98 = por %p96, %p97
    %s99 = ssub.s32 %s16, %s28
    %s100 = ssub.s32 %s17, %s24
    %s101 = sor.u32 %s99, %s100
    %p102 = scmp.eq.s32.totalorder %s101, 0
    %s104 = sadd.s32 %s103, 1
    %s105 = scalar_select %p102, %s103, %s104
    %p108 = pneg %p102
    %p109 = scmp.eq.s32.totalorder %s9, 3
    %p110 = por %p108, %p109
    %p111 = scmp.ne.s32.totalorder %s103, %s106
    %p112 = scmp.eq.s32.totalorder %s9, 0
    %p113 = por %p111, %p112
    %p114 = scmp.ne.s32.totalorder %s103, %s106
    %p115 = scmp.eq.s32.totalorder %s14, 3
    %p116 = por %p114, %p115
    %p117 = scmp.ne.s32.totalorder %s106, %s107
    %p118 = scmp.eq.s32.totalorder %s14, 0
    %p119 = por %p117, %p118
    %p120 = scmp.ne.s32.totalorder %s106, %s107
    %p121 = scmp.eq.s32.totalorder %s15, 3
    %p122 = por %p120, %p121
    %p124 = scmp.ne.s32.totalorder %s107, %s123
    %p125 = scmp.eq.s32.totalorder %s15, 0
    %p126 = por %p124, %p125
    %p127 = scmp.le.s32.totalorder 1, %s9
    %p128 = scmp.lt.s32.totalorder %s9, 5
    %p129 = pnand %p127, %p128
    %p130 = pneg %p129
    // Predicated region
    $region9: #{double_conv_forward.5} parent=5 // pred_check
      _
    $region10: #{double_conv_forward.5} parent=5 // pred_check_branch
      %132 = sbr.rel (%p129) target = $region12
    $region11: #{double_conv_forward.5} parent=5 // pred_region
      %s133 = ssub.s32 %s9, 1
      // Predicated region
      $region13: #{double_conv_forward.5} parent=11 // pred_check
        %p134 = pneg %p70
      $region14: #{double_conv_forward.5} parent=11 // pred_check_branch
        %136 = sbr.rel (%p134) target = $region16
      $region15: #{double_conv_forward.5} parent=11 // pred_region
        _
      $region16: #{double_conv_forward.5} parent=11 // pred_fallthru
        _
      // Predicated region
      $region17: #{double_conv_forward.5} parent=11 // pred_check
        %p137 = pneg %p91
      $region18: #{double_conv_forward.5} parent=11 // pred_check_branch
        %139 = sbr.rel (%p137) target = $region20
      $region19: #{double_conv_forward.5} parent=11 // pred_region
        _
      $region20: #{double_conv_forward.5} parent=11 // pred_fallthru
        _
    $region12: #{double_conv_forward.5} parent=5 // pred_fallthru
      _
    %p140 = scmp.lt.s32.totalorder %s9, 4
    // Predicated region
    $region21: #{double_conv_forward.5} parent=5 // pred_check
      %p141 = pneg %p140
    $region22: #{double_conv_forward.5} parent=5 // pred_check_branch
      %143 = sbr.rel (%p141) target = $region24
    $region23: #{double_conv_forward.5} parent=5 // pred_region
      // Predicated region
      $region25: #{double_conv_forward.5} parent=23 // pred_check
        %p144 = pneg %p43
      $region26: #{double_conv_forward.5} parent=23 // pred_check_branch
        %146 = sbr.rel (%p144) target = $region28
      $region27: #{double_conv_forward.5} parent=23 // pred_region
        %s147 = smul.u32 8, %s17
        %p148 = scmp.lt.s32.totalorder %s16, 1
        %s149 = scalar_select %p148, %s16, 1
        %p150 = scmp.lt.s32.totalorder %s147, 15
        %s151 = scalar_select %p150, %s147, 15
        %s152 = smul.addr %s151, 3
        %s153 = smul.addr %s149, 48
        %s154 = sadd.s32 %s152, %s153
        %s155 = smul.addr %s154, 8
        %s156 = scalar_lea.vmem %s0, %s155
        %s157 = smul.u32 8, %s17
      $region28: #{double_conv_forward.5} parent=23 // pred_fallthru
        _
    $region24: #{double_conv_forward.5} parent=5 // pred_fallthru
      _
    %p158 = scmp.le.s32.totalorder 1, %s9
    %p159 = scmp.lt.s32.totalorder %s9, 5
    %p160 = pnand %p158, %p159
    %p161 = pneg %p160
    // Predicated region
    $region29: #{double_conv_forward.5} parent=5 // pred_check
      _
    $region30: #{double_conv_forward.5} parent=5 // pred_check_branch
      %163 = sbr.rel (%p160) target = $region32
    $region31: #{double_conv_forward.5} parent=5 // pred_region
      %s164 = ssub.s32 %s9, 1
      %s165 = smul.u32 8, %s19
      %p166 = scmp.lt.s32.totalorder %s18, 1
      %s167 = scalar_select %p166, %s18, 1
      %p168 = scmp.lt.s32.totalorder %s165, 15
      %s169 = scalar_select %p168, %s165, 15
      %s170 = smul.addr %s169, 3
      %s171 = smul.addr %s167, 48
      %s172 = sadd.s32 %s170, %s171
      %s173 = smul.addr %s172, 8
      %s174 = scalar_lea.vmem %s0, %s173
      %p175 = pneg %p49
      %p176 = pneg %p46
      %p177 = pneg %p70
      %p178 = pneg %p67
      %p179 = pneg %p91
      %p180 = pneg %p88
      %p181 = pneg %p119
      %p182 = pneg %p116
      %s183 = smul.u32 8, %s19
      %p184 = scmp.lt.s32.totalorder %s18, 1
      %s185 = scalar_select %p184, %s18, 1
      %p186 = scmp.lt.s32.totalorder %s183, 15
      %s187 = scalar_select %p186, %s183, 15
      %s188 = smul.addr %s187, 3
      %s189 = smul.addr %s185, 48
      %s190 = sadd.s32 %s188, %s189
      %s191 = smul.addr %s190, 8
      %s192 = scalar_lea.vmem %s3, %s191
      %s193 = smul.u32 8, %s19
      %p194 = scmp.lt.s32.totalorder %s18, 1
      %s195 = scalar_select %p194, %s18, 1
      %p196 = scmp.lt.s32.totalorder %s193, 15
      %s197 = scalar_select %p196, %s193, 15
      %s198 = smul.addr %s197, 3
      %s199 = smul.addr %s195, 48
      %s200 = sadd.s32 %s198, %s199
      %s201 = smul.addr %s200, 8
      %s202 = scalar_lea.vmem %s0, %s201
      %s203 = smul.u32 8, %s19
      %s204 = smul.u32 8, %s19
      %p205 = scmp.lt.s32.totalorder %s18, 1
      %s206 = scalar_select %p205, %s18, 1
      %p207 = scmp.lt.s32.totalorder %s204, 15
      %s208 = scalar_select %p207, %s204, 15
      %s209 = smul.addr %s208, 3
      %s210 = smul.addr %s206, 48
      %s211 = sadd.s32 %s209, %s210
      %s212 = smul.addr %s211, 8
      %s213 = scalar_lea.vmem %s3, %s212
      %s214 = smul.u32 8, %s19
      %v215 = vld [vmem:[%s202] sm:$0xff]
      %v216 = vld [vmem:[%s202 + $0x8] sm:$0xff]
      %v217 = vld [vmem:[%s202 + $0x10] sm:$0x3]
      %v218 = vld [vmem:[%s202 + $0x18] sm:$0xff]
      %v219 = vld [vmem:[%s202 + $0x20] sm:$0xff]
      %v220 = vld [vmem:[%s202 + $0x28] sm:$0x3]
      %v221 = vld [vmem:[%s202 + $0x30] sm:$0xff]
      %v222 = vld [vmem:[%s202 + $0x38] sm:$0xff]
      %v223 = vld [vmem:[%s202 + $0x40] sm:$0x3]
      %v224 = vld [vmem:[%s202 + $0x48] sm:$0xff]
      %v225 = vld [vmem:[%s202 + $0x50] sm:$0xff]
      %v226 = vld [vmem:[%s202 + $0x58] sm:$0x3]
      %v227 = vld [vmem:[%s202 + $0x60] sm:$0xff]
      %v228 = vld [vmem:[%s202 + $0x68] sm:$0xff]
      %v229 = vld [vmem:[%s202 + $0x70] sm:$0x3]
      %v230 = vld [vmem:[%s202 + $0x78] sm:$0xff]
      %v231 = vld [vmem:[%s202 + $0x80] sm:$0xff]
      %v232 = vld [vmem:[%s202 + $0x88] sm:$0x3]
      %v233 = vld [vmem:[%s202 + $0x90] sm:$0xff]
      %v234 = vld [vmem:[%s202 + $0x98] sm:$0xff]
      %v235 = vld [vmem:[%s202 + $0xa0] sm:$0x3]
      %v236 = vld [vmem:[%s202 + $0xa8] sm:$0xff]
      %v237 = vld [vmem:[%s202 + $0xb0] sm:$0xff]
      %v238 = vld [vmem:[%s202 + $0xb8] sm:$0x3]
      %v239 = vld [vmem:[%s1] sm:$0xff]
      %v240 = vld [vmem:[%s1 + $0x8] sm:$0xff]
      %v241 = vld [vmem:[%s1 + $0x10] sm:$0x3]
      %v242 = vmul.f32 %v215, %v239
      %v243 = vmul.f32 %v216, %v240
      %v244 = vmul.f32 %v217, %v241
      %v245 = vmul.f32 %v218, %v239
      %v246 = vmul.f32 %v219, %v240
      %v247 = vmul.f32 %v220, %v241
      %v248 = vmul.f32 %v221, %v239
      %v249 = vmul.f32 %v222, %v240
      %v250 = vmul.f32 %v223, %v241
      %v251 = vmul.f32 %v224, %v239
      %v252 = vmul.f32 %v225, %v240
      %v253 = vmul.f32 %v226, %v241
      %v254 = vmul.f32 %v227, %v239
      %v255 = vmul.f32 %v228, %v240
      %v256 = vmul.f32 %v229, %v241
      %v257 = vmul.f32 %v230, %v239
      %v258 = vmul.f32 %v231, %v240
      %v259 = vmul.f32 %v232, %v241
      %v260 = vmul.f32 %v233, %v239
      %v261 = vmul.f32 %v234, %v240
      %v262 = vmul.f32 %v235, %v241
      %v263 = vmul.f32 %v236, %v239
      %v264 = vmul.f32 %v237, %v240
      %v265 = vmul.f32 %v238, %v241
      %v266 = vld [vmem:[%s2] sm:$0xff]
      %v267 = vld [vmem:[%s2 + $0x8] sm:$0xff]
      %v268 = vld [vmem:[%s2 + $0x10] sm:$0x3]
      %v269 = vadd.f32 %v242, %v266
      %v270 = vadd.f32 %v243, %v267
      %v271 = vadd.f32 %v244, %v268
      %v272 = vadd.f32 %v245, %v266
      %v273 = vadd.f32 %v246, %v267
      %v274 = vadd.f32 %v247, %v268
      %v275 = vadd.f32 %v248, %v266
      %v276 = vadd.f32 %v249, %v267
      %v277 = vadd.f32 %v250, %v268
      %v278 = vadd.f32 %v251, %v266
      %v279 = vadd.f32 %v252, %v267
      %v280 = vadd.f32 %v253, %v268
      %v281 = vadd.f32 %v254, %v266
      %v282 = vadd.f32 %v255, %v267
      %v283 = vadd.f32 %v256, %v268
      %v284 = vadd.f32 %v257, %v266
      %v285 = vadd.f32 %v258, %v267
      %v286 = vadd.f32 %v259, %v268
      %v287 = vadd.f32 %v260, %v266
      %v288 = vadd.f32 %v261, %v267
      %v289 = vadd.f32 %v262, %v268
      %v290 = vadd.f32 %v263, %v266
      %v291 = vadd.f32 %v264, %v267
      %v292 = vadd.f32 %v265, %v268
      %v293 = vmax.f32 %v269, 0.0
      %v294 = vmax.f32 %v270, 0.0
      %v295 = vmax.f32 %v271, 0.0
      %v296 = vmax.f32 %v272, 0.0
      %v297 = vmax.f32 %v273, 0.0
      %v298 = vmax.f32 %v274, 0.0
      %v299 = vmax.f32 %v275, 0.0
      %v300 = vmax.f32 %v276, 0.0
      %v301 = vmax.f32 %v277, 0.0
      %v302 = vmax.f32 %v278, 0.0
      %v303 = vmax.f32 %v279, 0.0
      %v304 = vmax.f32 %v280, 0.0
      %v305 = vmax.f32 %v281, 0.0
      %v306 = vmax.f32 %v282, 0.0
      %v307 = vmax.f32 %v283, 0.0
      %v308 = vmax.f32 %v284, 0.0
      %v309 = vmax.f32 %v285, 0.0
      %v310 = vmax.f32 %v286, 0.0
      %v311 = vmax.f32 %v287, 0.0
      %v312 = vmax.f32 %v288, 0.0
      %v313 = vmax.f32 %v289, 0.0
      %v314 = vmax.f32 %v290, 0.0
      %v315 = vmax.f32 %v291, 0.0
      %v316 = vmax.f32 %v292, 0.0
      %317 = vst [vmem:[%s213] sm:$0xff] %v293
      %318 = vst [vmem:[%s213 + $0x8] sm:$0xff] %v294
      %319 = vst [vmem:[%s213 + $0x10] sm:$0x3] %v295
      %320 = vst [vmem:[%s213 + $0x18] sm:$0xff] %v296
      %321 = vst [vmem:[%s213 + $0x20] sm:$0xff] %v297
      %322 = vst [vmem:[%s213 + $0x28] sm:$0x3] %v298
      %323 = vst [vmem:[%s213 + $0x30] sm:$0xff] %v299
      %324 = vst [vmem:[%s213 + $0x38] sm:$0xff] %v300
      %325 = vst [vmem:[%s213 + $0x40] sm:$0x3] %v301
      %326 = vst [vmem:[%s213 + $0x48] sm:$0xff] %v302
      %327 = vst [vmem:[%s213 + $0x50] sm:$0xff] %v303
      %328 = vst [vmem:[%s213 + $0x58] sm:$0x3] %v304
      %329 = vst [vmem:[%s213 + $0x60] sm:$0xff] %v305
      %330 = vst [vmem:[%s213 + $0x68] sm:$0xff] %v306
      %331 = vst [vmem:[%s213 + $0x70] sm:$0x3] %v307
      %332 = vst [vmem:[%s213 + $0x78] sm:$0xff] %v308
      %333 = vst [vmem:[%s213 + $0x80] sm:$0xff] %v309
      %334 = vst [vmem:[%s213 + $0x88] sm:$0x3] %v310
      %335 = vst [vmem:[%s213 + $0x90] sm:$0xff] %v311
      %336 = vst [vmem:[%s213 + $0x98] sm:$0xff] %v312
      %337 = vst [vmem:[%s213 + $0xa0] sm:$0x3] %v313
      %338 = vst [vmem:[%s213 + $0xa8] sm:$0xff] %v314
      %339 = vst [vmem:[%s213 + $0xb0] sm:$0xff] %v315
      %340 = vst [vmem:[%s213 + $0xb8] sm:$0x3] %v316
      %s341 = smul.u32 8, %s19
      %p342 = scmp.lt.s32.totalorder %s18, 1
      %s343 = scalar_select %p342, %s18, 1
      %p344 = scmp.lt.s32.totalorder %s341, 15
      %s345 = scalar_select %p344, %s341, 15
      %s346 = smul.addr %s345, 3
      %s347 = smul.addr %s343, 48
      %s348 = sadd.s32 %s346, %s347
      %s349 = smul.addr %s348, 8
      %s350 = scalar_lea.vmem %s3, %s349
      // Predicated region
      $region33: #{double_conv_forward.5} parent=31 // pred_check
        %p351 = pneg %p116
      $region34: #{double_conv_forward.5} parent=31 // pred_check_branch
        %353 = sbr.rel (%p351) target = $region36
      $region35: #{double_conv_forward.5} parent=31 // pred_region
        %s354 = smul.u32 8, %s19
      $region36: #{double_conv_forward.5} parent=31 // pred_fallthru
        _
    $region32: #{double_conv_forward.5} parent=5 // pred_fallthru
      _
    %p355 = scmp.le.s32.totalorder 2, %s9
    // Predicated region
    $region37: #{double_conv_forward.5} parent=5 // pred_check
      %p356 = pneg %p355
    $region38: #{double_conv_forward.5} parent=5 // pred_check_branch
      %358 = sbr.rel (%p356) target = $region40
    $region39: #{double_conv_forward.5} parent=5 // pred_region
      %s359 = ssub.s32 %s9, 2
      // Predicated region
      $region41: #{double_conv_forward.5} parent=39 // pred_check
        %p360 = pneg %p122
      $region42: #{double_conv_forward.5} parent=39 // pred_check_branch
        %362 = sbr.rel (%p360) target = $region44
      $region43: #{double_conv_forward.5} parent=39 // pred_region
        %s363 = smul.u32 8, %s21
        %p364 = scmp.lt.s32.totalorder %s20, 1
        %s365 = scalar_select %p364, %s20, 1
        %p366 = scmp.lt.s32.totalorder %s363, 15
        %s367 = scalar_select %p366, %s363, 15
        %s368 = smul.addr %s367, 3
        %s369 = smul.addr %s365, 48
        %s370 = sadd.s32 %s368, %s369
        %s371 = smul.addr %s370, 8
        %s372 = scalar_lea.vmem %s3, %s371
      $region44: #{double_conv_forward.5} parent=39 // pred_fallthru
        _
    $region40: #{double_conv_forward.5} parent=5 // pred_fallthru
      _
  $region6: #{double_conv_forward.5} parent=0 // loop_footer
    %s13 = sadd.s32 1, %s9
  $region7: #{double_conv_forward.5} parent=0 // loop_footer_branch
    %8 = sbr.rel target = $region3
  $region8: #{double_conv_forward.5} parent=0 // loop_exit
    _

// kernel: double_conv_forward.3
$region0: #{double_conv_forward.3}
  #allocation0 [shape = 'u32[]', space=smem, size = 0x4, offset = 0x4, fixed_abs, tag = 'smem constant byte address 0x4 - core index']
  #allocation1 [shape = 'u32[72,128]{1,0:T(1,128)}', space=vmem, size = 0x9000, scoped, tag = 'internal scratch']
  #allocation2 [shape = 'f32[10,18,128]{2,1,0:T(8,128)}', space=vmem, size = 0x1e000, scoped, tag = 'scratch operand']
  #allocation3 [shape = 's32[3]{0}', space=sflag, size = 0xc, scoped, tag = 'scratch operand']
  #allocation4 [shape = 's32[]', space=sflag, size = 0x4, offset = 0, fixed_abs, tag = 'sflag constant byte address 0x0 - dummy sync flag']
  #allocation5 [shape = 's32[]', space=sflag, size = 0x4, offset = 0, fixed_abs, tag = 'sflag constant byte address 0x0 - dummy sync flag']
  #allocation6 [shape = 's32[]', space=sflag, size = 0x4, offset = 0, fixed_abs, tag = 'sflag constant byte address 0x0 - dummy sync flag']
  %s0 = inlined_call_operand.vmem [shape: f32[2,16,18,128], index: 0, kind: input, shape index: {}]
  %s1 = inlined_call_operand.vmem [shape: bf16[1152,128], index: 1, kind: input, shape index: {}]
  %s2 = inlined_call_operand.vmem [shape: f32[1,18,128], index: 2, kind: input, shape index: {}, may-alias: {2,3}]
  %s3 = inlined_call_operand.vmem [shape: f32[1,18,128], index: 3, kind: input, shape index: {}, may-alias: {2,3}]
  %s4 = inlined_call_operand.vmem [shape: f32[2,16,18,128], index: 4, kind: output, shape index: {0}]
  %s5 = inlined_call_operand.vmem [shape: f32[4,2,128], index: 5, kind: output, shape index: {1}]
  %6 = xla_tuple %s4, %s5
  %s7 = sld [smem:[#allocation0]]
  $region119: #{double_conv_forward.3} parent=0
    _
  %s9 = ssub.s32 1, %s7
  %s10 = scalar_select 0, %s9, %s7
  loop: start=0, step=1, limit=6
  $region2: #{double_conv_forward.3} parent=0 // loop_pre_header
    _
  $region3: #{double_conv_forward.3} parent=0 // loop_header
    %s12 = sphi 0, %s16
    %p13 = scmp.ge.s32.totalorder %s12, 6
    %s19 = sphi 0, %s31
    %s20 = sphi 0, %s27
    %s21 = sphi 0, %s19
    %s22 = sphi 0, %s20
    %s23 = sphi 0, %s21
    %s24 = sphi 0, %s22
    %s32 = sphi 0, %s32
    %s34 = sphi 0, %s32
    %s35 = sphi 0, %s34
    %s49 = sphi 0, %s35
    %s53 = sphi 0, %s53
    %s55 = sphi 0, %s53
    %s56 = sphi 0, %s55
    %s70 = sphi 0, %s56
    %s74 = sphi 0, %s74
    %s76 = sphi 0, %s74
    %s77 = sphi 0, %s76
    %s91 = sphi 0, %s77
    %s99 = sphi 0, %s101
    %s102 = sphi 0, %s99
    %s103 = sphi 0, %s102
    %s119 = sphi 0, %s103
    %s129 = sphi 0, %s131
    %s132 = sphi 0, %s129
    %s133 = sphi 0, %s132
    %s149 = sphi 0, %s133
  $region4: #{double_conv_forward.3} parent=0 // loop_header_branch
    %15 = sbr.rel (%p13) target = $region8
  $region5: #{double_conv_forward.3} parent=0 // loop_body
    %s17 = ssub.s32 %s12, 1
    %s18 = ssub.s32 %s12, 2
    %s25 = sadd.s32 1, %s20
    %p26 = scmp.ge.s32.totalorder %s25, 2
    %s27 = scalar_select %p26, 0, %s25
    %s28 = sadd.s32 1, %s19
    %s29 = scalar_select %p26, %s28, %s19
    %p30 = scmp.ge.s32.totalorder %s29, 2
    %s31 = scalar_select %p30, 0, %s29
    %s33 = sadd.s32 %s32, 1
    %p36 = scmp.eq.s32.totalorder %s12, 3
    %p37 = scmp.ne.s32.totalorder %s32, %s34
    %p38 = scmp.eq.s32.totalorder %s12, 0
    %p39 = por %p37, %p38
    %p40 = scmp.ne.s32.totalorder %s32, %s34
    %p41 = scmp.eq.s32.totalorder %s17, 3
    %p42 = por %p40, %p41
    %p43 = scmp.ne.s32.totalorder %s34, %s35
    %p44 = scmp.eq.s32.totalorder %s17, 0
    %p45 = por %p43, %p44
    %p46 = scmp.ne.s32.totalorder %s34, %s35
    %p47 = scmp.eq.s32.totalorder %s18, 3
    %p48 = por %p46, %p47
    %p50 = scmp.ne.s32.totalorder %s35, %s49
    %p51 = scmp.eq.s32.totalorder %s18, 0
    %p52 = por %p50, %p51
    %s54 = sadd.s32 %s53, 1
    %p57 = scmp.eq.s32.totalorder %s12, 3
    %p58 = scmp.ne.s32.totalorder %s53, %s55
    %p59 = scmp.eq.s32.totalorder %s12, 0
    %p60 = por %p58, %p59
    %p61 = scmp.ne.s32.totalorder %s53, %s55
    %p62 = scmp.eq.s32.totalorder %s17, 3
    %p63 = por %p61, %p62
    %p64 = scmp.ne.s32.totalorder %s55, %s56
    %p65 = scmp.eq.s32.totalorder %s17, 0
    %p66 = por %p64, %p65
    %p67 = scmp.ne.s32.totalorder %s55, %s56
    %p68 = scmp.eq.s32.totalorder %s18, 3
    %p69 = por %p67, %p68
    %p71 = scmp.ne.s32.totalorder %s56, %s70
    %p72 = scmp.eq.s32.totalorder %s18, 0
    %p73 = por %p71, %p72
    %s75 = sadd.s32 %s74, 1
    %p78 = scmp.eq.s32.totalorder %s12, 3
    %p79 = scmp.ne.s32.totalorder %s74, %s76
    %p80 = scmp.eq.s32.totalorder %s12, 0
    %p81 = por %p79, %p80
    %p82 = scmp.ne.s32.totalorder %s74, %s76
    %p83 = scmp.eq.s32.totalorder %s17, 3
    %p84 = por %p82, %p83
    %p85 = scmp.ne.s32.totalorder %s76, %s77
    %p86 = scmp.eq.s32.totalorder %s17, 0
    %p87 = por %p85, %p86
    %p88 = scmp.ne.s32.totalorder %s76, %s77
    %p89 = scmp.eq.s32.totalorder %s18, 3
    %p90 = por %p88, %p89
    %p92 = scmp.ne.s32.totalorder %s77, %s91
    %p93 = scmp.eq.s32.totalorder %s18, 0
    %p94 = por %p92, %p93
    %s95 = ssub.s32 %s19, %s31
    %s96 = ssub.s32 %s20, %s27
    %s97 = sor.u32 %s95, %s96
    %p98 = scmp.eq.s32.totalorder %s97, 0
    %s100 = sadd.s32 %s99, 1
    %s101 = scalar_select %p98, %s99, %s100
    %p104 = pneg %p98
    %p105 = scmp.eq.s32.totalorder %s12, 3
    %p106 = por %p104, %p105
    %p107 = scmp.ne.s32.totalorder %s99, %s102
    %p108 = scmp.eq.s32.totalorder %s12, 0
    %p109 = por %p107, %p108
    %p110 = scmp.ne.s32.totalorder %s99, %s102
    %p111 = scmp.eq.s32.totalorder %s17, 3
    %p112 = por %p110, %p111
    %p113 = scmp.ne.s32.totalorder %s102, %s103
    %p114 = scmp.eq.s32.totalorder %s17, 0
    %p115 = por %p113, %p114
    %p116 = scmp.ne.s32.totalorder %s102, %s103
    %p117 = scmp.eq.s32.totalorder %s18, 3
    %p118 = por %p116, %p117
    %p120 = scmp.ne.s32.totalorder %s103, %s119
    %p121 = scmp.eq.s32.totalorder %s18, 0
    %p122 = por %p120, %p121
    %s123 = smul.u32 %s19, 2
    %s124 = sadd.s32 %s123, %s20
    %s125 = smul.u32 %s31, 2
    %s126 = sadd.s32 %s125, %s27
    %s127 = ssub.s32 %s124, %s126
    %p128 = scmp.eq.s32.totalorder %s127, 0
    %s130 = sadd.s32 %s129, 1
    %s131 = scalar_select %p128, %s129, %s130
    %p134 = pneg %p128
    %p135 = scmp.eq.s32.totalorder %s12, 3
    %p136 = por %p134, %p135
    %p137 = scmp.ne.s32.totalorder %s129, %s132
    %p138 = scmp.eq.s32.totalorder %s12, 0
    %p139 = por %p137, %p138
    %p140 = scmp.ne.s32.totalorder %s129, %s132
    %p141 = scmp.eq.s32.totalorder %s17, 3
    %p142 = por %p140, %p141
    %p143 = scmp.ne.s32.totalorder %s132, %s133
    %p144 = scmp.eq.s32.totalorder %s17, 0
    %p145 = por %p143, %p144
    %p146 = scmp.ne.s32.totalorder %s132, %s133
    %p147 = scmp.eq.s32.totalorder %s18, 3
    %p148 = por %p146, %p147
    %p150 = scmp.ne.s32.totalorder %s133, %s149
    %p151 = scmp.eq.s32.totalorder %s18, 0
    %p152 = por %p150, %p151
    %p153 = scmp.le.s32.totalorder 1, %s12
    %p154 = scmp.lt.s32.totalorder %s12, 5
    %p155 = pnand %p153, %p154
    %p156 = pneg %p155
    // Predicated region
    $region9: #{double_conv_forward.3} parent=5 // pred_check
      _
    $region10: #{double_conv_forward.3} parent=5 // pred_check_branch
      %158 = sbr.rel (%p155) target = $region12
    $region11: #{double_conv_forward.3} parent=5 // pred_region
      %s159 = ssub.s32 %s12, 1
      // Predicated region
      $region13: #{double_conv_forward.3} parent=11 // pred_check
        %p160 = pneg %p45
      $region14: #{double_conv_forward.3} parent=11 // pred_check_branch
        %162 = sbr.rel (%p160) target = $region16
      $region15: #{double_conv_forward.3} parent=11 // pred_region
        _
      $region16: #{double_conv_forward.3} parent=11 // pred_fallthru
        _
      // Predicated region
      $region17: #{double_conv_forward.3} parent=11 // pred_check
        %p163 = pneg %p66
      $region18: #{double_conv_forward.3} parent=11 // pred_check_branch
        %165 = sbr.rel (%p163) target = $region20
      $region19: #{double_conv_forward.3} parent=11 // pred_region
        _
      $region20: #{double_conv_forward.3} parent=11 // pred_fallthru
        _
      // Predicated region
      $region21: #{double_conv_forward.3} parent=11 // pred_check
        %p166 = pneg %p87
      $region22: #{double_conv_forward.3} parent=11 // pred_check_branch
        %168 = sbr.rel (%p166) target = $region24
      $region23: #{double_conv_forward.3} parent=11 // pred_region
        _
      $region24: #{double_conv_forward.3} parent=11 // pred_fallthru
        _
    $region12: #{double_conv_forward.3} parent=5 // pred_fallthru
      _
    %p169 = scmp.lt.s32.totalorder %s12, 4
    // Predicated region
    $region25: #{double_conv_forward.3} parent=5 // pred_check
      %p170 = pneg %p169
    $region26: #{double_conv_forward.3} parent=5 // pred_check_branch
      %172 = sbr.rel (%p170) target = $region28
    $region27: #{double_conv_forward.3} parent=5 // pred_region
      _
    $region28: #{double_conv_forward.3} parent=5 // pred_fallthru
      _
    %p173 = scmp.le.s32.totalorder 1, %s12
    %p174 = scmp.lt.s32.totalorder %s12, 5
    %p175 = pnand %p173, %p174
    %p176 = pneg %p175
    // Predicated region
    $region29: #{double_conv_forward.3} parent=5 // pred_check
      _
    $region30: #{double_conv_forward.3} parent=5 // pred_check_branch
      %178 = sbr.rel (%p175) target = $region32
    $region31: #{double_conv_forward.3} parent=5 // pred_region
      %s179 = ssub.s32 %s12, 1
      %p180 = pneg %p45
      %p181 = pneg %p42
      %p182 = pneg %p66
      %p183 = pneg %p63
      %p184 = pneg %p87
      %p185 = pneg %p84
      %p186 = pneg %p115
      %p187 = pneg %p112
      %s188 = smul.u32 8, %s22
      %p189 = scmp.lt.s32.totalorder %s21, 1
      %s190 = scalar_select %p189, %s21, 1
      %p191 = scmp.lt.s32.totalorder %s188, 15
      %s192 = scalar_select %p191, %s188, 15
      %s193 = smul.addr %s192, 3
      %s194 = smul.addr %s190, 48
      %s195 = sadd.s32 %s193, %s194
      %s196 = smul.addr %s195, 8
      %s197 = scalar_lea.vmem %s4, %s196
      %p198 = pneg %p145
      %p199 = pneg %p142
      %s200 = smul.u32 %s21, 2
      %s201 = sadd.s32 %s200, %s22
      %p202 = scmp.lt.s32.totalorder %s201, 3
      %s203 = scalar_select %p202, %s201, 3
      %s204 = smul.addr %s203, 2
      %s205 = scalar_lea.vmem %s5, %s204
      %s206 = smul.u32 8, %s22
      %p207 = scmp.lt.s32.totalorder %s21, 1
      %s208 = scalar_select %p207, %s21, 1
      %p209 = scmp.lt.s32.totalorder %s206, 15
      %s210 = scalar_select %p209, %s206, 15
      %s211 = smul.addr %s210, 3
      %s212 = smul.addr %s208, 48
      %s213 = sadd.s32 %s211, %s212
      %s214 = smul.addr %s213, 8
      %s215 = scalar_lea.vmem %s4, %s214
      %s216 = smul.u32 8, %s22
      %s217 = smul.u32 %s21, 2
      %s218 = sadd.s32 %s217, %s22
      %p219 = scmp.lt.s32.totalorder %s218, 3
      %s220 = scalar_select %p219, %s218, 3
      %s221 = smul.addr %s220, 2
      %s222 = scalar_lea.vmem %s5, %s221
      %s223 = smul.u32 %s21, 2
      %s224 = sadd.s32 %s223, %s22
      %s225 = smul.u32 %s22, 8
      %s226 = ssub.s32 %s225, 1
      %p227 = scmp.gt.s32.totalorder %s226, 0
      %s228 = scalar_select %p227, %s226, 0
      %s229 = sadd.s32 %s225, 8
      %p230 = scmp.lt.s32.totalorder %s229, 15
      %s231 = scalar_select %p230, %s229, 15
      %s232 = smul.u32 %s225, 24
      %s233 = smul.u32 %s21, 384
      %s234 = sadd.s32 %s232, %s233
      %s235 = scalar_lea.vmem %s0, %s234
      %s236 = scalar_lea.vmem [#allocation2], 24
      // Predicated region
      $region33: #{double_conv_forward.3} parent=31 // pred_check
        _
      $region34: #{double_conv_forward.3} parent=31 // pred_check_branch
        %238 = sbr.rel (0) target = $region36
      $region35: #{double_conv_forward.3} parent=31 // pred_region
        %s239 = scalar_lea.vmem %s235, 16
        %s240 = scalar_lea.vmem %s236, 16 [#allocation2]
        loop: start=0, step=1, limit=1
        $region37: #{double_conv_forward.3} parent=35 // loop_pre_header
          _
        $region38: #{double_conv_forward.3} parent=35 // loop_header
          %s242 = sphi 0, %s246
          %p243 = scmp.ge.s32.totalorder %s242, 1
          %s247 = sphi %s235, %s235
          %s248 = sphi %s236, %s236
        $region39: #{double_conv_forward.3} parent=35 // loop_header_branch
          %245 = sbr.rel (%p243) target = $region43
        $region40: #{double_conv_forward.3} parent=35 // loop_body
          %v249 = vld [vmem:[%s247] sm:$0xff]
          %250 = vst [vmem:[%s248] sm:$0xff] %v249
          %v251 = vld [vmem:[%s247 + $0x8] sm:$0xff]
          %252 = vst [vmem:[%s248 + $0x8] sm:$0xff] %v251
          %v253 = vld [vmem:[%s247 + $0x18] sm:$0xff]
          %254 = vst [vmem:[%s248 + $0x18] sm:$0xff] %v253
          %v255 = vld [vmem:[%s247 + $0x20] sm:$0xff]
          %256 = vst [vmem:[%s248 + $0x20] sm:$0xff] %v255
          %v257 = vld [vmem:[%s247 + $0x30] sm:$0xff]
          %258 = vst [vmem:[%s248 + $0x30] sm:$0xff] %v257
          %v259 = vld [vmem:[%s247 + $0x38] sm:$0xff]
          %260 = vst [vmem:[%s248 + $0x38] sm:$0xff] %v259
          %v261 = vld [vmem:[%s247 + $0x48] sm:$0xff]
          %262 = vst [vmem:[%s248 + $0x48] sm:$0xff] %v261
          %v263 = vld [vmem:[%s247 + $0x50] sm:$0xff]
          %264 = vst [vmem:[%s248 + $0x50] sm:$0xff] %v263
          %v265 = vld [vmem:[%s247 + $0x60] sm:$0xff]
          %266 = vst [vmem:[%s248 + $0x60] sm:$0xff] %v265
          %v267 = vld [vmem:[%s247 + $0x68] sm:$0xff]
          %268 = vst [vmem:[%s248 + $0x68] sm:$0xff] %v267
          %v269 = vld [vmem:[%s247 + $0x78] sm:$0xff]
          %270 = vst [vmem:[%s248 + $0x78] sm:$0xff] %v269
          %v271 = vld [vmem:[%s247 + $0x80] sm:$0xff]
          %272 = vst [vmem:[%s248 + $0x80] sm:$0xff] %v271
          %v273 = vld [vmem:[%s247 + $0x90] sm:$0xff]
          %274 = vst [vmem:[%s248 + $0x90] sm:$0xff] %v273
          %v275 = vld [vmem:[%s247 + $0x98] sm:$0xff]
          %276 = vst [vmem:[%s248 + $0x98] sm:$0xff] %v275
          %v277 = vld [vmem:[%s247 + $0xa8] sm:$0xff]
          %278 = vst [vmem:[%s248 + $0xa8] sm:$0xff] %v277
          %v279 = vld [vmem:[%s247 + $0xb0] sm:$0xff]
          %280 = vst [vmem:[%s248 + $0xb0] sm:$0xff] %v279
        $region41: #{double_conv_forward.3} parent=35 // loop_footer
          %s246 = sadd.s32 1, %s242
        $region42: #{double_conv_forward.3} parent=35 // loop_footer_branch
          %241 = sbr.rel target = $region38
        $region43: #{double_conv_forward.3} parent=35 // loop_exit
          _
        %s282 = ssub.s32 4, 1
        loop: start=0, step=1, limit=1
        $region44: #{double_conv_forward.3} parent=35 // loop_pre_header
          _
        $region45: #{double_conv_forward.3} parent=35 // loop_header
          %s284 = sphi 0, %s288
          %p285 = scmp.ge.s32.totalorder %s284, 1
          %s289 = sphi %s239, %s239
          %s290 = sphi %s240, %s240
        $region46: #{double_conv_forward.3} parent=35 // loop_header_branch
          %287 = sbr.rel (%p285) target = $region50
        $region47: #{double_conv_forward.3} parent=35 // loop_body
          %v291 = vld [vmem:[%s289] sm:%s282]
          %292 = vst [vmem:[%s290] sm:%s282] %v291
          %v293 = vld [vmem:[%s289 + $0x18] sm:%s282]
          %294 = vst [vmem:[%s290 + $0x18] sm:%s282] %v293
          %v295 = vld [vmem:[%s289 + $0x30] sm:%s282]
          %296 = vst [vmem:[%s290 + $0x30] sm:%s282] %v295
          %v297 = vld [vmem:[%s289 + $0x48] sm:%s282]
          %298 = vst [vmem:[%s290 + $0x48] sm:%s282] %v297
          %v299 = vld [vmem:[%s289 + $0x60] sm:%s282]
          %300 = vst [vmem:[%s290 + $0x60] sm:%s282] %v299
          %v301 = vld [vmem:[%s289 + $0x78] sm:%s282]
          %302 = vst [vmem:[%s290 + $0x78] sm:%s282] %v301
          %v303 = vld [vmem:[%s289 + $0x90] sm:%s282]
          %304 = vst [vmem:[%s290 + $0x90] sm:%s282] %v303
          %v305 = vld [vmem:[%s289 + $0xa8] sm:%s282]
          %306 = vst [vmem:[%s290 + $0xa8] sm:%s282] %v305
        $region48: #{double_conv_forward.3} parent=35 // loop_footer
          %s288 = sadd.s32 1, %s284
        $region49: #{double_conv_forward.3} parent=35 // loop_footer_branch
          %283 = sbr.rel target = $region45
        $region50: #{double_conv_forward.3} parent=35 // loop_exit
          _
      $region36: #{double_conv_forward.3} parent=31 // pred_fallthru
        _
      // Predicated region
      $region51: #{double_conv_forward.3} parent=31 // pred_check
        _
      $region52: #{double_conv_forward.3} parent=31 // pred_check_branch
        %309 = sbr.rel (0) target = $region54
      $region53: #{double_conv_forward.3} parent=31 // pred_region
        %310 = vsyncadd [#allocation3], 2304
      $region54: #{double_conv_forward.3} parent=31 // pred_fallthru
        _
      %s311 = smul.u32 %s228, 24
      %s312 = sadd.s32 %s311, %s233
      %s313 = scalar_lea.vmem %s0, %s312
      %s314 = scalar_lea.sflag [#allocation3], 1
      // Predicated region
      $region55: #{double_conv_forward.3} parent=31 // pred_check
        _
      $region56: #{double_conv_forward.3} parent=31 // pred_check_branch
        %316 = sbr.rel (0) target = $region58
      $region57: #{double_conv_forward.3} parent=31 // pred_region
        %s317 = scalar_lea.vmem %s313, 16
        %s318 = scalar_lea.vmem [#allocation2], 16
        loop: start=0, step=1, limit=1
        $region59: #{double_conv_forward.3} parent=57 // loop_pre_header
          _
        $region60: #{double_conv_forward.3} parent=57 // loop_header
          %s320 = sphi 0, %s324
          %p321 = scmp.ge.s32.totalorder %s320, 1
          %s325 = sphi %s313, %s313
          %s326 = sphi [#allocation2], [#allocation2]
        $region61: #{double_conv_forward.3} parent=57 // loop_header_branch
          %323 = sbr.rel (%p321) target = $region65
        $region62: #{double_conv_forward.3} parent=57 // loop_body
          %v327 = vld [vmem:[%s325] sm:$0xff]
          %328 = vst [vmem:[%s326] sm:$0xff] %v327
          %v329 = vld [vmem:[%s325 + $0x8] sm:$0xff]
          %330 = vst [vmem:[%s326 + $0x8] sm:$0xff] %v329
        $region63: #{double_conv_forward.3} parent=57 // loop_footer
          %s324 = sadd.s32 1, %s320
        $region64: #{double_conv_forward.3} parent=57 // loop_footer_branch
          %319 = sbr.rel target = $region60
        $region65: #{double_conv_forward.3} parent=57 // loop_exit
          _
        %s332 = ssub.s32 4, 1
        loop: start=0, step=1, limit=1
        $region66: #{double_conv_forward.3} parent=57 // loop_pre_header
          _
        $region67: #{double_conv_forward.3} parent=57 // loop_header
          %s334 = sphi 0, %s338
          %p335 = scmp.ge.s32.totalorder %s334, 1
          %s339 = sphi %s317, %s317
          %s340 = sphi %s318, %s318
        $region68: #{double_conv_forward.3} parent=57 // loop_header_branch
          %337 = sbr.rel (%p335) target = $region72
        $region69: #{double_conv_forward.3} parent=57 // loop_body
          %v341 = vld [vmem:[%s339] sm:%s332]
          %342 = vst [vmem:[%s340] sm:%s332] %v341
        $region70: #{double_conv_forward.3} parent=57 // loop_footer
          %s338 = sadd.s32 1, %s334
        $region71: #{double_conv_forward.3} parent=57 // loop_footer_branch
          %333 = sbr.rel target = $region67
        $region72: #{double_conv_forward.3} parent=57 // loop_exit
          _
      $region58: #{double_conv_forward.3} parent=31 // pred_fallthru
        _
      // Predicated region
      $region73: #{double_conv_forward.3} parent=31 // pred_check
        _
      $region74: #{double_conv_forward.3} parent=31 // pred_check_branch
        %345 = sbr.rel (0) target = $region76
      $region75: #{double_conv_forward.3} parent=31 // pred_region
        %346 = vsyncadd %s314, 288
      $region76: #{double_conv_forward.3} parent=31 // pred_fallthru
        _
      %s347 = smul.u32 %s231, 24
      %s348 = sadd.s32 %s347, %s233
      %s349 = scalar_lea.vmem %s0, %s348
      %s350 = scalar_lea.vmem [#allocation2], 216
      %s351 = scalar_lea.sflag [#allocation3], 2
      // Predicated region
      $region77: #{double_conv_forward.3} parent=31 // pred_check
        _
      $region78: #{double_conv_forward.3} parent=31 // pred_check_branch
        %353 = sbr.rel (0) target = $region80
      $region79: #{double_conv_forward.3} parent=31 // pred_region
        %s354 = scalar_lea.vmem %s349, 16
        %s355 = scalar_lea.vmem %s350, 16 [#allocation2]
        loop: start=0, step=1, limit=1
        $region81: #{double_conv_forward.3} parent=79 // loop_pre_header
          _
        $region82: #{double_conv_forward.3} parent=79 // loop_header
          %s357 = sphi 0, %s361
          %p358 = scmp.ge.s32.totalorder %s357, 1
          %s362 = sphi %s349, %s349
          %s363 = sphi %s350, %s350
        $region83: #{double_conv_forward.3} parent=79 // loop_header_branch
          %360 = sbr.rel (%p358) target = $region87
        $region84: #{double_conv_forward.3} parent=79 // loop_body
          %v364 = vld [vmem:[%s362] sm:$0xff]
          %365 = vst [vmem:[%s363] sm:$0xff] %v364
          %v366 = vld [vmem:[%s362 + $0x8] sm:$0xff]
          %367 = vst [vmem:[%s363 + $0x8] sm:$0xff] %v366
        $region85: #{double_conv_forward.3} parent=79 // loop_footer
          %s361 = sadd.s32 1, %s357
        $region86: #{double_conv_forward.3} parent=79 // loop_footer_branch
          %356 = sbr.rel target = $region82
        $region87: #{double_conv_forward.3} parent=79 // loop_exit
          _
        %s369 = ssub.s32 4, 1
        loop: start=0, step=1, limit=1
        $region88: #{double_conv_forward.3} parent=79 // loop_pre_header
          _
        $region89: #{double_conv_forward.3} parent=79 // loop_header
          %s371 = sphi 0, %s375
          %p372 = scmp.ge.s32.totalorder %s371, 1
          %s376 = sphi %s354, %s354
          %s377 = sphi %s355, %s355
        $region90: #{double_conv_forward.3} parent=79 // loop_header_branch
          %374 = sbr.rel (%p372) target = $region94
        $region91: #{double_conv_forward.3} parent=79 // loop_body
          %v378 = vld [vmem:[%s376] sm:%s369]
          %379 = vst [vmem:[%s377] sm:%s369] %v378
        $region92: #{double_conv_forward.3} parent=79 // loop_footer
          %s375 = sadd.s32 1, %s371
        $region93: #{double_conv_forward.3} parent=79 // loop_footer_branch
          %370 = sbr.rel target = $region89
        $region94: #{double_conv_forward.3} parent=79 // loop_exit
          _
      $region80: #{double_conv_forward.3} parent=31 // pred_fallthru
        _
      // Predicated region
      $region95: #{double_conv_forward.3} parent=31 // pred_check
        _
      $region96: #{double_conv_forward.3} parent=31 // pred_check_branch
        %382 = sbr.rel (0) target = $region98
      $region97: #{double_conv_forward.3} parent=31 // pred_region
        %383 = vsyncadd %s351, 288
      $region98: #{double_conv_forward.3} parent=31 // pred_fallthru
        _
      %s384 = smul.u32 8, 18
      %s385 = smul.u32 %s384, 1
      %s386 = sshll.u32 %s385, 4
      %387 = dma.done [#allocation3], %s386
      %s388 = smul.u32 1, 18
      %s389 = smul.u32 %s388, 1
      %s390 = sshll.u32 %s389, 4
      %391 = dma.done %s314, %s390
      %s392 = sshll.u32 %s389, 4
      %393 = dma.done %s351, %s392
      %v394 = vld [vmem:[#allocation2] sm:$0xff]
      %v395 = vld [vmem:[#allocation2 + $0x8] sm:$0xff]
      %v396 = vld [vmem:[#allocation2 + $0x10] sm:$0x3]
      %v397 = vld [vmem:[#allocation2 + $0x18] sm:$0xff]
      %v398 = vld [vmem:[#allocation2 + $0x20] sm:$0xff]
      %v399 = vld [vmem:[#allocation2 + $0x28] sm:$0x3]
      %v400 = vld [vmem:[#allocation2 + $0x30] sm:$0xff]
      %v401 = vld [vmem:[#allocation2 + $0x38] sm:$0xff]
      %v402 = vld [vmem:[#allocation2 + $0x40] sm:$0x3]
      %v403 = vld [vmem:[#allocation2 + $0x48] sm:$0xff]
      %v404 = vld [vmem:[#allocation2 + $0x50] sm:$0xff]
      %v405 = vld [vmem:[#allocation2 + $0x58] sm:$0x3]
      %v406 = vld [vmem:[#allocation2 + $0x60] sm:$0xff]
      %v407 = vld [vmem:[#allocation2 + $0x68] sm:$0xff]
      %v408 = vld [vmem:[#allocation2 + $0x70] sm:$0x3]
      %v409 = vld [vmem:[#allocation2 + $0x78] sm:$0xff]
      %v410 = vld [vmem:[#allocation2 + $0x80] sm:$0xff]
      %v411 = vld [vmem:[#allocation2 + $0x88] sm:$0x3]
      %v412 = vld [vmem:[#allocation2 + $0x90] sm:$0xff]
      %v413 = vld [vmem:[#allocation2 + $0x98] sm:$0xff]
      %v414 = vld [vmem:[#allocation2 + $0xa0] sm:$0x3]
      %v415 = vld [vmem:[#allocation2 + $0xa8] sm:$0xff]
      %v416 = vld [vmem:[#allocation2 + $0xb0] sm:$0xff]
      %v417 = vld [vmem:[#allocation2 + $0xb8] sm:$0x3]
      %v418 = vld [vmem:[#allocation2 + $0xc0] sm:$0xff]
      %v419 = vld [vmem:[#allocation2 + $0xc8] sm:$0xff]
      %v420 = vld [vmem:[#allocation2 + $0xd0] sm:$0x3]
      %v421 = vld [vmem:[#allocation2 + $0xd8] sm:$0xff]
      %v422 = vld [vmem:[#allocation2 + $0xe0] sm:$0xff]
      %v423 = vld [vmem:[#allocation2 + $0xe8] sm:$0x3]
      %v424 = vstv %s226
      %v425 = vadd.s32 %v424, 1
      %v426 = vadd.s32 %v424, 2
      %v427 = vadd.s32 %v424, 3
      %v428 = vadd.s32 %v424, 4
      %v429 = vadd.s32 %v424, 5
      %v430 = vadd.s32 %v424, 6
      %v431 = vadd.s32 %v424, 7
      %v432 = vadd.s32 %v424, 8
      %v433 = vadd.s32 %v424, 9
      %vm434 = vcmp.ge.s32.totalorder %v424, 0
      %vm435 = vcmp.ge.s32.totalorder %v425, 0
      %vm436 = vcmp.ge.s32.totalorder %v426, 0
      %vm437 = vcmp.ge.s32.totalorder %v427, 0
      %vm438 = vcmp.ge.s32.totalorder %v428, 0
      %vm439 = vcmp.ge.s32.totalorder %v429, 0
      %vm440 = vcmp.ge.s32.totalorder %v430, 0
      %vm441 = vcmp.ge.s32.totalorder %v431, 0
      %vm442 = vcmp.ge.s32.totalorder %v432, 0
      %vm443 = vcmp.ge.s32.totalorder %v433, 0
      %vm444 = vcmp.le.s32.totalorder %v424, 15
      %vm445 = vcmp.le.s32.totalorder %v425, 15
      %vm446 = vcmp.le.s32.totalorder %v426, 15
      %vm447 = vcmp.le.s32.totalorder %v427, 15
      %vm448 = vcmp.le.s32.totalorder %v428, 15
      %vm449 = vcmp.le.s32.totalorder %v429, 15
      %vm450 = vcmp.le.s32.totalorder %v430, 15
      %vm451 = vcmp.le.s32.totalorder %v431, 15
      %vm452 = vcmp.le.s32.totalorder %v432, 15
      %vm453 = vcmp.le.s32.totalorder %v433, 15
      %vm454 = vmand %vm434, %vm444
      %vm455 = vmand %vm435, %vm445
      %vm456 = vmand %vm436, %vm446
      %vm457 = vmand %vm437, %vm447
      %vm458 = vmand %vm438, %vm448
      %vm459 = vmand %vm439, %vm449
      %vm460 = vmand %vm440, %vm450
      %vm461 = vmand %vm441, %vm451
      %vm462 = vmand %vm442, %vm452
      %vm463 = vmand %vm443, %vm453
      %v464 = vsel %vm454, 1, 0
      %v465 = vsel %vm455, 1, 0
      %v466 = vsel %vm456, 1, 0
      %v467 = vsel %vm457, 1, 0
      %v468 = vsel %vm458, 1, 0
      %v469 = vsel %vm459, 1, 0
      %v470 = vsel %vm460, 1, 0
      %v471 = vsel %vm461, 1, 0
      %v472 = vsel %vm462, 1, 0
      %v473 = vsel %vm463, 1, 0
      %vm474 = vcmp.eq.s32.totalorder %v464, 1
      %vm475 = vcmp.eq.s32.totalorder %v465, 1
      %vm476 = vcmp.eq.s32.totalorder %v466, 1
      %vm477 = vcmp.eq.s32.totalorder %v467, 1
      %vm478 = vcmp.eq.s32.totalorder %v468, 1
      %vm479 = vcmp.eq.s32.totalorder %v469, 1
      %vm480 = vcmp.eq.s32.totalorder %v470, 1
      %vm481 = vcmp.eq.s32.totalorder %v471, 1
      %vm482 = vcmp.eq.s32.totalorder %v472, 1
      %vm483 = vcmp.eq.s32.totalorder %v473, 1
      %v484 = vsel %vm474, %v394, 0.0
      %v485 = vsel %vm474, %v395, 0.0
      %v486 = vsel %vm474, %v396, 0.0
      %v487 = vsel %vm475, %v397, 0.0
      %v488 = vsel %vm475, %v398, 0.0
      %v489 = vsel %vm475, %v399, 0.0
      %v490 = vsel %vm476, %v400, 0.0
      %v491 = vsel %vm476, %v401, 0.0
      %v492 = vsel %vm476, %v402, 0.0
      %v493 = vsel %vm477, %v403, 0.0
      %v494 = vsel %vm477, %v404, 0.0
      %v495 = vsel %vm477, %v405, 0.0
      %v496 = vsel %vm478, %v406, 0.0
      %v497 = vsel %vm478, %v407, 0.0
      %v498 = vsel %vm478, %v408, 0.0
      %v499 = vsel %vm479, %v409, 0.0
      %v500 = vsel %vm479, %v410, 0.0
      %v501 = vsel %vm479, %v411, 0.0
      %v502 = vsel %vm480, %v412, 0.0
      %v503 = vsel %vm480, %v413, 0.0
      %v504 = vsel %vm480, %v414, 0.0
      %v505 = vsel %vm481, %v415, 0.0
      %v506 = vsel %vm481, %v416, 0.0
      %v507 = vsel %vm481, %v417, 0.0
      %v508 = vsel %vm482, %v418, 0.0
      %v509 = vsel %vm482, %v419, 0.0
      %v510 = vsel %vm482, %v420, 0.0
      %v511 = vsel %vm483, %v421, 0.0
      %v512 = vsel %vm483, %v422, 0.0
      %v513 = vsel %vm483, %v423, 0.0
      %v514 = vpack.c.bf16 %v484, %v484
      %v515 = vpack.c.bf16 %v485, %v485
      %v516 = vpack.c.bf16 %v486, %v486
      %v517 = vpack.c.bf16 %v487, %v487
      %v518 = vpack.c.bf16 %v488, %v488
      %v519 = vpack.c.bf16 %v489, %v489
      %v520 = vpack.c.bf16 %v490, %v490
      %v521 = vpack.c.bf16 %v491, %v491
      %v522 = vpack.c.bf16 %v492, %v492
      %v523 = vpack.c.bf16 %v493, %v493
      %v524 = vpack.c.bf16 %v494, %v494
      %v525 = vpack.c.bf16 %v495, %v495
      %v526 = vpack.c.bf16 %v496, %v496
      %v527 = vpack.c.bf16 %v497, %v497
      %v528 = vpack.c.bf16 %v498, %v498
      %v529 = vpack.c.bf16 %v499, %v499
      %v530 = vpack.c.bf16 %v500, %v500
      %v531 = vpack.c.bf16 %v501, %v501
      %v532 = vpack.c.bf16 %v502, %v502
      %v533 = vpack.c.bf16 %v503, %v503
      %v534 = vpack.c.bf16 %v504, %v504
      %v535 = vpack.c.bf16 %v505, %v505
      %v536 = vpack.c.bf16 %v506, %v506
      %v537 = vpack.c.bf16 %v507, %v507
      %v538 = vpack.c.bf16 %v508, %v508
      %v539 = vpack.c.bf16 %v509, %v509
      %v540 = vpack.c.bf16 %v510, %v510
      %v541 = vpack.c.bf16 %v511, %v511
      %v542 = vpack.c.bf16 %v512, %v512
      %v543 = vpack.c.bf16 %v513, %v513
      %vm544 = vsmask.f32 3328
      %vm545 = vsmask.f32 7440
      %vm546 = vmor %vm544, %vm545
      %v548 = vshrl.u32 %v514, 16
      %v550 = vrot.slane %v548, 4
      %v551 = vshll.u32 %v514, 16
      %v553 = vrot.slane %v551, 5
      %v554 = vor.u32 %v550, %v553
      %v555 = vrot.slane %v554, 4
      %v557 = vshll.u32 %v515, 16
      %v559 = vrot.slane %v557, 5
      %v560 = vsel %vm546, %v555, %v559
      %v561 = vshrl.u32 %v515, 16
      %v563 = vrot.slane %v561, 4
      %v564 = vor.u32 %v563, %v559
      %v565 = vrot.slane %v564, 4
      %v567 = vshll.u32 %v516, 16
      %v569 = vrot.slane %v567, 5
      %v570 = vsel %vm546, %v565, %v569
      %v572 = vshrl.u32 %v517, 16
      %v574 = vrot.slane %v572, 4
      %v575 = vshll.u32 %v517, 16
      %v577 = vrot.slane %v575, 5
      %v578 = vor.u32 %v574, %v577
      %v579 = vrot.slane %v578, 4
      %v581 = vshll.u32 %v518, 16
      %v583 = vrot.slane %v581, 5
      %v584 = vsel %vm546, %v579, %v583
      %v585 = vshrl.u32 %v518, 16
      %v587 = vrot.slane %v585, 4
      %v588 = vor.u32 %v587, %v583
      %v589 = vrot.slane %v588, 4
      %v591 = vshll.u32 %v519, 16
      %v593 = vrot.slane %v591, 5
      %v594 = vsel %vm546, %v589, %v593
      %v596 = vshrl.u32 %v520, 16
      %v598 = vrot.slane %v596, 4
      %v599 = vshll.u32 %v520, 16
      %v601 = vrot.slane %v599, 5
      %v602 = vor.u32 %v598, %v601
      %v603 = vrot.slane %v602, 4
      %v605 = vshll.u32 %v521, 16
      %v607 = vrot.slane %v605, 5
      %v608 = vsel %vm546, %v603, %v607
      %v609 = vshrl.u32 %v521, 16
      %v611 = vrot.slane %v609, 4
      %v612 = vor.u32 %v611, %v607
      %v613 = vrot.slane %v612, 4
      %v615 = vshll.u32 %v522, 16
      %v617 = vrot.slane %v615, 5
      %v618 = vsel %vm546, %v613, %v617
      %v620 = vshrl.u32 %v523, 16
      %v622 = vrot.slane %v620, 4
      %v623 = vshll.u32 %v523, 16
      %v625 = vrot.slane %v623, 5
      %v626 = vor.u32 %v622, %v625
      %v627 = vrot.slane %v626, 4
      %v629 = vshll.u32 %v524, 16
      %v631 = vrot.slane %v629, 5
      %v632 = vsel %vm546, %v627, %v631
      %v633 = vshrl.u32 %v524, 16
      %v635 = vrot.slane %v633, 4
      %v636 = vor.u32 %v635, %v631
      %v637 = vrot.slane %v636, 4
      %v639 = vshll.u32 %v525, 16
      %v641 = vrot.slane %v639, 5
      %v642 = vsel %vm546, %v637, %v641
      %v644 = vshrl.u32 %v526, 16
      %v646 = vrot.slane %v644, 4
      %v647 = vshll.u32 %v526, 16
      %v649 = vrot.slane %v647, 5
      %v650 = vor.u32 %v646, %v649
      %v651 = vrot.slane %v650, 4
      %v653 = vshll.u32 %v527, 16
      %v655 = vrot.slane %v653, 5
      %v656 = vsel %vm546, %v651, %v655
      %v657 = vshrl.u32 %v527, 16
      %v659 = vrot.slane %v657, 4
      %v660 = vor.u32 %v659, %v655
      %v661 = vrot.slane %v660, 4
      %v663 = vshll.u32 %v528, 16
      %v665 = vrot.slane %v663, 5
      %v666 = vsel %vm546, %v661, %v665
      %v668 = vshrl.u32 %v529, 16
      %v670 = vrot.slane %v668, 4
      %v671 = vshll.u32 %v529, 16
      %v673 = vrot.slane %v671, 5
      %v674 = vor.u32 %v670, %v673
      %v675 = vrot.slane %v674, 4
      %v677 = vshll.u32 %v530, 16
      %v679 = vrot.slane %v677, 5
      %v680 = vsel %vm546, %v675, %v679
      %v681 = vshrl.u32 %v530, 16
      %v683 = vrot.slane %v681, 4
      %v684 = vor.u32 %v683, %v679
      %v685 = vrot.slane %v684, 4
      %v687 = vshll.u32 %v531, 16
      %v689 = vrot.slane %v687, 5
      %v690 = vsel %vm546, %v685, %v689
      %v692 = vshrl.u32 %v532, 16
      %v694 = vrot.slane %v692, 4
      %v695 = vshll.u32 %v532, 16
      %v697 = vrot.slane %v695, 5
      %v698 = vor.u32 %v694, %v697
      %v699 = vrot.slane %v698, 4
      %v701 = vshll.u32 %v533, 16
      %v703 = vrot.slane %v701, 5
      %v704 = vsel %vm546, %v699, %v703
      %v705 = vshrl.u32 %v533, 16
      %v707 = vrot.slane %v705, 4
      %v708 = vor.u32 %v707, %v703
      %v709 = vrot.slane %v708, 4
      %v711 = vshll.u32 %v534, 16
      %v713 = vrot.slane %v711, 5
      %v714 = vsel %vm546, %v709, %v713
      %v716 = vshrl.u32 %v535, 16
      %v718 = vrot.slane %v716, 4
      %v719 = vshll.u32 %v535, 16
      %v721 = vrot.slane %v719, 5
      %v722 = vor.u32 %v718, %v721
      %v723 = vrot.slane %v722, 4
      %v725 = vshll.u32 %v536, 16
      %v727 = vrot.slane %v725, 5
      %v728 = vsel %vm546, %v723, %v727
      %v729 = vshrl.u32 %v536, 16
      %v731 = vrot.slane %v729, 4
      %v732 = vor.u32 %v731, %v727
      %v733 = vrot.slane %v732, 4
      %v735 = vshll.u32 %v537, 16
      %v737 = vrot.slane %v735, 5
      %v738 = vsel %vm546, %v733, %v737
      %vm763 = vcmask 1042432
      %vm764 = vcmask 1046532
      %vm765 = vmor %vm763, %vm764
      %v766 = vrot.slane %v514, 5
      %v767 = vrot.slane %v766, 4
      %v768 = vrot.slane %v515, 5
      %v769 = vsel %vm765, %v767, %v768
      %v770 = vrot.slane %v768, 4
      %v771 = vrot.slane %v516, 5
      %v772 = vsel %vm765, %v770, %v771
      %v773 = vrot.slane %v517, 5
      %v774 = vrot.slane %v773, 4
      %v775 = vrot.slane %v518, 5
      %v776 = vsel %vm765, %v774, %v775
      %v777 = vrot.slane %v775, 4
      %v778 = vrot.slane %v519, 5
      %v779 = vsel %vm765, %v777, %v778
      %v780 = vrot.slane %v520, 5
      %v781 = vrot.slane %v780, 4
      %v782 = vrot.slane %v521, 5
      %v783 = vsel %vm765, %v781, %v782
      %v784 = vrot.slane %v782, 4
      %v785 = vrot.slane %v522, 5
      %v786 = vsel %vm765, %v784, %v785
      %v787 = vrot.slane %v523, 5
      %v788 = vrot.slane %v787, 4
      %v789 = vrot.slane %v524, 5
      %v790 = vsel %vm765, %v788, %v789
      %v791 = vrot.slane %v789, 4
      %v792 = vrot.slane %v525, 5
      %v793 = vsel %vm765, %v791, %v792
      %v794 = vrot.slane %v526, 5
      %v795 = vrot.slane %v794, 4
      %v796 = vrot.slane %v527, 5
      %v797 = vsel %vm765, %v795, %v796
      %v798 = vrot.slane %v796, 4
      %v799 = vrot.slane %v528, 5
      %v800 = vsel %vm765, %v798, %v799
      %v801 = vrot.slane %v529, 5
      %v802 = vrot.slane %v801, 4
      %v803 = vrot.slane %v530, 5
      %v804 = vsel %vm765, %v802, %v803
      %v805 = vrot.slane %v803, 4
      %v806 = vrot.slane %v531, 5
      %v807 = vsel %vm765, %v805, %v806
      %v808 = vrot.slane %v532, 5
      %v809 = vrot.slane %v808, 4
      %v810 = vrot.slane %v533, 5
      %v811 = vsel %vm765, %v809, %v810
      %v812 = vrot.slane %v810, 4
      %v813 = vrot.slane %v534, 5
      %v814 = vsel %vm765, %v812, %v813
      %v815 = vrot.slane %v535, 5
      %v816 = vrot.slane %v815, 4
      %v817 = vrot.slane %v536, 5
      %v818 = vsel %vm765, %v816, %v817
      %v819 = vrot.slane %v817, 4
      %v820 = vrot.slane %v537, 5
      %v821 = vsel %vm765, %v819, %v820
      %v823 = vshrl.u32 %v538, 16
      %v825 = vrot.slane %v823, 4
      %v826 = vshll.u32 %v538, 16
      %v828 = vrot.slane %v826, 5
      %v829 = vor.u32 %v825, %v828
      %v830 = vrot.slane %v829, 4
      %v832 = vshll.u32 %v539, 16
      %v834 = vrot.slane %v832, 5
      %v835 = vsel %vm546, %v830, %v834
      %v836 = vshrl.u32 %v539, 16
      %v838 = vrot.slane %v836, 4
      %v839 = vor.u32 %v838, %v834
      %v840 = vrot.slane %v839, 4
      %v842 = vshll.u32 %v540, 16
      %v844 = vrot.slane %v842, 5
      %v845 = vsel %vm546, %v840, %v844
      %v849 = vrot.slane %v538, 5
      %v850 = vrot.slane %v849, 4
      %v851 = vrot.slane %v539, 5
      %v852 = vsel %vm765, %v850, %v851
      %v853 = vrot.slane %v851, 4
      %v854 = vrot.slane %v540, 5
      %v855 = vsel %vm765, %v853, %v854
      %v857 = vshrl.u32 %v541, 16
      %v859 = vrot.slane %v857, 4
      %v860 = vshll.u32 %v541, 16
      %v862 = vrot.slane %v860, 5
      %v863 = vor.u32 %v859, %v862
      %v864 = vrot.slane %v863, 4
      %v866 = vshll.u32 %v542, 16
      %v868 = vrot.slane %v866, 5
      %v869 = vsel %vm546, %v864, %v868
      %v870 = vshrl.u32 %v542, 16
      %v872 = vrot.slane %v870, 4
      %v873 = vor.u32 %v872, %v868
      %v874 = vrot.slane %v873, 4
      %v876 = vshll.u32 %v543, 16
      %v878 = vrot.slane %v876, 5
      %v879 = vsel %vm546, %v874, %v878
      %v883 = vrot.slane %v541, 5
      %v884 = vrot.slane %v883, 4
      %v885 = vrot.slane %v542, 5
      %v886 = vsel %vm765, %v884, %v885
      %v887 = vrot.slane %v885, 4
      %v888 = vrot.slane %v543, 5
      %v889 = vsel %vm765, %v887, %v888
      %v890 = vunpack.c.l.b16 %v514
      %v891 = vunpack.c.l.b16 %v515
      %v892 = vunpack.c.l.b16 %v517
      %v893 = vunpack.c.l.b16 %v518
      %v894 = vunpack.c.l.b16 %v520
      %v895 = vunpack.c.l.b16 %v521
      %v896 = vunpack.c.l.b16 %v523
      %v897 = vunpack.c.l.b16 %v524
      %v898 = vunpack.c.l.b16 %v526
      %v899 = vunpack.c.l.b16 %v527
      %v900 = vunpack.c.l.b16 %v529
      %v901 = vunpack.c.l.b16 %v530
      %v902 = vunpack.c.l.b16 %v532
      %v903 = vunpack.c.l.b16 %v533
      %v904 = vunpack.c.l.b16 %v535
      %v905 = vunpack.c.l.b16 %v536
      %v906 = vpack.c.b16 %v891, %v890
      %v907 = vpack.c.b16 %v893, %v892
      %v908 = vpack.c.b16 %v895, %v894
      %v909 = vpack.c.b16 %v897, %v896
      %v910 = vpack.c.b16 %v899, %v898
      %v911 = vpack.c.b16 %v901, %v900
      %v912 = vpack.c.b16 %v903, %v902
      %v913 = vpack.c.b16 %v905, %v904
      %v922 = vunpack.c.l.b16 %v560
      %v923 = vunpack.c.l.b16 %v570
      %v924 = vunpack.c.l.b16 %v584
      %v925 = vunpack.c.l.b16 %v594
      %v926 = vunpack.c.l.b16 %v608
      %v927 = vunpack.c.l.b16 %v618
      %v928 = vunpack.c.l.b16 %v632
      %v929 = vunpack.c.l.b16 %v642
      %v930 = vunpack.c.l.b16 %v656
      %v931 = vunpack.c.l.b16 %v666
      %v932 = vunpack.c.l.b16 %v680
      %v933 = vunpack.c.l.b16 %v690
      %v934 = vunpack.c.l.b16 %v704
      %v935 = vunpack.c.l.b16 %v714
      %v936 = vunpack.c.l.b16 %v728
      %v937 = vunpack.c.l.b16 %v738
      %v938 = vpack.c.b16 %v923, %v922
      %v939 = vpack.c.b16 %v925, %v924
      %v940 = vpack.c.b16 %v927, %v926
      %v941 = vpack.c.b16 %v929, %v928
      %v942 = vpack.c.b16 %v931, %v930
      %v943 = vpack.c.b16 %v933, %v932
      %v944 = vpack.c.b16 %v935, %v934
      %v945 = vpack.c.b16 %v937, %v936
      %v954 = vunpack.c.l.b16 %v769
      %v955 = vunpack.c.l.b16 %v772
      %v956 = vunpack.c.l.b16 %v776
      %v957 = vunpack.c.l.b16 %v779
      %v958 = vunpack.c.l.b16 %v783
      %v959 = vunpack.c.l.b16 %v786
      %v960 = vunpack.c.l.b16 %v790
      %v961 = vunpack.c.l.b16 %v793
      %v962 = vunpack.c.l.b16 %v797
      %v963 = vunpack.c.l.b16 %v800
      %v964 = vunpack.c.l.b16 %v804
      %v965 = vunpack.c.l.b16 %v807
      %v966 = vunpack.c.l.b16 %v811
      %v967 = vunpack.c.l.b16 %v814
      %v968 = vunpack.c.l.b16 %v818
      %v969 = vunpack.c.l.b16 %v821
      %v970 = vpack.c.b16 %v955, %v954
      %v971 = vpack.c.b16 %v957, %v956
      %v972 = vpack.c.b16 %v959, %v958
      %v973 = vpack.c.b16 %v961, %v960
      %v974 = vpack.c.b16 %v963, %v962
      %v975 = vpack.c.b16 %v965, %v964
      %v976 = vpack.c.b16 %v967, %v966
      %v977 = vpack.c.b16 %v969, %v968
      %v986 = vunpack.c.l.b16 %v538
      %v987 = vunpack.c.l.b16 %v539
      %v988 = vpack.c.b16 %v987, %v986
      %v990 = vunpack.c.l.b16 %v835
      %v991 = vunpack.c.l.b16 %v845
      %v992 = vpack.c.b16 %v991, %v990
      %v994 = vunpack.c.l.b16 %v852
      %v995 = vunpack.c.l.b16 %v855
      %v996 = vpack.c.b16 %v995, %v994
      %v998 = vunpack.c.l.b16 %v541
      %v999 = vunpack.c.l.b16 %v542
      %v1000 = vpack.c.b16 %v999, %v998
      %v1002 = vunpack.c.l.b16 %v869
      %v1003 = vunpack.c.l.b16 %v879
      %v1004 = vpack.c.b16 %v1003, %v1002
      %v1006 = vunpack.c.l.b16 %v886
      %v1007 = vunpack.c.l.b16 %v889
      %v1008 = vpack.c.b16 %v1007, %v1006
      %v1010 = vld [vmem:[%s1] sm:$0xf]
      %v1011 = vld [vmem:[%s1 + $0x4] sm:$0xf]
      %v1012 = vld [vmem:[%s1 + $0x8] sm:$0xf]
      %v1013 = vld [vmem:[%s1 + $0xc] sm:$0xf]
      %v1014 = vld [vmem:[%s1 + $0x10] sm:$0xf]
      %v1015 = vld [vmem:[%s1 + $0x14] sm:$0xf]
      %v1016 = vld [vmem:[%s1 + $0x18] sm:$0xf]
      %v1017 = vld [vmem:[%s1 + $0x1c] sm:$0xf]
      %v1018 = vld [vmem:[%s1 + $0x20] sm:$0xf]
      %v1019 = vld [vmem:[%s1 + $0x24] sm:$0xf]
      %v1020 = vld [vmem:[%s1 + $0x28] sm:$0xf]
      %v1021 = vld [vmem:[%s1 + $0x2c] sm:$0xf]
      %v1022 = vld [vmem:[%s1 + $0x30] sm:$0xf]
      %v1023 = vld [vmem:[%s1 + $0x34] sm:$0xf]
      %v1024 = vld [vmem:[%s1 + $0x38] sm:$0xf]
      %v1025 = vld [vmem:[%s1 + $0x3c] sm:$0xf]
      %v1026 = vld [vmem:[%s1 + $0x40] sm:$0xf]
      %v1027 = vld [vmem:[%s1 + $0x44] sm:$0xf]
      %v1028 = vld [vmem:[%s1 + $0x48] sm:$0xf]
      %v1029 = vld [vmem:[%s1 + $0x4c] sm:$0xf]
      %v1030 = vld [vmem:[%s1 + $0x50] sm:$0xf]
      %v1031 = vld [vmem:[%s1 + $0x54] sm:$0xf]
      %v1032 = vld [vmem:[%s1 + $0x58] sm:$0xf]
      %v1033 = vld [vmem:[%s1 + $0x5c] sm:$0xf]
      %v1034 = vld [vmem:[%s1 + $0x60] sm:$0xf]
      %v1035 = vld [vmem:[%s1 + $0x64] sm:$0xf]
      %v1036 = vld [vmem:[%s1 + $0x68] sm:$0xf]
      %v1037 = vld [vmem:[%s1 + $0x6c] sm:$0xf]
      %v1038 = vld [vmem:[%s1 + $0x70] sm:$0xf]
      %v1039 = vld [vmem:[%s1 + $0x74] sm:$0xf]
      %v1040 = vld [vmem:[%s1 + $0x78] sm:$0xf]
      %v1041 = vld [vmem:[%s1 + $0x7c] sm:$0xf]
      %v1042 = vld [vmem:[%s1 + $0x80] sm:$0xf]
      %v1043 = vld [vmem:[%s1 + $0x84] sm:$0xf]
      %v1044 = vld [vmem:[%s1 + $0x88] sm:$0xf]
      %v1045 = vld [vmem:[%s1 + $0x8c] sm:$0xf]
      %v1046 = vld [vmem:[%s1 + $0x90] sm:$0xf]
      %v1047 = vld [vmem:[%s1 + $0x94] sm:$0xf]
      %v1048 = vld [vmem:[%s1 + $0x98] sm:$0xf]
      %v1049 = vld [vmem:[%s1 + $0x9c] sm:$0xf]
      %v1050 = vld [vmem:[%s1 + $0xa0] sm:$0xf]
      %v1051 = vld [vmem:[%s1 + $0xa4] sm:$0xf]
      %v1052 = vld [vmem:[%s1 + $0xa8] sm:$0xf]
      %v1053 = vld [vmem:[%s1 + $0xac] sm:$0xf]
      %v1054 = vld [vmem:[%s1 + $0xb0] sm:$0xf]
      %v1055 = vld [vmem:[%s1 + $0xb4] sm:$0xf]
      %v1056 = vld [vmem:[%s1 + $0xb8] sm:$0xf]
      %v1057 = vld [vmem:[%s1 + $0xbc] sm:$0xf]
      %v1058 = vld [vmem:[%s1 + $0xc0] sm:$0xf]
      %v1059 = vld [vmem:[%s1 + $0xc4] sm:$0xf]
      %v1060 = vld [vmem:[%s1 + $0xc8] sm:$0xf]
      %v1061 = vld [vmem:[%s1 + $0xcc] sm:$0xf]
      %v1062 = vld [vmem:[%s1 + $0xd0] sm:$0xf]
      %v1063 = vld [vmem:[%s1 + $0xd4] sm:$0xf]
      %v1064 = vld [vmem:[%s1 + $0xd8] sm:$0xf]
      %v1065 = vld [vmem:[%s1 + $0xdc] sm:$0xf]
      %v1066 = vld [vmem:[%s1 + $0xe0] sm:$0xf]
      %v1067 = vld [vmem:[%s1 + $0xe4] sm:$0xf]
      %v1068 = vld [vmem:[%s1 + $0xe8] sm:$0xf]
      %v1069 = vld [vmem:[%s1 + $0xec] sm:$0xf]
      %v1070 = vld [vmem:[%s1 + $0xf0] sm:$0xf]
      %v1071 = vld [vmem:[%s1 + $0xf4] sm:$0xf]
      %v1072 = vld [vmem:[%s1 + $0xf8] sm:$0xf]
      %v1073 = vld [vmem:[%s1 + $0xfc] sm:$0xf]
      %v1074 = vld [vmem:[%s1 + $0x100] sm:$0xf]
      %v1075 = vld [vmem:[%s1 + $0x104] sm:$0xf]
      %v1076 = vld [vmem:[%s1 + $0x108] sm:$0xf]
      %v1077 = vld [vmem:[%s1 + $0x10c] sm:$0xf]
      %v1078 = vld [vmem:[%s1 + $0x110] sm:$0xf]
      %v1079 = vld [vmem:[%s1 + $0x114] sm:$0xf]
      %v1080 = vld [vmem:[%s1 + $0x118] sm:$0xf]
      %v1081 = vld [vmem:[%s1 + $0x11c] sm:$0xf]
      %v1082 = vld [vmem:[%s1 + $0x120] sm:$0xf]
      %v1083 = vld [vmem:[%s1 + $0x124] sm:$0xf]
      %v1084 = vld [vmem:[%s1 + $0x128] sm:$0xf]
      %v1085 = vld [vmem:[%s1 + $0x12c] sm:$0xf]
      %v1086 = vld [vmem:[%s1 + $0x130] sm:$0xf]
      %v1087 = vld [vmem:[%s1 + $0x134] sm:$0xf]
      %v1088 = vld [vmem:[%s1 + $0x138] sm:$0xf]
      %v1089 = vld [vmem:[%s1 + $0x13c] sm:$0xf]
      %v1090 = vld [vmem:[%s1 + $0x140] sm:$0xf]
      %v1091 = vld [vmem:[%s1 + $0x144] sm:$0xf]
      %v1092 = vld [vmem:[%s1 + $0x148] sm:$0xf]
      %v1093 = vld [vmem:[%s1 + $0x14c] sm:$0xf]
      %v1094 = vld [vmem:[%s1 + $0x150] sm:$0xf]
      %v1095 = vld [vmem:[%s1 + $0x154] sm:$0xf]
      %v1096 = vld [vmem:[%s1 + $0x158] sm:$0xf]
      %v1097 = vld [vmem:[%s1 + $0x15c] sm:$0xf]
      %v1098 = vld [vmem:[%s1 + $0x160] sm:$0xf]
      %v1099 = vld [vmem:[%s1 + $0x164] sm:$0xf]
      %v1100 = vld [vmem:[%s1 + $0x168] sm:$0xf]
      %v1101 = vld [vmem:[%s1 + $0x16c] sm:$0xf]
      %v1102 = vld [vmem:[%s1 + $0x170] sm:$0xf]
      %v1103 = vld [vmem:[%s1 + $0x174] sm:$0xf]
      %v1104 = vld [vmem:[%s1 + $0x178] sm:$0xf]
      %v1105 = vld [vmem:[%s1 + $0x17c] sm:$0xf]
      %v1106 = vld [vmem:[%s1 + $0x180] sm:$0xf]
      %v1107 = vld [vmem:[%s1 + $0x184] sm:$0xf]
      %v1108 = vld [vmem:[%s1 + $0x188] sm:$0xf]
      %v1109 = vld [vmem:[%s1 + $0x18c] sm:$0xf]
      %v1110 = vld [vmem:[%s1 + $0x190] sm:$0xf]
      %v1111 = vld [vmem:[%s1 + $0x194] sm:$0xf]
      %v1112 = vld [vmem:[%s1 + $0x198] sm:$0xf]
      %v1113 = vld [vmem:[%s1 + $0x19c] sm:$0xf]
      %v1114 = vld [vmem:[%s1 + $0x1a0] sm:$0xf]
      %v1115 = vld [vmem:[%s1 + $0x1a4] sm:$0xf]
      %v1116 = vld [vmem:[%s1 + $0x1a8] sm:$0xf]
      %v1117 = vld [vmem:[%s1 + $0x1ac] sm:$0xf]
      %v1118 = vld [vmem:[%s1 + $0x1b0] sm:$0xf]
      %v1119 = vld [vmem:[%s1 + $0x1b4] sm:$0xf]
      %v1120 = vld [vmem:[%s1 + $0x1b8] sm:$0xf]
      %v1121 = vld [vmem:[%s1 + $0x1bc] sm:$0xf]
      %v1122 = vld [vmem:[%s1 + $0x1c0] sm:$0xf]
      %v1123 = vld [vmem:[%s1 + $0x1c4] sm:$0xf]
      %v1124 = vld [vmem:[%s1 + $0x1c8] sm:$0xf]
      %v1125 = vld [vmem:[%s1 + $0x1cc] sm:$0xf]
      %v1126 = vld [vmem:[%s1 + $0x1d0] sm:$0xf]
      %v1127 = vld [vmem:[%s1 + $0x1d4] sm:$0xf]
      %v1128 = vld [vmem:[%s1 + $0x1d8] sm:$0xf]
      %v1129 = vld [vmem:[%s1 + $0x1dc] sm:$0xf]
      %v1130 = vld [vmem:[%s1 + $0x1e0] sm:$0xf]
      %v1131 = vld [vmem:[%s1 + $0x1e4] sm:$0xf]
      %v1132 = vld [vmem:[%s1 + $0x1e8] sm:$0xf]
      %v1133 = vld [vmem:[%s1 + $0x1ec] sm:$0xf]
      %v1134 = vld [vmem:[%s1 + $0x1f0] sm:$0xf]
      %v1135 = vld [vmem:[%s1 + $0x1f4] sm:$0xf]
      %v1136 = vld [vmem:[%s1 + $0x1f8] sm:$0xf]
      %v1137 = vld [vmem:[%s1 + $0x1fc] sm:$0xf]
      %v1138 = vld [vmem:[%s1 + $0x200] sm:$0xf]
      %v1139 = vld [vmem:[%s1 + $0x204] sm:$0xf]
      %v1140 = vld [vmem:[%s1 + $0x208] sm:$0xf]
      %v1141 = vld [vmem:[%s1 + $0x20c] sm:$0xf]
      %v1142 = vld [vmem:[%s1 + $0x210] sm:$0xf]
      %v1143 = vld [vmem:[%s1 + $0x214] sm:$0xf]
      %v1144 = vld [vmem:[%s1 + $0x218] sm:$0xf]
      %v1145 = vld [vmem:[%s1 + $0x21c] sm:$0xf]
      %v1146 = vld [vmem:[%s1 + $0x220] sm:$0xf]
      %v1147 = vld [vmem:[%s1 + $0x224] sm:$0xf]
      %v1148 = vld [vmem:[%s1 + $0x228] sm:$0xf]
      %v1149 = vld [vmem:[%s1 + $0x22c] sm:$0xf]
      %v1150 = vld [vmem:[%s1 + $0x230] sm:$0xf]
      %v1151 = vld [vmem:[%s1 + $0x234] sm:$0xf]
      %v1152 = vld [vmem:[%s1 + $0x238] sm:$0xf]
      %v1153 = vld [vmem:[%s1 + $0x23c] sm:$0xf]
      %v1298 = vunpack.c.l.b16 %v1010
      %v1299 = vunpack.c.l.b16 %v1011
      %v1300 = vunpack.c.l.b16 %v1012
      %v1301 = vunpack.c.l.b16 %v1013
      %v1302 = vunpack.c.l.b16 %v1014
      %v1303 = vunpack.c.l.b16 %v1015
      %v1304 = vunpack.c.l.b16 %v1016
      %v1305 = vunpack.c.l.b16 %v1017
      %v1306 = vunpack.c.l.b16 %v1018
      %v1307 = vunpack.c.l.b16 %v1019
      %v1308 = vunpack.c.l.b16 %v1020
      %v1309 = vunpack.c.l.b16 %v1021
      %v1310 = vunpack.c.l.b16 %v1022
      %v1311 = vunpack.c.l.b16 %v1023
      %v1312 = vunpack.c.l.b16 %v1024
      %v1313 = vunpack.c.l.b16 %v1025
      %v1314 = vunpack.c.l.b16 %v1026
      %v1315 = vunpack.c.l.b16 %v1027
      %v1316 = vunpack.c.l.b16 %v1028
      %v1317 = vunpack.c.l.b16 %v1029
      %v1318 = vunpack.c.l.b16 %v1030
      %v1319 = vunpack.c.l.b16 %v1031
      %v1320 = vunpack.c.l.b16 %v1032
      %v1321 = vunpack.c.l.b16 %v1033
      %v1322 = vunpack.c.l.b16 %v1034
      %v1323 = vunpack.c.l.b16 %v1035
      %v1324 = vunpack.c.l.b16 %v1036
      %v1325 = vunpack.c.l.b16 %v1037
      %v1326 = vunpack.c.l.b16 %v1038
      %v1327 = vunpack.c.l.b16 %v1039
      %v1328 = vunpack.c.l.b16 %v1040
      %v1329 = vunpack.c.l.b16 %v1041
      %v1330 = vunpack.c.l.b16 %v1042
      %v1331 = vunpack.c.l.b16 %v1043
      %v1332 = vunpack.c.l.b16 %v1044
      %v1333 = vunpack.c.l.b16 %v1045
      %v1334 = vunpack.c.l.b16 %v1046
      %v1335 = vunpack.c.l.b16 %v1047
      %v1336 = vunpack.c.l.b16 %v1048
      %v1337 = vunpack.c.l.b16 %v1049
      %v1338 = vunpack.c.l.b16 %v1050
      %v1339 = vunpack.c.l.b16 %v1051
      %v1340 = vunpack.c.l.b16 %v1052
      %v1341 = vunpack.c.l.b16 %v1053
      %v1342 = vunpack.c.l.b16 %v1054
      %v1343 = vunpack.c.l.b16 %v1055
      %v1344 = vunpack.c.l.b16 %v1056
      %v1345 = vunpack.c.l.b16 %v1057
      %v1346 = vunpack.c.l.b16 %v1058
      %v1347 = vunpack.c.l.b16 %v1059
      %v1348 = vunpack.c.l.b16 %v1060
      %v1349 = vunpack.c.l.b16 %v1061
      %v1350 = vunpack.c.l.b16 %v1062
      %v1351 = vunpack.c.l.b16 %v1063
      %v1352 = vunpack.c.l.b16 %v1064
      %v1353 = vunpack.c.l.b16 %v1065
      %v1354 = vunpack.c.l.b16 %v1066
      %v1355 = vunpack.c.l.b16 %v1067
      %v1356 = vunpack.c.l.b16 %v1068
      %v1357 = vunpack.c.l.b16 %v1069
      %v1358 = vunpack.c.l.b16 %v1070
      %v1359 = vunpack.c.l.b16 %v1071
      %v1360 = vunpack.c.l.b16 %v1072
      %v1361 = vunpack.c.l.b16 %v1073
      %v1362 = vunpack.c.l.b16 %v1074
      %v1363 = vunpack.c.l.b16 %v1075
      %v1364 = vunpack.c.l.b16 %v1076
      %v1365 = vunpack.c.l.b16 %v1077
      %v1366 = vunpack.c.l.b16 %v1078
      %v1367 = vunpack.c.l.b16 %v1079
      %v1368 = vunpack.c.l.b16 %v1080
      %v1369 = vunpack.c.l.b16 %v1081
      %v1370 = vunpack.c.l.b16 %v1082
      %v1371 = vunpack.c.l.b16 %v1083
      %v1372 = vunpack.c.l.b16 %v1084
      %v1373 = vunpack.c.l.b16 %v1085
      %v1374 = vunpack.c.l.b16 %v1086
      %v1375 = vunpack.c.l.b16 %v1087
      %v1376 = vunpack.c.l.b16 %v1088
      %v1377 = vunpack.c.l.b16 %v1089
      %v1378 = vunpack.c.l.b16 %v1090
      %v1379 = vunpack.c.l.b16 %v1091
      %v1380 = vunpack.c.l.b16 %v1092
      %v1381 = vunpack.c.l.b16 %v1093
      %v1382 = vunpack.c.l.b16 %v1094
      %v1383 = vunpack.c.l.b16 %v1095
      %v1384 = vunpack.c.l.b16 %v1096
      %v1385 = vunpack.c.l.b16 %v1097
      %v1386 = vunpack.c.l.b16 %v1098
      %v1387 = vunpack.c.l.b16 %v1099
      %v1388 = vunpack.c.l.b16 %v1100
      %v1389 = vunpack.c.l.b16 %v1101
      %v1390 = vunpack.c.l.b16 %v1102
      %v1391 = vunpack.c.l.b16 %v1103
      %v1392 = vunpack.c.l.b16 %v1104
      %v1393 = vunpack.c.l.b16 %v1105
      %v1394 = vunpack.c.l.b16 %v1106
      %v1395 = vunpack.c.l.b16 %v1107
      %v1396 = vunpack.c.l.b16 %v1108
      %v1397 = vunpack.c.l.b16 %v1109
      %v1398 = vunpack.c.l.b16 %v1110
      %v1399 = vunpack.c.l.b16 %v1111
      %v1400 = vunpack.c.l.b16 %v1112
      %v1401 = vunpack.c.l.b16 %v1113
      %v1402 = vunpack.c.l.b16 %v1114
      %v1403 = vunpack.c.l.b16 %v1115
      %v1404 = vunpack.c.l.b16 %v1116
      %v1405 = vunpack.c.l.b16 %v1117
      %v1406 = vunpack.c.l.b16 %v1118
      %v1407 = vunpack.c.l.b16 %v1119
      %v1408 = vunpack.c.l.b16 %v1120
      %v1409 = vunpack.c.l.b16 %v1121
      %v1410 = vunpack.c.l.b16 %v1122
      %v1411 = vunpack.c.l.b16 %v1123
      %v1412 = vunpack.c.l.b16 %v1124
      %v1413 = vunpack.c.l.b16 %v1125
      %v1414 = vunpack.c.l.b16 %v1126
      %v1415 = vunpack.c.l.b16 %v1127
      %v1416 = vunpack.c.l.b16 %v1128
      %v1417 = vunpack.c.l.b16 %v1129
      %v1418 = vunpack.c.l.b16 %v1130
      %v1419 = vunpack.c.l.b16 %v1131
      %v1420 = vunpack.c.l.b16 %v1132
      %v1421 = vunpack.c.l.b16 %v1133
      %v1422 = vunpack.c.l.b16 %v1134
      %v1423 = vunpack.c.l.b16 %v1135
      %v1424 = vunpack.c.l.b16 %v1136
      %v1425 = vunpack.c.l.b16 %v1137
      %v1426 = vunpack.c.l.b16 %v1138
      %v1427 = vunpack.c.l.b16 %v1139
      %v1428 = vunpack.c.l.b16 %v1140
      %v1429 = vunpack.c.l.b16 %v1141
      %v1430 = vunpack.c.l.b16 %v1142
      %v1431 = vunpack.c.l.b16 %v1143
      %v1432 = vunpack.c.l.b16 %v1144
      %v1433 = vunpack.c.l.b16 %v1145
      %v1434 = vunpack.c.l.b16 %v1146
      %v1435 = vunpack.c.l.b16 %v1147
      %v1436 = vunpack.c.l.b16 %v1148
      %v1437 = vunpack.c.l.b16 %v1149
      %v1438 = vunpack.c.l.b16 %v1150
      %v1439 = vunpack.c.l.b16 %v1151
      %v1440 = vunpack.c.l.b16 %v1152
      %v1441 = vunpack.c.l.b16 %v1153
      %v1442 = vpack.c.b16 %v1299, %v1298
      %v1443 = vpack.c.b16 %v1301, %v1300
      %v1444 = vpack.c.b16 %v1303, %v1302
      %v1445 = vpack.c.b16 %v1305, %v1304
      %v1446 = vpack.c.b16 %v1307, %v1306
      %v1447 = vpack.c.b16 %v1309, %v1308
      %v1448 = vpack.c.b16 %v1311, %v1310
      %v1449 = vpack.c.b16 %v1313, %v1312
      %v1450 = vpack.c.b16 %v1315, %v1314
      %v1451 = vpack.c.b16 %v1317, %v1316
      %v1452 = vpack.c.b16 %v1319, %v1318
      %v1453 = vpack.c.b16 %v1321, %v1320
      %v1454 = vpack.c.b16 %v1323, %v1322
      %v1455 = vpack.c.b16 %v1325, %v1324
      %v1456 = vpack.c.b16 %v1327, %v1326
      %v1457 = vpack.c.b16 %v1329, %v1328
      %v1458 = vpack.c.b16 %v1331, %v1330
      %v1459 = vpack.c.b16 %v1333, %v1332
      %v1460 = vpack.c.b16 %v1335, %v1334
      %v1461 = vpack.c.b16 %v1337, %v1336
      %v1462 = vpack.c.b16 %v1339, %v1338
      %v1463 = vpack.c.b16 %v1341, %v1340
      %v1464 = vpack.c.b16 %v1343, %v1342
      %v1465 = vpack.c.b16 %v1345, %v1344
      %v1466 = vpack.c.b16 %v1347, %v1346
      %v1467 = vpack.c.b16 %v1349, %v1348
      %v1468 = vpack.c.b16 %v1351, %v1350
      %v1469 = vpack.c.b16 %v1353, %v1352
      %v1470 = vpack.c.b16 %v1355, %v1354
      %v1471 = vpack.c.b16 %v1357, %v1356
      %v1472 = vpack.c.b16 %v1359, %v1358
      %v1473 = vpack.c.b16 %v1361, %v1360
      %v1474 = vpack.c.b16 %v1363, %v1362
      %v1475 = vpack.c.b16 %v1365, %v1364
      %v1476 = vpack.c.b16 %v1367, %v1366
      %v1477 = vpack.c.b16 %v1369, %v1368
      %v1478 = vpack.c.b16 %v1371, %v1370
      %v1479 = vpack.c.b16 %v1373, %v1372
      %v1480 = vpack.c.b16 %v1375, %v1374
      %v1481 = vpack.c.b16 %v1377, %v1376
      %v1482 = vpack.c.b16 %v1379, %v1378
      %v1483 = vpack.c.b16 %v1381, %v1380
      %v1484 = vpack.c.b16 %v1383, %v1382
      %v1485 = vpack.c.b16 %v1385, %v1384
      %v1486 = vpack.c.b16 %v1387, %v1386
      %v1487 = vpack.c.b16 %v1389, %v1388
      %v1488 = vpack.c.b16 %v1391, %v1390
      %v1489 = vpack.c.b16 %v1393, %v1392
      %v1490 = vpack.c.b16 %v1395, %v1394
      %v1491 = vpack.c.b16 %v1397, %v1396
      %v1492 = vpack.c.b16 %v1399, %v1398
      %v1493 = vpack.c.b16 %v1401, %v1400
      %v1494 = vpack.c.b16 %v1403, %v1402
      %v1495 = vpack.c.b16 %v1405, %v1404
      %v1496 = vpack.c.b16 %v1407, %v1406
      %v1497 = vpack.c.b16 %v1409, %v1408
      %v1498 = vpack.c.b16 %v1411, %v1410
      %v1499 = vpack.c.b16 %v1413, %v1412
      %v1500 = vpack.c.b16 %v1415, %v1414
      %v1501 = vpack.c.b16 %v1417, %v1416
      %v1502 = vpack.c.b16 %v1419, %v1418
      %v1503 = vpack.c.b16 %v1421, %v1420
      %v1504 = vpack.c.b16 %v1423, %v1422
      %v1505 = vpack.c.b16 %v1425, %v1424
      %v1506 = vpack.c.b16 %v1427, %v1426
      %v1507 = vpack.c.b16 %v1429, %v1428
      %v1508 = vpack.c.b16 %v1431, %v1430
      %v1509 = vpack.c.b16 %v1433, %v1432
      %v1510 = vpack.c.b16 %v1435, %v1434
      %v1511 = vpack.c.b16 %v1437, %v1436
      %v1512 = vpack.c.b16 %v1439, %v1438
      %v1513 = vpack.c.b16 %v1441, %v1440
      %1586 = vmatpush.bf16.msra.mxu0 %v1449
      %1587 = vmatpush.bf16.msra.mxu0 %v1448
      %1588 = vmatpush.bf16.msra.mxu0 %v1447
      %1589 = vmatpush.bf16.msra.mxu0 %v1446
      %1590 = vmatpush.bf16.msra.mxu0 %v1445
      %1591 = vmatpush.bf16.msra.mxu0 %v1444
      %1592 = vmatpush.bf16.msra.mxu0 %v1443
      %1593 = vmatpush.bf16.msra.mxu0 %v1442
      %1594 = vmatmul.bf16.gmra.mxu0 %v906
      %v1595 = vpop.f32.mrf.mxu0
      %v1596 = vadd.f32 0.0, %v1595
      %v1597 = vpop.f32.mrf.mxu0
      %v1598 = vadd.f32 0.0, %v1597
      %1599 = vmatmul.bf16.gmra.mxu0 %v907
      %v1600 = vpop.f32.mrf.mxu0
      %v1601 = vadd.f32 0.0, %v1600
      %v1602 = vpop.f32.mrf.mxu0
      %v1603 = vadd.f32 0.0, %v1602
      %1604 = vmatmul.bf16.gmra.mxu0 %v908
      %v1605 = vpop.f32.mrf.mxu0
      %v1606 = vadd.f32 0.0, %v1605
      %v1607 = vpop.f32.mrf.mxu0
      %v1608 = vadd.f32 0.0, %v1607
      %1609 = vmatmul.bf16.gmra.mxu0 %v909
      %v1610 = vpop.f32.mrf.mxu0
      %v1611 = vadd.f32 0.0, %v1610
      %v1612 = vpop.f32.mrf.mxu0
      %v1613 = vadd.f32 0.0, %v1612
      %1614 = vmatmul.bf16.gmra.mxu0 %v910
      %v1615 = vpop.f32.mrf.mxu0
      %v1616 = vadd.f32 0.0, %v1615
      %v1617 = vpop.f32.mrf.mxu0
      %v1618 = vadd.f32 0.0, %v1617
      %1619 = vmatmul.bf16.gmra.mxu0 %v911
      %v1620 = vpop.f32.mrf.mxu0
      %v1621 = vadd.f32 0.0, %v1620
      %v1622 = vpop.f32.mrf.mxu0
      %v1623 = vadd.f32 0.0, %v1622
      %1624 = vmatmul.bf16.gmra.mxu0 %v912
      %v1625 = vpop.f32.mrf.mxu0
      %v1626 = vadd.f32 0.0, %v1625
      %v1627 = vpop.f32.mrf.mxu0
      %v1628 = vadd.f32 0.0, %v1627
      %1629 = vmatmul.bf16.gmra.mxu0 %v913
      %v1630 = vpop.f32.mrf.mxu0
      %v1631 = vadd.f32 0.0, %v1630
      %v1632 = vpop.f32.mrf.mxu0
      %v1633 = vadd.f32 0.0, %v1632
      %1634 = vdwg.mxu0
      %1635 = vmatpush.bf16.msra.mxu0 %v1457
      %1636 = vmatpush.bf16.msra.mxu0 %v1456
      %1637 = vmatpush.bf16.msra.mxu0 %v1455
      %1638 = vmatpush.bf16.msra.mxu0 %v1454
      %1639 = vmatpush.bf16.msra.mxu0 %v1453
      %1640 = vmatpush.bf16.msra.mxu0 %v1452
      %1641 = vmatpush.bf16.msra.mxu0 %v1451
      %1642 = vmatpush.bf16.msra.mxu0 %v1450
      %1643 = vmatmul.bf16.gmra.mxu0 %v938
      %v1644 = vpop.f32.mrf.mxu0
      %v1645 = vadd.f32 %v1596, %v1644
      %v1646 = vpop.f32.mrf.mxu0
      %v1647 = vadd.f32 %v1598, %v1646
      %1648 = vmatmul.bf16.gmra.mxu0 %v939
      %v1649 = vpop.f32.mrf.mxu0
      %v1650 = vadd.f32 %v1601, %v1649
      %v1651 = vpop.f32.mrf.mxu0
      %v1652 = vadd.f32 %v1603, %v1651
      %1653 = vmatmul.bf16.gmra.mxu0 %v940
      %v1654 = vpop.f32.mrf.mxu0
      %v1655 = vadd.f32 %v1606, %v1654
      %v1656 = vpop.f32.mrf.mxu0
      %v1657 = vadd.f32 %v1608, %v1656
      %1658 = vmatmul.bf16.gmra.mxu0 %v941
      %v1659 = vpop.f32.mrf.mxu0
      %v1660 = vadd.f32 %v1611, %v1659
      %v1661 = vpop.f32.mrf.mxu0
      %v1662 = vadd.f32 %v1613, %v1661
      %1663 = vmatmul.bf16.gmra.mxu0 %v942
      %v1664 = vpop.f32.mrf.mxu0
      %v1665 = vadd.f32 %v1616, %v1664
      %v1666 = vpop.f32.mrf.mxu0
      %v1667 = vadd.f32 %v1618, %v1666
      %1668 = vmatmul.bf16.gmra.mxu0 %v943
      %v1669 = vpop.f32.mrf.mxu0
      %v1670 = vadd.f32 %v1621, %v1669
      %v1671 = vpop.f32.mrf.mxu0
      %v1672 = vadd.f32 %v1623, %v1671
      %1673 = vmatmul.bf16.gmra.mxu0 %v944
      %v1674 = vpop.f32.mrf.mxu0
      %v1675 = vadd.f32 %v1626, %v1674
      %v1676 = vpop.f32.mrf.mxu0
      %v1677 = vadd.f32 %v1628, %v1676
      %1678 = vmatmul.bf16.gmra.mxu0 %v945
      %v1679 = vpop.f32.mrf.mxu0
      %v1680 = vadd.f32 %v1631, %v1679
      %v1681 = vpop.f32.mrf.mxu0
      %v1682 = vadd.f32 %v1633, %v1681
      %1683 = vdwg.mxu0
      %1684 = vmatpush.bf16.msra.mxu0 %v1465
      %1685 = vmatpush.bf16.msra.mxu0 %v1464
      %1686 = vmatpush.bf16.msra.mxu0 %v1463
      %1687 = vmatpush.bf16.msra.mxu0 %v1462
      %1688 = vmatpush.bf16.msra.mxu0 %v1461
      %1689 = vmatpush.bf16.msra.mxu0 %v1460
      %1690 = vmatpush.bf16.msra.mxu0 %v1459
      %1691 = vmatpush.bf16.msra.mxu0 %v1458
      %1692 = vmatmul.bf16.gmra.mxu0 %v970
      %v1693 = vpop.f32.mrf.mxu0
      %v1694 = vadd.f32 %v1645, %v1693
      %v1695 = vpop.f32.mrf.mxu0
      %v1696 = vadd.f32 %v1647, %v1695
      %1697 = vmatmul.bf16.gmra.mxu0 %v971
      %v1698 = vpop.f32.mrf.mxu0
      %v1699 = vadd.f32 %v1650, %v1698
      %v1700 = vpop.f32.mrf.mxu0
      %v1701 = vadd.f32 %v1652, %v1700
      %1702 = vmatmul.bf16.gmra.mxu0 %v972
      %v1703 = vpop.f32.mrf.mxu0
      %v1704 = vadd.f32 %v1655, %v1703
      %v1705 = vpop.f32.mrf.mxu0
      %v1706 = vadd.f32 %v1657, %v1705
      %1707 = vmatmul.bf16.gmra.mxu0 %v973
      %v1708 = vpop.f32.mrf.mxu0
      %v1709 = vadd.f32 %v1660, %v1708
      %v1710 = vpop.f32.mrf.mxu0
      %v1711 = vadd.f32 %v1662, %v1710
      %1712 = vmatmul.bf16.gmra.mxu0 %v974
      %v1713 = vpop.f32.mrf.mxu0
      %v1714 = vadd.f32 %v1665, %v1713
      %v1715 = vpop.f32.mrf.mxu0
      %v1716 = vadd.f32 %v1667, %v1715
      %1717 = vmatmul.bf16.gmra.mxu0 %v975
      %v1718 = vpop.f32.mrf.mxu0
      %v1719 = vadd.f32 %v1670, %v1718
      %v1720 = vpop.f32.mrf.mxu0
      %v1721 = vadd.f32 %v1672, %v1720
      %1722 = vmatmul.bf16.gmra.mxu0 %v976
      %v1723 = vpop.f32.mrf.mxu0
      %v1724 = vadd.f32 %v1675, %v1723
      %v1725 = vpop.f32.mrf.mxu0
      %v1726 = vadd.f32 %v1677, %v1725
      %1727 = vmatmul.bf16.gmra.mxu0 %v977
      %v1728 = vpop.f32.mrf.mxu0
      %v1729 = vadd.f32 %v1680, %v1728
      %v1730 = vpop.f32.mrf.mxu0
      %v1731 = vadd.f32 %v1682, %v1730
      %1732 = vdwg.mxu0
      %1733 = vmatpush.bf16.msra.mxu0 %v1473
      %1734 = vmatpush.bf16.msra.mxu0 %v1472
      %1735 = vmatpush.bf16.msra.mxu0 %v1471
      %1736 = vmatpush.bf16.msra.mxu0 %v1470
      %1737 = vmatpush.bf16.msra.mxu0 %v1469
      %1738 = vmatpush.bf16.msra.mxu0 %v1468
      %1739 = vmatpush.bf16.msra.mxu0 %v1467
      %1740 = vmatpush.bf16.msra.mxu0 %v1466
      %1741 = vmatmul.bf16.gmra.mxu0 %v907
      %v1742 = vpop.f32.mrf.mxu0
      %v1743 = vadd.f32 %v1694, %v1742
      %v1744 = vpop.f32.mrf.mxu0
      %v1745 = vadd.f32 %v1696, %v1744
      %1746 = vmatmul.bf16.gmra.mxu0 %v908
      %v1747 = vpop.f32.mrf.mxu0
      %v1748 = vadd.f32 %v1699, %v1747
      %v1749 = vpop.f32.mrf.mxu0
      %v1750 = vadd.f32 %v1701, %v1749
      %1751 = vmatmul.bf16.gmra.mxu0 %v909
      %v1752 = vpop.f32.mrf.mxu0
      %v1753 = vadd.f32 %v1704, %v1752
      %v1754 = vpop.f32.mrf.mxu0
      %v1755 = vadd.f32 %v1706, %v1754
      %1756 = vmatmul.bf16.gmra.mxu0 %v910
      %v1757 = vpop.f32.mrf.mxu0
      %v1758 = vadd.f32 %v1709, %v1757
      %v1759 = vpop.f32.mrf.mxu0
      %v1760 = vadd.f32 %v1711, %v1759
      %1761 = vmatmul.bf16.gmra.mxu0 %v911
      %v1762 = vpop.f32.mrf.mxu0
      %v1763 = vadd.f32 %v1714, %v1762
      %v1764 = vpop.f32.mrf.mxu0
      %v1765 = vadd.f32 %v1716, %v1764
      %1766 = vmatmul.bf16.gmra.mxu0 %v912
      %v1767 = vpop.f32.mrf.mxu0
      %v1768 = vadd.f32 %v1719, %v1767
      %v1769 = vpop.f32.mrf.mxu0
      %v1770 = vadd.f32 %v1721, %v1769
      %1771 = vmatmul.bf16.gmra.mxu0 %v913
      %v1772 = vpop.f32.mrf.mxu0
      %v1773 = vadd.f32 %v1724, %v1772
      %v1774 = vpop.f32.mrf.mxu0
      %v1775 = vadd.f32 %v1726, %v1774
      %1776 = vmatmul.bf16.gmra.mxu0 %v988
      %v1777 = vpop.f32.mrf.mxu0
      %v1778 = vadd.f32 %v1729, %v1777
      %v1779 = vpop.f32.mrf.mxu0
      %v1780 = vadd.f32 %v1731, %v1779
      %1781 = vdwg.mxu0
      %1782 = vmatpush.bf16.msra.mxu0 %v1481
      %1783 = vmatpush.bf16.msra.mxu0 %v1480
      %1784 = vmatpush.bf16.msra.mxu0 %v1479
      %1785 = vmatpush.bf16.msra.mxu0 %v1478
      %1786 = vmatpush.bf16.msra.mxu0 %v1477
      %1787 = vmatpush.bf16.msra.mxu0 %v1476
      %1788 = vmatpush.bf16.msra.mxu0 %v1475
      %1789 = vmatpush.bf16.msra.mxu0 %v1474
      %1790 = vmatmul.bf16.gmra.mxu0 %v939
      %v1791 = vpop.f32.mrf.mxu0
      %v1792 = vadd.f32 %v1743, %v1791
      %v1793 = vpop.f32.mrf.mxu0
      %v1794 = vadd.f32 %v1745, %v1793
      %1795 = vmatmul.bf16.gmra.mxu0 %v940
      %v1796 = vpop.f32.mrf.mxu0
      %v1797 = vadd.f32 %v1748, %v1796
      %v1798 = vpop.f32.mrf.mxu0
      %v1799 = vadd.f32 %v1750, %v1798
      %1800 = vmatmul.bf16.gmra.mxu0 %v941
      %v1801 = vpop.f32.mrf.mxu0
      %v1802 = vadd.f32 %v1753, %v1801
      %v1803 = vpop.f32.mrf.mxu0
      %v1804 = vadd.f32 %v1755, %v1803
      %1805 = vmatmul.bf16.gmra.mxu0 %v942
      %v1806 = vpop.f32.mrf.mxu0
      %v1807 = vadd.f32 %v1758, %v1806
      %v1808 = vpop.f32.mrf.mxu0
      %v1809 = vadd.f32 %v1760, %v1808
      %1810 = vmatmul.bf16.gmra.mxu0 %v943
      %v1811 = vpop.f32.mrf.mxu0
      %v1812 = vadd.f32 %v1763, %v1811
      %v1813 = vpop.f32.mrf.mxu0
      %v1814 = vadd.f32 %v1765, %v1813
      %1815 = vmatmul.bf16.gmra.mxu0 %v944
      %v1816 = vpop.f32.mrf.mxu0
      %v1817 = vadd.f32 %v1768, %v1816
      %v1818 = vpop.f32.mrf.mxu0
      %v1819 = vadd.f32 %v1770, %v1818
      %1820 = vmatmul.bf16.gmra.mxu0 %v945
      %v1821 = vpop.f32.mrf.mxu0
      %v1822 = vadd.f32 %v1773, %v1821
      %v1823 = vpop.f32.mrf.mxu0
      %v1824 = vadd.f32 %v1775, %v1823
      %1825 = vmatmul.bf16.gmra.mxu0 %v992
      %v1826 = vpop.f32.mrf.mxu0
      %v1827 = vadd.f32 %v1778, %v1826
      %v1828 = vpop.f32.mrf.mxu0
      %v1829 = vadd.f32 %v1780, %v1828
      %1830 = vdwg.mxu0
      %1831 = vmatpush.bf16.msra.mxu0 %v1489
      %1832 = vmatpush.bf16.msra.mxu0 %v1488
      %1833 = vmatpush.bf16.msra.mxu0 %v1487
      %1834 = vmatpush.bf16.msra.mxu0 %v1486
      %1835 = vmatpush.bf16.msra.mxu0 %v1485
      %1836 = vmatpush.bf16.msra.mxu0 %v1484
      %1837 = vmatpush.bf16.msra.mxu0 %v1483
      %1838 = vmatpush.bf16.msra.mxu0 %v1482
      %1839 = vmatmul.bf16.gmra.mxu0 %v971
      %v1840 = vpop.f32.mrf.mxu0
      %v1841 = vadd.f32 %v1792, %v1840
      %v1842 = vpop.f32.mrf.mxu0
      %v1843 = vadd.f32 %v1794, %v1842
      %1844 = vmatmul.bf16.gmra.mxu0 %v972
      %v1845 = vpop.f32.mrf.mxu0
      %v1846 = vadd.f32 %v1797, %v1845
      %v1847 = vpop.f32.mrf.mxu0
      %v1848 = vadd.f32 %v1799, %v1847
      %1849 = vmatmul.bf16.gmra.mxu0 %v973
      %v1850 = vpop.f32.mrf.mxu0
      %v1851 = vadd.f32 %v1802, %v1850
      %v1852 = vpop.f32.mrf.mxu0
      %v1853 = vadd.f32 %v1804, %v1852
      %1854 = vmatmul.bf16.gmra.mxu0 %v974
      %v1855 = vpop.f32.mrf.mxu0
      %v1856 = vadd.f32 %v1807, %v1855
      %v1857 = vpop.f32.mrf.mxu0
      %v1858 = vadd.f32 %v1809, %v1857
      %1859 = vmatmul.bf16.gmra.mxu0 %v975
      %v1860 = vpop.f32.mrf.mxu0
      %v1861 = vadd.f32 %v1812, %v1860
      %v1862 = vpop.f32.mrf.mxu0
      %v1863 = vadd.f32 %v1814, %v1862
      %1864 = vmatmul.bf16.gmra.mxu0 %v976
      %v1865 = vpop.f32.mrf.mxu0
      %v1866 = vadd.f32 %v1817, %v1865
      %v1867 = vpop.f32.mrf.mxu0
      %v1868 = vadd.f32 %v1819, %v1867
      %1869 = vmatmul.bf16.gmra.mxu0 %v977
      %v1870 = vpop.f32.mrf.mxu0
      %v1871 = vadd.f32 %v1822, %v1870
      %v1872 = vpop.f32.mrf.mxu0
      %v1873 = vadd.f32 %v1824, %v1872
      %1874 = vmatmul.bf16.gmra.mxu0 %v996
      %v1875 = vpop.f32.mrf.mxu0
      %v1876 = vadd.f32 %v1827, %v1875
      %v1877 = vpop.f32.mrf.mxu0
      %v1878 = vadd.f32 %v1829, %v1877
      %1879 = vdwg.mxu0
      %1880 = vmatpush.bf16.msra.mxu0 %v1497
      %1881 = vmatpush.bf16.msra.mxu0 %v1496
      %1882 = vmatpush.bf16.msra.mxu0 %v1495
      %1883 = vmatpush.bf16.msra.mxu0 %v1494
      %1884 = vmatpush.bf16.msra.mxu0 %v1493
      %1885 = vmatpush.bf16.msra.mxu0 %v1492
      %1886 = vmatpush.bf16.msra.mxu0 %v1491
      %1887 = vmatpush.bf16.msra.mxu0 %v1490
      %1888 = vmatmul.bf16.gmra.mxu0 %v908
      %v1889 = vpop.f32.mrf.mxu0
      %v1890 = vadd.f32 %v1841, %v1889
      %v1891 = vpop.f32.mrf.mxu0
      %v1892 = vadd.f32 %v1843, %v1891
      %1893 = vmatmul.bf16.gmra.mxu0 %v909
      %v1894 = vpop.f32.mrf.mxu0
      %v1895 = vadd.f32 %v1846, %v1894
      %v1896 = vpop.f32.mrf.mxu0
      %v1897 = vadd.f32 %v1848, %v1896
      %1898 = vmatmul.bf16.gmra.mxu0 %v910
      %v1899 = vpop.f32.mrf.mxu0
      %v1900 = vadd.f32 %v1851, %v1899
      %v1901 = vpop.f32.mrf.mxu0
      %v1902 = vadd.f32 %v1853, %v1901
      %1903 = vmatmul.bf16.gmra.mxu0 %v911
      %v1904 = vpop.f32.mrf.mxu0
      %v1905 = vadd.f32 %v1856, %v1904
      %v1906 = vpop.f32.mrf.mxu0
      %v1907 = vadd.f32 %v1858, %v1906
      %1908 = vmatmul.bf16.gmra.mxu0 %v912
      %v1909 = vpop.f32.mrf.mxu0
      %v1910 = vadd.f32 %v1861, %v1909
      %v1911 = vpop.f32.mrf.mxu0
      %v1912 = vadd.f32 %v1863, %v1911
      %1913 = vmatmul.bf16.gmra.mxu0 %v913
      %v1914 = vpop.f32.mrf.mxu0
      %v1915 = vadd.f32 %v1866, %v1914
      %v1916 = vpop.f32.mrf.mxu0
      %v1917 = vadd.f32 %v1868, %v1916
      %1918 = vmatmul.bf16.gmra.mxu0 %v988
      %v1919 = vpop.f32.mrf.mxu0
      %v1920 = vadd.f32 %v1871, %v1919
      %v1921 = vpop.f32.mrf.mxu0
      %v1922 = vadd.f32 %v1873, %v1921
      %1923 = vmatmul.bf16.gmra.mxu0 %v1000
      %v1924 = vpop.f32.mrf.mxu0
      %v1925 = vadd.f32 %v1876, %v1924
      %v1926 = vpop.f32.mrf.mxu0
      %v1927 = vadd.f32 %v1878, %v1926
      %1928 = vdwg.mxu0
      %1929 = vmatpush.bf16.msra.mxu0 %v1505
      %1930 = vmatpush.bf16.msra.mxu0 %v1504
      %1931 = vmatpush.bf16.msra.mxu0 %v1503
      %1932 = vmatpush.bf16.msra.mxu0 %v1502
      %1933 = vmatpush.bf16.msra.mxu0 %v1501
      %1934 = vmatpush.bf16.msra.mxu0 %v1500
      %1935 = vmatpush.bf16.msra.mxu0 %v1499
      %1936 = vmatpush.bf16.msra.mxu0 %v1498
      %1937 = vmatmul.bf16.gmra.mxu0 %v940
      %v1938 = vpop.f32.mrf.mxu0
      %v1939 = vadd.f32 %v1890, %v1938
      %v1940 = vpop.f32.mrf.mxu0
      %v1941 = vadd.f32 %v1892, %v1940
      %1942 = vmatmul.bf16.gmra.mxu0 %v941
      %v1943 = vpop.f32.mrf.mxu0
      %v1944 = vadd.f32 %v1895, %v1943
      %v1945 = vpop.f32.mrf.mxu0
      %v1946 = vadd.f32 %v1897, %v1945
      %1947 = vmatmul.bf16.gmra.mxu0 %v942
      %v1948 = vpop.f32.mrf.mxu0
      %v1949 = vadd.f32 %v1900, %v1948
      %v1950 = vpop.f32.mrf.mxu0
      %v1951 = vadd.f32 %v1902, %v1950
      %1952 = vmatmul.bf16.gmra.mxu0 %v943
      %v1953 = vpop.f32.mrf.mxu0
      %v1954 = vadd.f32 %v1905, %v1953
      %v1955 = vpop.f32.mrf.mxu0
      %v1956 = vadd.f32 %v1907, %v1955
      %1957 = vmatmul.bf16.gmra.mxu0 %v944
      %v1958 = vpop.f32.mrf.mxu0
      %v1959 = vadd.f32 %v1910, %v1958
      %v1960 = vpop.f32.mrf.mxu0
      %v1961 = vadd.f32 %v1912, %v1960
      %1962 = vmatmul.bf16.gmra.mxu0 %v945
      %v1963 = vpop.f32.mrf.mxu0
      %v1964 = vadd.f32 %v1915, %v1963
      %v1965 = vpop.f32.mrf.mxu0
      %v1966 = vadd.f32 %v1917, %v1965
      %1967 = vmatmul.bf16.gmra.mxu0 %v992
      %v1968 = vpop.f32.mrf.mxu0
      %v1969 = vadd.f32 %v1920, %v1968
      %v1970 = vpop.f32.mrf.mxu0
      %v1971 = vadd.f32 %v1922, %v1970
      %1972 = vmatmul.bf16.gmra.mxu0 %v1004
      %v1973 = vpop.f32.mrf.mxu0
      %v1974 = vadd.f32 %v1925, %v1973
      %v1975 = vpop.f32.mrf.mxu0
      %v1976 = vadd.f32 %v1927, %v1975
      %1977 = vdwg.mxu0
      %1978 = vmatpush.bf16.msra.mxu0 %v1513
      %1979 = vmatpush.bf16.msra.mxu0 %v1512
      %1980 = vmatpush.bf16.msra.mxu0 %v1511
      %1981 = vmatpush.bf16.msra.mxu0 %v1510
      %1982 = vmatpush.bf16.msra.mxu0 %v1509
      %1983 = vmatpush.bf16.msra.mxu0 %v1508
      %1984 = vmatpush.bf16.msra.mxu0 %v1507
      %1985 = vmatpush.bf16.msra.mxu0 %v1506
      %1986 = vmatmul.bf16.gmra.mxu0 %v972
      %v1987 = vpop.f32.mrf.mxu0
      %v1988 = vadd.f32 %v1939, %v1987
      %v1989 = vpop.f32.mrf.mxu0
      %v1990 = vadd.f32 %v1941, %v1989
      %1991 = vmatmul.bf16.gmra.mxu0 %v973
      %v1992 = vpop.f32.mrf.mxu0
      %v1993 = vadd.f32 %v1944, %v1992
      %v1994 = vpop.f32.mrf.mxu0
      %v1995 = vadd.f32 %v1946, %v1994
      %1996 = vmatmul.bf16.gmra.mxu0 %v974
      %v1997 = vpop.f32.mrf.mxu0
      %v1998 = vadd.f32 %v1949, %v1997
      %v1999 = vpop.f32.mrf.mxu0
      %v2000 = vadd.f32 %v1951, %v1999
      %2001 = vmatmul.bf16.gmra.mxu0 %v975
      %v2002 = vpop.f32.mrf.mxu0
      %v2003 = vadd.f32 %v1954, %v2002
      %v2004 = vpop.f32.mrf.mxu0
      %v2005 = vadd.f32 %v1956, %v2004
      %2006 = vmatmul.bf16.gmra.mxu0 %v976
      %v2007 = vpop.f32.mrf.mxu0
      %v2008 = vadd.f32 %v1959, %v2007
      %v2009 = vpop.f32.mrf.mxu0
      %v2010 = vadd.f32 %v1961, %v2009
      %2011 = vmatmul.bf16.gmra.mxu0 %v977
      %v2012 = vpop.f32.mrf.mxu0
      %v2013 = vadd.f32 %v1964, %v2012
      %v2014 = vpop.f32.mrf.mxu0
      %v2015 = vadd.f32 %v1966, %v2014
      %2016 = vmatmul.bf16.gmra.mxu0 %v996
      %v2017 = vpop.f32.mrf.mxu0
      %v2018 = vadd.f32 %v1969, %v2017
      %v2019 = vpop.f32.mrf.mxu0
      %v2020 = vadd.f32 %v1971, %v2019
      %2021 = vmatmul.bf16.gmra.mxu0 %v1008
      %v2022 = vpop.f32.mrf.mxu0
      %v2023 = vadd.f32 %v1974, %v2022
      %v2024 = vpop.f32.mrf.mxu0
      %v2025 = vadd.f32 %v1976, %v2024
      %2026 = vdwg.mxu0
      %v2027 = vadd.f32 %v1988, %v1990
      %v2028 = vadd.f32 %v2027, %v1993
      %v2029 = vadd.f32 %v2028, %v1995
      %v2030 = vadd.f32 %v2029, %v1998
      %v2031 = vadd.f32 %v2030, %v2000
      %v2032 = vadd.f32 %v2031, %v2003
      %v2033 = vadd.f32 %v2032, %v2005
      %v2034 = vadd.f32 %v2033, %v2008
      %v2035 = vadd.f32 %v2034, %v2010
      %v2036 = vadd.f32 %v2035, %v2013
      %v2037 = vadd.f32 %v2036, %v2015
      %v2038 = vadd.f32 %v2037, %v2018
      %v2039 = vadd.f32 %v2038, %v2020
      %v2040 = vadd.f32 %v2039, %v2023
      %v2041 = vadd.f32 %v2040, %v2025
      %v2042 = vrot.slane %v2041, 4
      %v2043 = vadd.f32 %v2041, %v2042
      %v2044 = vrot.slane %v2043, 2
      %v2045 = vadd.f32 %v2043, %v2044
      %v2046 = vrot.slane %v2045, 1
      %v2047 = vadd.f32 %v2045, %v2046
      %v2048 = vmul.f32 %v1988, %v1988
      %v2049 = vmul.f32 %v1990, %v1990
      %v2050 = vmul.f32 %v1993, %v1993
      %v2051 = vmul.f32 %v1995, %v1995
      %v2052 = vmul.f32 %v1998, %v1998
      %v2053 = vmul.f32 %v2000, %v2000
      %v2054 = vmul.f32 %v2003, %v2003
      %v2055 = vmul.f32 %v2005, %v2005
      %v2056 = vmul.f32 %v2008, %v2008
      %v2057 = vmul.f32 %v2010, %v2010
      %v2058 = vmul.f32 %v2013, %v2013
      %v2059 = vmul.f32 %v2015, %v2015
      %v2060 = vmul.f32 %v2018, %v2018
      %v2061 = vmul.f32 %v2020, %v2020
      %v2062 = vmul.f32 %v2023, %v2023
      %v2063 = vmul.f32 %v2025, %v2025
      %v2064 = vadd.f32 %v2048, %v2049
      %v2065 = vadd.f32 %v2064, %v2050
      %v2066 = vadd.f32 %v2065, %v2051
      %v2067 = vadd.f32 %v2066, %v2052
      %v2068 = vadd.f32 %v2067, %v2053
      %v2069 = vadd.f32 %v2068, %v2054
      %v2070 = vadd.f32 %v2069, %v2055
      %v2071 = vadd.f32 %v2070, %v2056
      %v2072 = vadd.f32 %v2071, %v2057
      %v2073 = vadd.f32 %v2072, %v2058
      %v2074 = vadd.f32 %v2073, %v2059
      %v2075 = vadd.f32 %v2074, %v2060
      %v2076 = vadd.f32 %v2075, %v2061
      %v2077 = vadd.f32 %v2076, %v2062
      %v2078 = vadd.f32 %v2077, %v2063
      %v2079 = vrot.slane %v2078, 4
      %v2080 = vadd.f32 %v2078, %v2079
      %v2081 = vrot.slane %v2080, 2
      %v2082 = vadd.f32 %v2080, %v2081
      %v2083 = vrot.slane %v2082, 1
      %v2084 = vadd.f32 %v2082, %v2083
      %vm2085 = vcmask 1040384
      %v2086 = vsel %vm2085, %v2047, %v2084
      %2087 = vst [vmem:[%s222] sm:$0x3] %v2086
      %v2104 = vrot.slane %v1988, 7
      %v2105 = vrot.slane %v1990, 7
      %v2106 = vsel %vm2085, %v2104, %v2105
      %v2107 = vrot.slane %v1993, 7
      %v2108 = vrot.slane %v1995, 7
      %v2109 = vsel %vm2085, %v2107, %v2108
      %v2110 = vrot.slane %v1998, 7
      %v2111 = vrot.slane %v2000, 7
      %v2112 = vsel %vm2085, %v2110, %v2111
      %v2113 = vrot.slane %v2003, 7
      %v2114 = vrot.slane %v2005, 7
      %v2115 = vsel %vm2085, %v2113, %v2114
      %v2116 = vrot.slane %v2008, 7
      %v2117 = vrot.slane %v2010, 7
      %v2118 = vsel %vm2085, %v2116, %v2117
      %v2119 = vrot.slane %v2013, 7
      %v2120 = vrot.slane %v2015, 7
      %v2121 = vsel %vm2085, %v2119, %v2120
      %v2122 = vrot.slane %v2018, 7
      %v2123 = vrot.slane %v2020, 7
      %v2124 = vsel %vm2085, %v2122, %v2123
      %v2125 = vrot.slane %v2023, 7
      %v2126 = vrot.slane %v2025, 7
      %v2127 = vsel %vm2085, %v2125, %v2126
      %v2152 = vsel %vm2085, 0.0, %v2104
      %v2153 = vsel %vm2085, 0.0, %v2107
      %v2154 = vsel %vm2085, 0.0, %v2110
      %v2155 = vsel %vm2085, 0.0, %v2113
      %v2156 = vsel %vm2085, 0.0, %v2116
      %v2157 = vsel %vm2085, 0.0, %v2119
      %v2158 = vsel %vm2085, 0.0, %v2122
      %v2159 = vsel %vm2085, 0.0, %v2125
      %v2160 = vsel %vm2085, %v2105, 0.0
      %v2161 = vsel %vm2085, %v2108, 0.0
      %v2162 = vsel %vm2085, %v2111, 0.0
      %v2163 = vsel %vm2085, %v2114, 0.0
      %v2164 = vsel %vm2085, %v2117, 0.0
      %v2165 = vsel %vm2085, %v2120, 0.0
      %v2166 = vsel %vm2085, %v2123, 0.0
      %v2167 = vsel %vm2085, %v2126, 0.0
      %2168 = vst [vmem:[%s215] sm:$0xff] %v2152
      %2169 = vst [vmem:[%s215 + $0x8] sm:$0xff] %v2106
      %2170 = vst [vmem:[%s215 + $0x10] sm:$0x3] %v2160
      %2171 = vst [vmem:[%s215 + $0x18] sm:$0xff] %v2153
      %2172 = vst [vmem:[%s215 + $0x20] sm:$0xff] %v2109
      %2173 = vst [vmem:[%s215 + $0x28] sm:$0x3] %v2161
      %2174 = vst [vmem:[%s215 + $0x30] sm:$0xff] %v2154
      %2175 = vst [vmem:[%s215 + $0x38] sm:$0xff] %v2112
      %2176 = vst [vmem:[%s215 + $0x40] sm:$0x3] %v2162
      %2177 = vst [vmem:[%s215 + $0x48] sm:$0xff] %v2155
      %2178 = vst [vmem:[%s215 + $0x50] sm:$0xff] %v2115
      %2179 = vst [vmem:[%s215 + $0x58] sm:$0x3] %v2163
      %2180 = vst [vmem:[%s215 + $0x60] sm:$0xff] %v2156
      %2181 = vst [vmem:[%s215 + $0x68] sm:$0xff] %v2118
      %2182 = vst [vmem:[%s215 + $0x70] sm:$0x3] %v2164
      %2183 = vst [vmem:[%s215 + $0x78] sm:$0xff] %v2157
      %2184 = vst [vmem:[%s215 + $0x80] sm:$0xff] %v2121
      %2185 = vst [vmem:[%s215 + $0x88] sm:$0x3] %v2165
      %2186 = vst [vmem:[%s215 + $0x90] sm:$0xff] %v2158
      %2187 = vst [vmem:[%s215 + $0x98] sm:$0xff] %v2124
      %2188 = vst [vmem:[%s215 + $0xa0] sm:$0x3] %v2166
      %2189 = vst [vmem:[%s215 + $0xa8] sm:$0xff] %v2159
      %2190 = vst [vmem:[%s215 + $0xb0] sm:$0xff] %v2127
      %2191 = vst [vmem:[%s215 + $0xb8] sm:$0x3] %v2167
      %s2192 = smul.u32 8, %s22
      %p2193 = scmp.lt.s32.totalorder %s21, 1
      %s2194 = scalar_select %p2193, %s21, 1
      %p2195 = scmp.lt.s32.totalorder %s2192, 15
      %s2196 = scalar_select %p2195, %s2192, 15
      %s2197 = smul.addr %s2196, 3
      %s2198 = smul.addr %s2194, 48
      %s2199 = sadd.s32 %s2197, %s2198
      %s2200 = smul.addr %s2199, 8
      %s2201 = scalar_lea.vmem %s4, %s2200
      %s2202 = smul.u32 %s21, 2
      %s2203 = sadd.s32 %s2202, %s22
      %p2204 = scmp.lt.s32.totalorder %s2203, 3
      %s2205 = scalar_select %p2204, %s2203, 3
      %s2206 = smul.addr %s2205, 2
      %s2207 = scalar_lea.vmem %s5, %s2206
      // Predicated region
      $region99: #{double_conv_forward.3} parent=31 // pred_check
        %p2208 = pneg %p112
      $region100: #{double_conv_forward.3} parent=31 // pred_check_branch
        %2210 = sbr.rel (%p2208) target = $region102
      $region101: #{double_conv_forward.3} parent=31 // pred_region
        %s2211 = smul.u32 8, %s22
      $region102: #{double_conv_forward.3} parent=31 // pred_fallthru
        _
      // Predicated region
      $region103: #{double_conv_forward.3} parent=31 // pred_check
        %p2212 = pneg %p142
      $region104: #{double_conv_forward.3} parent=31 // pred_check_branch
        %2214 = sbr.rel (%p2212) target = $region106
      $region105: #{double_conv_forward.3} parent=31 // pred_region
        %s2215 = smul.u32 %s21, 2
        %s2216 = sadd.s32 %s2215, %s22
      $region106: #{double_conv_forward.3} parent=31 // pred_fallthru
        _
    $region32: #{double_conv_forward.3} parent=5 // pred_fallthru
      _
    %p2217 = scmp.le.s32.totalorder 2, %s12
    // Predicated region
    $region107: #{double_conv_forward.3} parent=5 // pred_check
      %p2218 = pneg %p2217
    $region108: #{double_conv_forward.3} parent=5 // pred_check_branch
      %2220 = sbr.rel (%p2218) target = $region110
    $region109: #{double_conv_forward.3} parent=5 // pred_region
      %s2221 = ssub.s32 %s12, 2
      // Predicated region
      $region111: #{double_conv_forward.3} parent=109 // pred_check
        %p2222 = pneg %p118
      $region112: #{double_conv_forward.3} parent=109 // pred_check_branch
        %2224 = sbr.rel (%p2222) target = $region114
      $region113: #{double_conv_forward.3} parent=109 // pred_region
        %s2225 = smul.u32 8, %s24
        %p2226 = scmp.lt.s32.totalorder %s23, 1
        %s2227 = scalar_select %p2226, %s23, 1
        %p2228 = scmp.lt.s32.totalorder %s2225, 15
        %s2229 = scalar_select %p2228, %s2225, 15
        %s2230 = smul.addr %s2229, 3
        %s2231 = smul.addr %s2227, 48
        %s2232 = sadd.s32 %s2230, %s2231
        %s2233 = smul.addr %s2232, 8
        %s2234 = scalar_lea.vmem %s4, %s2233
      $region114: #{double_conv_forward.3} parent=109 // pred_fallthru
        _
      // Predicated region
      $region115: #{double_conv_forward.3} parent=109 // pred_check
        %p2235 = pneg %p148
      $region116: #{double_conv_forward.3} parent=109 // pred_check_branch
        %2237 = sbr.rel (%p2235) target = $region118
      $region117: #{double_conv_forward.3} parent=109 // pred_region
        %s2238 = smul.u32 %s23, 2
        %s2239 = sadd.s32 %s2238, %s24
        %p2240 = scmp.lt.s32.totalorder %s2239, 3
        %s2241 = scalar_select %p2240, %s2239, 3
        %s2242 = smul.addr %s2241, 2
        %s2243 = scalar_lea.vmem %s5, %s2242
      $region118: #{double_conv_forward.3} parent=109 // pred_fallthru
        _
    $region110: #{double_conv_forward.3} parent=5 // pred_fallthru
      _
  $region6: #{double_conv_forward.3} parent=0 // loop_footer
    %s16 = sadd.s32 1, %s12
  $region7: #{double_conv_forward.3} parent=0 // loop_footer_branch
    %11 = sbr.rel target = $region3
  $region8: #{double_conv_forward.3} parent=0 // loop_exit
    _
  %2244 = vsyncmov [#allocation3]
  %s2245 = vpop.sfrf %2244
  %p2246 = scmp.eq.s32.totalorder %s2245, 0
  %p2247 = pneg %p2246
  %2249 = shalt.err (%p2247)
  %s2250 = scalar_lea.sflag [#allocation3], 1
  %2251 = vsyncmov %s2250
  %s2252 = vpop.sfrf %2251
  %p2253 = scmp.eq.s32.totalorder %s2252, 0
  %p2254 = pneg %p2253
  %2256 = shalt.err (%p2254)
  %s2257 = scalar_lea.sflag [#allocation3], 2
  %2258 = vsyncmov %s2257
  %s2259 = vpop.sfrf %2258
  %p2260 = scmp.eq.s32.totalorder %s2259, 0
  %p2261 = pneg %p2260
  %2263 = shalt.err (%p2261)

// kernel: double_conv_forward.4
$region0: #{double_conv_forward.4}
  #allocation0 [shape = 'u32[]', space=smem, size = 0x4, offset = 0x4, fixed_abs, tag = 'smem constant byte address 0x4 - core index']
  #allocation1 [shape = 'u32[72,128]{1,0:T(1,128)}', space=vmem, size = 0x9000, scoped, tag = 'internal scratch']
  #allocation2 [shape = 'f32[10,18,128]{2,1,0:T(8,128)}', space=vmem, size = 0x1e000, scoped, tag = 'scratch operand']
  #allocation3 [shape = 's32[3]{0}', space=sflag, size = 0xc, scoped, tag = 'scratch operand']
  #allocation4 [shape = 's32[]', space=sflag, size = 0x4, offset = 0, fixed_abs, tag = 'sflag constant byte address 0x0 - dummy sync flag']
  #allocation5 [shape = 's32[]', space=sflag, size = 0x4, offset = 0, fixed_abs, tag = 'sflag constant byte address 0x0 - dummy sync flag']
  #allocation6 [shape = 's32[]', space=sflag, size = 0x4, offset = 0, fixed_abs, tag = 'sflag constant byte address 0x0 - dummy sync flag']
  %s0 = inlined_call_operand.vmem [shape: f32[2,16,18,128], index: 0, kind: input, shape index: {}]
  %s1 = inlined_call_operand.vmem [shape: bf16[1152,128], index: 1, kind: input, shape index: {}]
  %s2 = inlined_call_operand.vmem [shape: f32[1,18,128], index: 2, kind: input, shape index: {}]
  %s3 = inlined_call_operand.vmem [shape: f32[1,18,128], index: 3, kind: input, shape index: {}]
  %s4 = inlined_call_operand.vmem [shape: f32[2,16,18,128], index: 4, kind: output, shape index: {0}]
  %s5 = inlined_call_operand.vmem [shape: f32[4,2,128], index: 5, kind: output, shape index: {1}]
  %6 = xla_tuple %s4, %s5
  %s7 = sld [smem:[#allocation0]]
  $region119: #{double_conv_forward.4} parent=0
    _
  %s9 = ssub.s32 1, %s7
  %s10 = scalar_select 0, %s9, %s7
  loop: start=0, step=1, limit=6
  $region2: #{double_conv_forward.4} parent=0 // loop_pre_header
    _
  $region3: #{double_conv_forward.4} parent=0 // loop_header
    %s12 = sphi 0, %s16
    %p13 = scmp.ge.s32.totalorder %s12, 6
    %s19 = sphi 0, %s31
    %s20 = sphi 0, %s27
    %s21 = sphi 0, %s19
    %s22 = sphi 0, %s20
    %s23 = sphi 0, %s21
    %s24 = sphi 0, %s22
    %s32 = sphi 0, %s32
    %s34 = sphi 0, %s32
    %s35 = sphi 0, %s34
    %s49 = sphi 0, %s35
    %s53 = sphi 0, %s53
    %s55 = sphi 0, %s53
    %s56 = sphi 0, %s55
    %s70 = sphi 0, %s56
    %s74 = sphi 0, %s74
    %s76 = sphi 0, %s74
    %s77 = sphi 0, %s76
    %s91 = sphi 0, %s77
    %s99 = sphi 0, %s101
    %s102 = sphi 0, %s99
    %s103 = sphi 0, %s102
    %s119 = sphi 0, %s103
    %s129 = sphi 0, %s131
    %s132 = sphi 0, %s129
    %s133 = sphi 0, %s132
    %s149 = sphi 0, %s133
  $region4: #{double_conv_forward.4} parent=0 // loop_header_branch
    %15 = sbr.rel (%p13) target = $region8
  $region5: #{double_conv_forward.4} parent=0 // loop_body
    %s17 = ssub.s32 %s12, 1
    %s18 = ssub.s32 %s12, 2
    %s25 = sadd.s32 1, %s20
    %p26 = scmp.ge.s32.totalorder %s25, 2
    %s27 = scalar_select %p26, 0, %s25
    %s28 = sadd.s32 1, %s19
    %s29 = scalar_select %p26, %s28, %s19
    %p30 = scmp.ge.s32.totalorder %s29, 2
    %s31 = scalar_select %p30, 0, %s29
    %s33 = sadd.s32 %s32, 1
    %p36 = scmp.eq.s32.totalorder %s12, 3
    %p37 = scmp.ne.s32.totalorder %s32, %s34
    %p38 = scmp.eq.s32.totalorder %s12, 0
    %p39 = por %p37, %p38
    %p40 = scmp.ne.s32.totalorder %s32, %s34
    %p41 = scmp.eq.s32.totalorder %s17, 3
    %p42 = por %p40, %p41
    %p43 = scmp.ne.s32.totalorder %s34, %s35
    %p44 = scmp.eq.s32.totalorder %s17, 0
    %p45 = por %p43, %p44
    %p46 = scmp.ne.s32.totalorder %s34, %s35
    %p47 = scmp.eq.s32.totalorder %s18, 3
    %p48 = por %p46, %p47
    %p50 = scmp.ne.s32.totalorder %s35, %s49
    %p51 = scmp.eq.s32.totalorder %s18, 0
    %p52 = por %p50, %p51
    %s54 = sadd.s32 %s53, 1
    %p57 = scmp.eq.s32.totalorder %s12, 3
    %p58 = scmp.ne.s32.totalorder %s53, %s55
    %p59 = scmp.eq.s32.totalorder %s12, 0
    %p60 = por %p58, %p59
    %p61 = scmp.ne.s32.totalorder %s53, %s55
    %p62 = scmp.eq.s32.totalorder %s17, 3
    %p63 = por %p61, %p62
    %p64 = scmp.ne.s32.totalorder %s55, %s56
    %p65 = scmp.eq.s32.totalorder %s17, 0
    %p66 = por %p64, %p65
    %p67 = scmp.ne.s32.totalorder %s55, %s56
    %p68 = scmp.eq.s32.totalorder %s18, 3
    %p69 = por %p67, %p68
    %p71 = scmp.ne.s32.totalorder %s56, %s70
    %p72 = scmp.eq.s32.totalorder %s18, 0
    %p73 = por %p71, %p72
    %s75 = sadd.s32 %s74, 1
    %p78 = scmp.eq.s32.totalorder %s12, 3
    %p79 = scmp.ne.s32.totalorder %s74, %s76
    %p80 = scmp.eq.s32.totalorder %s12, 0
    %p81 = por %p79, %p80
    %p82 = scmp.ne.s32.totalorder %s74, %s76
    %p83 = scmp.eq.s32.totalorder %s17, 3
    %p84 = por %p82, %p83
    %p85 = scmp.ne.s32.totalorder %s76, %s77
    %p86 = scmp.eq.s32.totalorder %s17, 0
    %p87 = por %p85, %p86
    %p88 = scmp.ne.s32.totalorder %s76, %s77
    %p89 = scmp.eq.s32.totalorder %s18, 3
    %p90 = por %p88, %p89
    %p92 = scmp.ne.s32.totalorder %s77, %s91
    %p93 = scmp.eq.s32.totalorder %s18, 0
    %p94 = por %p92, %p93
    %s95 = ssub.s32 %s19, %s31
    %s96 = ssub.s32 %s20, %s27
    %s97 = sor.u32 %s95, %s96
    %p98 = scmp.eq.s32.totalorder %s97, 0
    %s100 = sadd.s32 %s99, 1
    %s101 = scalar_select %p98, %s99, %s100
    %p104 = pneg %p98
    %p105 = scmp.eq.s32.totalorder %s12, 3
    %p106 = por %p104, %p105
    %p107 = scmp.ne.s32.totalorder %s99, %s102
    %p108 = scmp.eq.s32.totalorder %s12, 0
    %p109 = por %p107, %p108
    %p110 = scmp.ne.s32.totalorder %s99, %s102
    %p111 = scmp.eq.s32.totalorder %s17, 3
    %p112 = por %p110, %p111
    %p113 = scmp.ne.s32.totalorder %s102, %s103
    %p114 = scmp.eq.s32.totalorder %s17, 0
    %p115 = por %p113, %p114
    %p116 = scmp.ne.s32.totalorder %s102, %s103
    %p117 = scmp.eq.s32.totalorder %s18, 3
    %p118 = por %p116, %p117
    %p120 = scmp.ne.s32.totalorder %s103, %s119
    %p121 = scmp.eq.s32.totalorder %s18, 0
    %p122 = por %p120, %p121
    %s123 = smul.u32 %s19, 2
    %s124 = sadd.s32 %s123, %s20
    %s125 = smul.u32 %s31, 2
    %s126 = sadd.s32 %s125, %s27
    %s127 = ssub.s32 %s124, %s126
    %p128 = scmp.eq.s32.totalorder %s127, 0
    %s130 = sadd.s32 %s129, 1
    %s131 = scalar_select %p128, %s129, %s130
    %p134 = pneg %p128
    %p135 = scmp.eq.s32.totalorder %s12, 3
    %p136 = por %p134, %p135
    %p137 = scmp.ne.s32.totalorder %s129, %s132
    %p138 = scmp.eq.s32.totalorder %s12, 0
    %p139 = por %p137, %p138
    %p140 = scmp.ne.s32.totalorder %s129, %s132
    %p141 = scmp.eq.s32.totalorder %s17, 3
    %p142 = por %p140, %p141
    %p143 = scmp.ne.s32.totalorder %s132, %s133
    %p144 = scmp.eq.s32.totalorder %s17, 0
    %p145 = por %p143, %p144
    %p146 = scmp.ne.s32.totalorder %s132, %s133
    %p147 = scmp.eq.s32.totalorder %s18, 3
    %p148 = por %p146, %p147
    %p150 = scmp.ne.s32.totalorder %s133, %s149
    %p151 = scmp.eq.s32.totalorder %s18, 0
    %p152 = por %p150, %p151
    %p153 = scmp.le.s32.totalorder 1, %s12
    %p154 = scmp.lt.s32.totalorder %s12, 5
    %p155 = pnand %p153, %p154
    %p156 = pneg %p155
    // Predicated region
    $region9: #{double_conv_forward.4} parent=5 // pred_check
      _
    $region10: #{double_conv_forward.4} parent=5 // pred_check_branch
      %158 = sbr.rel (%p155) target = $region12
    $region11: #{double_conv_forward.4} parent=5 // pred_region
      %s159 = ssub.s32 %s12, 1
      // Predicated region
      $region13: #{double_conv_forward.4} parent=11 // pred_check
        %p160 = pneg %p45
      $region14: #{double_conv_forward.4} parent=11 // pred_check_branch
        %162 = sbr.rel (%p160) target = $region16
      $region15: #{double_conv_forward.4} parent=11 // pred_region
        _
      $region16: #{double_conv_forward.4} parent=11 // pred_fallthru
        _
      // Predicated region
      $region17: #{double_conv_forward.4} parent=11 // pred_check
        %p163 = pneg %p66
      $region18: #{double_conv_forward.4} parent=11 // pred_check_branch
        %165 = sbr.rel (%p163) target = $region20
      $region19: #{double_conv_forward.4} parent=11 // pred_region
        _
      $region20: #{double_conv_forward.4} parent=11 // pred_fallthru
        _
      // Predicated region
      $region21: #{double_conv_forward.4} parent=11 // pred_check
        %p166 = pneg %p87
      $region22: #{double_conv_forward.4} parent=11 // pred_check_branch
        %168 = sbr.rel (%p166) target = $region24
      $region23: #{double_conv_forward.4} parent=11 // pred_region
        _
      $region24: #{double_conv_forward.4} parent=11 // pred_fallthru
        _
    $region12: #{double_conv_forward.4} parent=5 // pred_fallthru
      _
    %p169 = scmp.lt.s32.totalorder %s12, 4
    // Predicated region
    $region25: #{double_conv_forward.4} parent=5 // pred_check
      %p170 = pneg %p169
    $region26: #{double_conv_forward.4} parent=5 // pred_check_branch
      %172 = sbr.rel (%p170) target = $region28
    $region27: #{double_conv_forward.4} parent=5 // pred_region
      _
    $region28: #{double_conv_forward.4} parent=5 // pred_fallthru
      _
    %p173 = scmp.le.s32.totalorder 1, %s12
    %p174 = scmp.lt.s32.totalorder %s12, 5
    %p175 = pnand %p173, %p174
    %p176 = pneg %p175
    // Predicated region
    $region29: #{double_conv_forward.4} parent=5 // pred_check
      _
    $region30: #{double_conv_forward.4} parent=5 // pred_check_branch
      %178 = sbr.rel (%p175) target = $region32
    $region31: #{double_conv_forward.4} parent=5 // pred_region
      %s179 = ssub.s32 %s12, 1
      %p180 = pneg %p45
      %p181 = pneg %p42
      %p182 = pneg %p66
      %p183 = pneg %p63
      %p184 = pneg %p87
      %p185 = pneg %p84
      %p186 = pneg %p115
      %p187 = pneg %p112
      %s188 = smul.u32 8, %s22
      %p189 = scmp.lt.s32.totalorder %s21, 1
      %s190 = scalar_select %p189, %s21, 1
      %p191 = scmp.lt.s32.totalorder %s188, 15
      %s192 = scalar_select %p191, %s188, 15
      %s193 = smul.addr %s192, 3
      %s194 = smul.addr %s190, 48
      %s195 = sadd.s32 %s193, %s194
      %s196 = smul.addr %s195, 8
      %s197 = scalar_lea.vmem %s4, %s196
      %p198 = pneg %p145
      %p199 = pneg %p142
      %s200 = smul.u32 %s21, 2
      %s201 = sadd.s32 %s200, %s22
      %p202 = scmp.lt.s32.totalorder %s201, 3
      %s203 = scalar_select %p202, %s201, 3
      %s204 = smul.addr %s203, 2
      %s205 = scalar_lea.vmem %s5, %s204
      %s206 = smul.u32 8, %s22
      %p207 = scmp.lt.s32.totalorder %s21, 1
      %s208 = scalar_select %p207, %s21, 1
      %p209 = scmp.lt.s32.totalorder %s206, 15
      %s210 = scalar_select %p209, %s206, 15
      %s211 = smul.addr %s210, 3
      %s212 = smul.addr %s208, 48
      %s213 = sadd.s32 %s211, %s212
      %s214 = smul.addr %s213, 8
      %s215 = scalar_lea.vmem %s4, %s214
      %s216 = smul.u32 8, %s22
      %s217 = smul.u32 %s21, 2
      %s218 = sadd.s32 %s217, %s22
      %p219 = scmp.lt.s32.totalorder %s218, 3
      %s220 = scalar_select %p219, %s218, 3
      %s221 = smul.addr %s220, 2
      %s222 = scalar_lea.vmem %s5, %s221
      %s223 = smul.u32 %s21, 2
      %s224 = sadd.s32 %s223, %s22
      %s225 = smul.u32 %s22, 8
      %s226 = ssub.s32 %s225, 1
      %p227 = scmp.gt.s32.totalorder %s226, 0
      %s228 = scalar_select %p227, %s226, 0
      %s229 = sadd.s32 %s225, 8
      %p230 = scmp.lt.s32.totalorder %s229, 15
      %s231 = scalar_select %p230, %s229, 15
      %s232 = smul.u32 %s225, 24
      %s233 = smul.u32 %s21, 384
      %s234 = sadd.s32 %s232, %s233
      %s235 = scalar_lea.vmem %s0, %s234
      %s236 = scalar_lea.vmem [#allocation2], 24
      // Predicated region
      $region33: #{double_conv_forward.4} parent=31 // pred_check
        _
      $region34: #{double_conv_forward.4} parent=31 // pred_check_branch
        %238 = sbr.rel (0) target = $region36
      $region35: #{double_conv_forward.4} parent=31 // pred_region
        %s239 = scalar_lea.vmem %s235, 16
        %s240 = scalar_lea.vmem %s236, 16 [#allocation2]
        loop: start=0, step=1, limit=1
        $region37: #{double_conv_forward.4} parent=35 // loop_pre_header
          _
        $region38: #{double_conv_forward.4} parent=35 // loop_header
          %s242 = sphi 0, %s246
          %p243 = scmp.ge.s32.totalorder %s242, 1
          %s247 = sphi %s235, %s235
          %s248 = sphi %s236, %s236
        $region39: #{double_conv_forward.4} parent=35 // loop_header_branch
          %245 = sbr.rel (%p243) target = $region43
        $region40: #{double_conv_forward.4} parent=35 // loop_body
          %v249 = vld [vmem:[%s247] sm:$0xff]
          %250 = vst [vmem:[%s248] sm:$0xff] %v249
          %v251 = vld [vmem:[%s247 + $0x8] sm:$0xff]
          %252 = vst [vmem:[%s248 + $0x8] sm:$0xff] %v251
          %v253 = vld [vmem:[%s247 + $0x18] sm:$0xff]
          %254 = vst [vmem:[%s248 + $0x18] sm:$0xff] %v253
          %v255 = vld [vmem:[%s247 + $0x20] sm:$0xff]
          %256 = vst [vmem:[%s248 + $0x20] sm:$0xff] %v255
          %v257 = vld [vmem:[%s247 + $0x30] sm:$0xff]
          %258 = vst [vmem:[%s248 + $0x30] sm:$0xff] %v257
          %v259 = vld [vmem:[%s247 + $0x38] sm:$0xff]
          %260 = vst [vmem:[%s248 + $0x38] sm:$0xff] %v259
          %v261 = vld [vmem:[%s247 + $0x48] sm:$0xff]
          %262 = vst [vmem:[%s248 + $0x48] sm:$0xff] %v261
          %v263 = vld [vmem:[%s247 + $0x50] sm:$0xff]
          %264 = vst [vmem:[%s248 + $0x50] sm:$0xff] %v263
          %v265 = vld [vmem:[%s247 + $0x60] sm:$0xff]
          %266 = vst [vmem:[%s248 + $0x60] sm:$0xff] %v265
          %v267 = vld [vmem:[%s247 + $0x68] sm:$0xff]
          %268 = vst [vmem:[%s248 + $0x68] sm:$0xff] %v267
          %v269 = vld [vmem:[%s247 + $0x78] sm:$0xff]
          %270 = vst [vmem:[%s248 + $0x78] sm:$0xff] %v269
          %v271 = vld [vmem:[%s247 + $0x80] sm:$0xff]
          %272 = vst [vmem:[%s248 + $0x80] sm:$0xff] %v271
          %v273 = vld [vmem:[%s247 + $0x90] sm:$0xff]
          %274 = vst [vmem:[%s248 + $0x90] sm:$0xff] %v273
          %v275 = vld [vmem:[%s247 + $0x98] sm:$0xff]
          %276 = vst [vmem:[%s248 + $0x98] sm:$0xff] %v275
          %v277 = vld [vmem:[%s247 + $0xa8] sm:$0xff]
          %278 = vst [vmem:[%s248 + $0xa8] sm:$0xff] %v277
          %v279 = vld [vmem:[%s247 + $0xb0] sm:$0xff]
          %280 = vst [vmem:[%s248 + $0xb0] sm:$0xff] %v279
        $region41: #{double_conv_forward.4} parent=35 // loop_footer
          %s246 = sadd.s32 1, %s242
        $region42: #{double_conv_forward.4} parent=35 // loop_footer_branch
          %241 = sbr.rel target = $region38
        $region43: #{double_conv_forward.4} parent=35 // loop_exit
          _
        %s282 = ssub.s32 4, 1
        loop: start=0, step=1, limit=1
        $region44: #{double_conv_forward.4} parent=35 // loop_pre_header
          _
        $region45: #{double_conv_forward.4} parent=35 // loop_header
          %s284 = sphi 0, %s288
          %p285 = scmp.ge.s32.totalorder %s284, 1
          %s289 = sphi %s239, %s239
          %s290 = sphi %s240, %s240
        $region46: #{double_conv_forward.4} parent=35 // loop_header_branch
          %287 = sbr.rel (%p285) target = $region50
        $region47: #{double_conv_forward.4} parent=35 // loop_body
          %v291 = vld [vmem:[%s289] sm:%s282]
          %292 = vst [vmem:[%s290] sm:%s282] %v291
          %v293 = vld [vmem:[%s289 + $0x18] sm:%s282]
          %294 = vst [vmem:[%s290 + $0x18] sm:%s282] %v293
          %v295 = vld [vmem:[%s289 + $0x30] sm:%s282]
          %296 = vst [vmem:[%s290 + $0x30] sm:%s282] %v295
          %v297 = vld [vmem:[%s289 + $0x48] sm:%s282]
          %298 = vst [vmem:[%s290 + $0x48] sm:%s282] %v297
          %v299 = vld [vmem:[%s289 + $0x60] sm:%s282]
          %300 = vst [vmem:[%s290 + $0x60] sm:%s282] %v299
          %v301 = vld [vmem:[%s289 + $0x78] sm:%s282]
          %302 = vst [vmem:[%s290 + $0x78] sm:%s282] %v301
          %v303 = vld [vmem:[%s289 + $0x90] sm:%s282]
          %304 = vst [vmem:[%s290 + $0x90] sm:%s282] %v303
          %v305 = vld [vmem:[%s289 + $0xa8] sm:%s282]
          %306 = vst [vmem:[%s290 + $0xa8] sm:%s282] %v305
        $region48: #{double_conv_forward.4} parent=35 // loop_footer
          %s288 = sadd.s32 1, %s284
        $region49: #{double_conv_forward.4} parent=35 // loop_footer_branch
          %283 = sbr.rel target = $region45
        $region50: #{double_conv_forward.4} parent=35 // loop_exit
          _
      $region36: #{double_conv_forward.4} parent=31 // pred_fallthru
        _
      // Predicated region
      $region51: #{double_conv_forward.4} parent=31 // pred_check
        _
      $region52: #{double_conv_forward.4} parent=31 // pred_check_branch
        %309 = sbr.rel (0) target = $region54
      $region53: #{double_conv_forward.4} parent=31 // pred_region
        %310 = vsyncadd [#allocation3], 2304
      $region54: #{double_conv_forward.4} parent=31 // pred_fallthru
        _
      %s311 = smul.u32 %s228, 24
      %s312 = sadd.s32 %s311, %s233
      %s313 = scalar_lea.vmem %s0, %s312
      %s314 = scalar_lea.sflag [#allocation3], 1
      // Predicated region
      $region55: #{double_conv_forward.4} parent=31 // pred_check
        _
      $region56: #{double_conv_forward.4} parent=31 // pred_check_branch
        %316 = sbr.rel (0) target = $region58
      $region57: #{double_conv_forward.4} parent=31 // pred_region
        %s317 = scalar_lea.vmem %s313, 16
        %s318 = scalar_lea.vmem [#allocation2], 16
        loop: start=0, step=1, limit=1
        $region59: #{double_conv_forward.4} parent=57 // loop_pre_header
          _
        $region60: #{double_conv_forward.4} parent=57 // loop_header
          %s320 = sphi 0, %s324
          %p321 = scmp.ge.s32.totalorder %s320, 1
          %s325 = sphi %s313, %s313
          %s326 = sphi [#allocation2], [#allocation2]
        $region61: #{double_conv_forward.4} parent=57 // loop_header_branch
          %323 = sbr.rel (%p321) target = $region65
        $region62: #{double_conv_forward.4} parent=57 // loop_body
          %v327 = vld [vmem:[%s325] sm:$0xff]
          %328 = vst [vmem:[%s326] sm:$0xff] %v327
          %v329 = vld [vmem:[%s325 + $0x8] sm:$0xff]
          %330 = vst [vmem:[%s326 + $0x8] sm:$0xff] %v329
        $region63: #{double_conv_forward.4} parent=57 // loop_footer
          %s324 = sadd.s32 1, %s320
        $region64: #{double_conv_forward.4} parent=57 // loop_footer_branch
          %319 = sbr.rel target = $region60
        $region65: #{double_conv_forward.4} parent=57 // loop_exit
          _
        %s332 = ssub.s32 4, 1
        loop: start=0, step=1, limit=1
        $region66: #{double_conv_forward.4} parent=57 // loop_pre_header
          _
        $region67: #{double_conv_forward.4} parent=57 // loop_header
          %s334 = sphi 0, %s338
          %p335 = scmp.ge.s32.totalorder %s334, 1
          %s339 = sphi %s317, %s317
          %s340 = sphi %s318, %s318
        $region68: #{double_conv_forward.4} parent=57 // loop_header_branch
          %337 = sbr.rel (%p335) target = $region72
        $region69: #{double_conv_forward.4} parent=57 // loop_body
          %v341 = vld [vmem:[%s339] sm:%s332]
          %342 = vst [vmem:[%s340] sm:%s332] %v341
        $region70: #{double_conv_forward.4} parent=57 // loop_footer
          %s338 = sadd.s32 1, %s334
        $region71: #{double_conv_forward.4} parent=57 // loop_footer_branch
          %333 = sbr.rel target = $region67
        $region72: #{double_conv_forward.4} parent=57 // loop_exit
          _
      $region58: #{double_conv_forward.4} parent=31 // pred_fallthru
        _
      // Predicated region
      $region73: #{double_conv_forward.4} parent=31 // pred_check
        _
      $region74: #{double_conv_forward.4} parent=31 // pred_check_branch
        %345 = sbr.rel (0) target = $region76
      $region75: #{double_conv_forward.4} parent=31 // pred_region
        %346 = vsyncadd %s314, 288
      $region76: #{double_conv_forward.4} parent=31 // pred_fallthru
        _
      %s347 = smul.u32 %s231, 24
      %s348 = sadd.s32 %s347, %s233
      %s349 = scalar_lea.vmem %s0, %s348
      %s350 = scalar_lea.vmem [#allocation2], 216
      %s351 = scalar_lea.sflag [#allocation3], 2
      // Predicated region
      $region77: #{double_conv_forward.4} parent=31 // pred_check
        _
      $region78: #{double_conv_forward.4} parent=31 // pred_check_branch
        %353 = sbr.rel (0) target = $region80
      $region79: #{double_conv_forward.4} parent=31 // pred_region
        %s354 = scalar_lea.vmem %s349, 16
        %s355 = scalar_lea.vmem %s350, 16 [#allocation2]
        loop: start=0, step=1, limit=1
        $region81: #{double_conv_forward.4} parent=79 // loop_pre_header
          _
        $region82: #{double_conv_forward.4} parent=79 // loop_header
          %s357 = sphi 0, %s361
          %p358 = scmp.ge.s32.totalorder %s357, 1
          %s362 = sphi %s349, %s349
          %s363 = sphi %s350, %s350
        $region83: #{double_conv_forward.4} parent=79 // loop_header_branch
          %360 = sbr.rel (%p358) target = $region87
        $region84: #{double_conv_forward.4} parent=79 // loop_body
          %v364 = vld [vmem:[%s362] sm:$0xff]
          %365 = vst [vmem:[%s363] sm:$0xff] %v364
          %v366 = vld [vmem:[%s362 + $0x8] sm:$0xff]
          %367 = vst [vmem:[%s363 + $0x8] sm:$0xff] %v366
        $region85: #{double_conv_forward.4} parent=79 // loop_footer
          %s361 = sadd.s32 1, %s357
        $region86: #{double_conv_forward.4} parent=79 // loop_footer_branch
          %356 = sbr.rel target = $region82
        $region87: #{double_conv_forward.4} parent=79 // loop_exit
          _
        %s369 = ssub.s32 4, 1
        loop: start=0, step=1, limit=1
        $region88: #{double_conv_forward.4} parent=79 // loop_pre_header
          _
        $region89: #{double_conv_forward.4} parent=79 // loop_header
          %s371 = sphi 0, %s375
          %p372 = scmp.ge.s32.totalorder %s371, 1
          %s376 = sphi %s354, %s354
          %s377 = sphi %s355, %s355
        $region90: #{double_conv_forward.4} parent=79 // loop_header_branch
          %374 = sbr.rel (%p372) target = $region94
        $region91: #{double_conv_forward.4} parent=79 // loop_body
          %v378 = vld [vmem:[%s376] sm:%s369]
          %379 = vst [vmem:[%s377] sm:%s369] %v378
        $region92: #{double_conv_forward.4} parent=79 // loop_footer
          %s375 = sadd.s32 1, %s371
        $region93: #{double_conv_forward.4} parent=79 // loop_footer_branch
          %370 = sbr.rel target = $region89
        $region94: #{double_conv_forward.4} parent=79 // loop_exit
          _
      $region80: #{double_conv_forward.4} parent=31 // pred_fallthru
        _
      // Predicated region
      $region95: #{double_conv_forward.4} parent=31 // pred_check
        _
      $region96: #{double_conv_forward.4} parent=31 // pred_check_branch
        %382 = sbr.rel (0) target = $region98
      $region97: #{double_conv_forward.4} parent=31 // pred_region
        %383 = vsyncadd %s351, 288
      $region98: #{double_conv_forward.4} parent=31 // pred_fallthru
        _
      %s384 = smul.u32 8, 18
      %s385 = smul.u32 %s384, 1
      %s386 = sshll.u32 %s385, 4
      %387 = dma.done [#allocation3], %s386
      %s388 = smul.u32 1, 18
      %s389 = smul.u32 %s388, 1
      %s390 = sshll.u32 %s389, 4
      %391 = dma.done %s314, %s390
      %s392 = sshll.u32 %s389, 4
      %393 = dma.done %s351, %s392
      %v394 = vld [vmem:[#allocation2] sm:$0xff]
      %v395 = vld [vmem:[#allocation2 + $0x8] sm:$0xff]
      %v396 = vld [vmem:[#allocation2 + $0x10] sm:$0x3]
      %v397 = vld [vmem:[#allocation2 + $0x18] sm:$0xff]
      %v398 = vld [vmem:[#allocation2 + $0x20] sm:$0xff]
      %v399 = vld [vmem:[#allocation2 + $0x28] sm:$0x3]
      %v400 = vld [vmem:[#allocation2 + $0x30] sm:$0xff]
      %v401 = vld [vmem:[#allocation2 + $0x38] sm:$0xff]
      %v402 = vld [vmem:[#allocation2 + $0x40] sm:$0x3]
      %v403 = vld [vmem:[#allocation2 + $0x48] sm:$0xff]
      %v404 = vld [vmem:[#allocation2 + $0x50] sm:$0xff]
      %v405 = vld [vmem:[#allocation2 + $0x58] sm:$0x3]
      %v406 = vld [vmem:[#allocation2 + $0x60] sm:$0xff]
      %v407 = vld [vmem:[#allocation2 + $0x68] sm:$0xff]
      %v408 = vld [vmem:[#allocation2 + $0x70] sm:$0x3]
      %v409 = vld [vmem:[#allocation2 + $0x78] sm:$0xff]
      %v410 = vld [vmem:[#allocation2 + $0x80] sm:$0xff]
      %v411 = vld [vmem:[#allocation2 + $0x88] sm:$0x3]
      %v412 = vld [vmem:[#allocation2 + $0x90] sm:$0xff]
      %v413 = vld [vmem:[#allocation2 + $0x98] sm:$0xff]
      %v414 = vld [vmem:[#allocation2 + $0xa0] sm:$0x3]
      %v415 = vld [vmem:[#allocation2 + $0xa8] sm:$0xff]
      %v416 = vld [vmem:[#allocation2 + $0xb0] sm:$0xff]
      %v417 = vld [vmem:[#allocation2 + $0xb8] sm:$0x3]
      %v418 = vld [vmem:[#allocation2 + $0xc0] sm:$0xff]
      %v419 = vld [vmem:[#allocation2 + $0xc8] sm:$0xff]
      %v420 = vld [vmem:[#allocation2 + $0xd0] sm:$0x3]
      %v421 = vld [vmem:[#allocation2 + $0xd8] sm:$0xff]
      %v422 = vld [vmem:[#allocation2 + $0xe0] sm:$0xff]
      %v423 = vld [vmem:[#allocation2 + $0xe8] sm:$0x3]
      %v424 = vld [vmem:[%s2] sm:$0xff]
      %v425 = vld [vmem:[%s2 + $0x8] sm:$0xff]
      %v426 = vld [vmem:[%s2 + $0x10] sm:$0x3]
      %v427 = vmul.f32 %v394, %v424
      %v428 = vmul.f32 %v395, %v425
      %v429 = vmul.f32 %v396, %v426
      %v430 = vmul.f32 %v397, %v424
      %v431 = vmul.f32 %v398, %v425
      %v432 = vmul.f32 %v399, %v426
      %v433 = vmul.f32 %v400, %v424
      %v434 = vmul.f32 %v401, %v425
      %v435 = vmul.f32 %v402, %v426
      %v436 = vmul.f32 %v403, %v424
      %v437 = vmul.f32 %v404, %v425
      %v438 = vmul.f32 %v405, %v426
      %v439 = vmul.f32 %v406, %v424
      %v440 = vmul.f32 %v407, %v425
      %v441 = vmul.f32 %v408, %v426
      %v442 = vmul.f32 %v409, %v424
      %v443 = vmul.f32 %v410, %v425
      %v444 = vmul.f32 %v411, %v426
      %v445 = vmul.f32 %v412, %v424
      %v446 = vmul.f32 %v413, %v425
      %v447 = vmul.f32 %v414, %v426
      %v448 = vmul.f32 %v415, %v424
      %v449 = vmul.f32 %v416, %v425
      %v450 = vmul.f32 %v417, %v426
      %v451 = vmul.f32 %v418, %v424
      %v452 = vmul.f32 %v419, %v425
      %v453 = vmul.f32 %v420, %v426
      %v454 = vmul.f32 %v421, %v424
      %v455 = vmul.f32 %v422, %v425
      %v456 = vmul.f32 %v423, %v426
      %v457 = vld [vmem:[%s3] sm:$0xff]
      %v458 = vld [vmem:[%s3 + $0x8] sm:$0xff]
      %v459 = vld [vmem:[%s3 + $0x10] sm:$0x3]
      %v460 = vadd.f32 %v427, %v457
      %v461 = vadd.f32 %v428, %v458
      %v462 = vadd.f32 %v429, %v459
      %v463 = vadd.f32 %v430, %v457
      %v464 = vadd.f32 %v431, %v458
      %v465 = vadd.f32 %v432, %v459
      %v466 = vadd.f32 %v433, %v457
      %v467 = vadd.f32 %v434, %v458
      %v468 = vadd.f32 %v435, %v459
      %v469 = vadd.f32 %v436, %v457
      %v470 = vadd.f32 %v437, %v458
      %v471 = vadd.f32 %v438, %v459
      %v472 = vadd.f32 %v439, %v457
      %v473 = vadd.f32 %v440, %v458
      %v474 = vadd.f32 %v441, %v459
      %v475 = vadd.f32 %v442, %v457
      %v476 = vadd.f32 %v443, %v458
      %v477 = vadd.f32 %v444, %v459
      %v478 = vadd.f32 %v445, %v457
      %v479 = vadd.f32 %v446, %v458
      %v480 = vadd.f32 %v447, %v459
      %v481 = vadd.f32 %v448, %v457
      %v482 = vadd.f32 %v449, %v458
      %v483 = vadd.f32 %v450, %v459
      %v484 = vadd.f32 %v451, %v457
      %v485 = vadd.f32 %v452, %v458
      %v486 = vadd.f32 %v453, %v459
      %v487 = vadd.f32 %v454, %v457
      %v488 = vadd.f32 %v455, %v458
      %v489 = vadd.f32 %v456, %v459
      %v490 = vmax.f32 %v460, 0.0
      %v491 = vmax.f32 %v461, 0.0
      %v492 = vmax.f32 %v462, 0.0
      %v493 = vmax.f32 %v463, 0.0
      %v494 = vmax.f32 %v464, 0.0
      %v495 = vmax.f32 %v465, 0.0
      %v496 = vmax.f32 %v466, 0.0
      %v497 = vmax.f32 %v467, 0.0
      %v498 = vmax.f32 %v468, 0.0
      %v499 = vmax.f32 %v469, 0.0
      %v500 = vmax.f32 %v470, 0.0
      %v501 = vmax.f32 %v471, 0.0
      %v502 = vmax.f32 %v472, 0.0
      %v503 = vmax.f32 %v473, 0.0
      %v504 = vmax.f32 %v474, 0.0
      %v505 = vmax.f32 %v475, 0.0
      %v506 = vmax.f32 %v476, 0.0
      %v507 = vmax.f32 %v477, 0.0
      %v508 = vmax.f32 %v478, 0.0
      %v509 = vmax.f32 %v479, 0.0
      %v510 = vmax.f32 %v480, 0.0
      %v511 = vmax.f32 %v481, 0.0
      %v512 = vmax.f32 %v482, 0.0
      %v513 = vmax.f32 %v483, 0.0
      %v514 = vmax.f32 %v484, 0.0
      %v515 = vmax.f32 %v485, 0.0
      %v516 = vmax.f32 %v486, 0.0
      %v517 = vmax.f32 %v487, 0.0
      %v518 = vmax.f32 %v488, 0.0
      %v519 = vmax.f32 %v489, 0.0
      %v520 = vstv %s226
      %v521 = vadd.s32 %v520, 1
      %v522 = vadd.s32 %v520, 2
      %v523 = vadd.s32 %v520, 3
      %v524 = vadd.s32 %v520, 4
      %v525 = vadd.s32 %v520, 5
      %v526 = vadd.s32 %v520, 6
      %v527 = vadd.s32 %v520, 7
      %v528 = vadd.s32 %v520, 8
      %v529 = vadd.s32 %v520, 9
      %vm530 = vcmp.ge.s32.totalorder %v520, 0
      %vm531 = vcmp.ge.s32.totalorder %v521, 0
      %vm532 = vcmp.ge.s32.totalorder %v522, 0
      %vm533 = vcmp.ge.s32.totalorder %v523, 0
      %vm534 = vcmp.ge.s32.totalorder %v524, 0
      %vm535 = vcmp.ge.s32.totalorder %v525, 0
      %vm536 = vcmp.ge.s32.totalorder %v526, 0
      %vm537 = vcmp.ge.s32.totalorder %v527, 0
      %vm538 = vcmp.ge.s32.totalorder %v528, 0
      %vm539 = vcmp.ge.s32.totalorder %v529, 0
      %vm540 = vcmp.le.s32.totalorder %v520, 15
      %vm541 = vcmp.le.s32.totalorder %v521, 15
      %vm542 = vcmp.le.s32.totalorder %v522, 15
      %vm543 = vcmp.le.s32.totalorder %v523, 15
      %vm544 = vcmp.le.s32.totalorder %v524, 15
      %vm545 = vcmp.le.s32.totalorder %v525, 15
      %vm546 = vcmp.le.s32.totalorder %v526, 15
      %vm547 = vcmp.le.s32.totalorder %v527, 15
      %vm548 = vcmp.le.s32.totalorder %v528, 15
      %vm549 = vcmp.le.s32.totalorder %v529, 15
      %vm550 = vmand %vm530, %vm540
      %vm551 = vmand %vm531, %vm541
      %vm552 = vmand %vm532, %vm542
      %vm553 = vmand %vm533, %vm543
      %vm554 = vmand %vm534, %vm544
      %vm555 = vmand %vm535, %vm545
      %vm556 = vmand %vm536, %vm546
      %vm557 = vmand %vm537, %vm547
      %vm558 = vmand %vm538, %vm548
      %vm559 = vmand %vm539, %vm549
      %v560 = vsel %vm550, 1, 0
      %v561 = vsel %vm551, 1, 0
      %v562 = vsel %vm552, 1, 0
      %v563 = vsel %vm553, 1, 0
      %v564 = vsel %vm554, 1, 0
      %v565 = vsel %vm555, 1, 0
      %v566 = vsel %vm556, 1, 0
      %v567 = vsel %vm557, 1, 0
      %v568 = vsel %vm558, 1, 0
      %v569 = vsel %vm559, 1, 0
      %vm570 = vcmp.eq.s32.totalorder %v560, 1
      %vm571 = vcmp.eq.s32.totalorder %v561, 1
      %vm572 = vcmp.eq.s32.totalorder %v562, 1
      %vm573 = vcmp.eq.s32.totalorder %v563, 1
      %vm574 = vcmp.eq.s32.totalorder %v564, 1
      %vm575 = vcmp.eq.s32.totalorder %v565, 1
      %vm576 = vcmp.eq.s32.totalorder %v566, 1
      %vm577 = vcmp.eq.s32.totalorder %v567, 1
      %vm578 = vcmp.eq.s32.totalorder %v568, 1
      %vm579 = vcmp.eq.s32.totalorder %v569, 1
      %v580 = vsel %vm570, %v490, 0.0
      %v581 = vsel %vm570, %v491, 0.0
      %v582 = vsel %vm570, %v492, 0.0
      %v583 = vsel %vm571, %v493, 0.0
      %v584 = vsel %vm571, %v494, 0.0
      %v585 = vsel %vm571, %v495, 0.0
      %v586 = vsel %vm572, %v496, 0.0
      %v587 = vsel %vm572, %v497, 0.0
      %v588 = vsel %vm572, %v498, 0.0
      %v589 = vsel %vm573, %v499, 0.0
      %v590 = vsel %vm573, %v500, 0.0
      %v591 = vsel %vm573, %v501, 0.0
      %v592 = vsel %vm574, %v502, 0.0
      %v593 = vsel %vm574, %v503, 0.0
      %v594 = vsel %vm574, %v504, 0.0
      %v595 = vsel %vm575, %v505, 0.0
      %v596 = vsel %vm575, %v506, 0.0
      %v597 = vsel %vm575, %v507, 0.0
      %v598 = vsel %vm576, %v508, 0.0
      %v599 = vsel %vm576, %v509, 0.0
      %v600 = vsel %vm576, %v510, 0.0
      %v601 = vsel %vm577, %v511, 0.0
      %v602 = vsel %vm577, %v512, 0.0
      %v603 = vsel %vm577, %v513, 0.0
      %v604 = vsel %vm578, %v514, 0.0
      %v605 = vsel %vm578, %v515, 0.0
      %v606 = vsel %vm578, %v516, 0.0
      %v607 = vsel %vm579, %v517, 0.0
      %v608 = vsel %vm579, %v518, 0.0
      %v609 = vsel %vm579, %v519, 0.0
      %v610 = vpack.c.bf16 %v580, %v580
      %v611 = vpack.c.bf16 %v581, %v581
      %v612 = vpack.c.bf16 %v582, %v582
      %v613 = vpack.c.bf16 %v583, %v583
      %v614 = vpack.c.bf16 %v584, %v584
      %v615 = vpack.c.bf16 %v585, %v585
      %v616 = vpack.c.bf16 %v586, %v586
      %v617 = vpack.c.bf16 %v587, %v587
      %v618 = vpack.c.bf16 %v588, %v588
      %v619 = vpack.c.bf16 %v589, %v589
      %v620 = vpack.c.bf16 %v590, %v590
      %v621 = vpack.c.bf16 %v591, %v591
      %v622 = vpack.c.bf16 %v592, %v592
      %v623 = vpack.c.bf16 %v593, %v593
      %v624 = vpack.c.bf16 %v594, %v594
      %v625 = vpack.c.bf16 %v595, %v595
      %v626 = vpack.c.bf16 %v596, %v596
      %v627 = vpack.c.bf16 %v597, %v597
      %v628 = vpack.c.bf16 %v598, %v598
      %v629 = vpack.c.bf16 %v599, %v599
      %v630 = vpack.c.bf16 %v600, %v600
      %v631 = vpack.c.bf16 %v601, %v601
      %v632 = vpack.c.bf16 %v602, %v602
      %v633 = vpack.c.bf16 %v603, %v603
      %v634 = vpack.c.bf16 %v604, %v604
      %v635 = vpack.c.bf16 %v605, %v605
      %v636 = vpack.c.bf16 %v606, %v606
      %v637 = vpack.c.bf16 %v607, %v607
      %v638 = vpack.c.bf16 %v608, %v608
      %v639 = vpack.c.bf16 %v609, %v609
      %vm640 = vsmask.f32 3328
      %vm641 = vsmask.f32 7440
      %vm642 = vmor %vm640, %vm641
      %v644 = vshrl.u32 %v610, 16
      %v646 = vrot.slane %v644, 4
      %v647 = vshll.u32 %v610, 16
      %v649 = vrot.slane %v647, 5
      %v650 = vor.u32 %v646, %v649
      %v651 = vrot.slane %v650, 4
      %v653 = vshll.u32 %v611, 16
      %v655 = vrot.slane %v653, 5
      %v656 = vsel %vm642, %v651, %v655
      %v657 = vshrl.u32 %v611, 16
      %v659 = vrot.slane %v657, 4
      %v660 = vor.u32 %v659, %v655
      %v661 = vrot.slane %v660, 4
      %v663 = vshll.u32 %v612, 16
      %v665 = vrot.slane %v663, 5
      %v666 = vsel %vm642, %v661, %v665
      %v668 = vshrl.u32 %v613, 16
      %v670 = vrot.slane %v668, 4
      %v671 = vshll.u32 %v613, 16
      %v673 = vrot.slane %v671, 5
      %v674 = vor.u32 %v670, %v673
      %v675 = vrot.slane %v674, 4
      %v677 = vshll.u32 %v614, 16
      %v679 = vrot.slane %v677, 5
      %v680 = vsel %vm642, %v675, %v679
      %v681 = vshrl.u32 %v614, 16
      %v683 = vrot.slane %v681, 4
      %v684 = vor.u32 %v683, %v679
      %v685 = vrot.slane %v684, 4
      %v687 = vshll.u32 %v615, 16
      %v689 = vrot.slane %v687, 5
      %v690 = vsel %vm642, %v685, %v689
      %v692 = vshrl.u32 %v616, 16
      %v694 = vrot.slane %v692, 4
      %v695 = vshll.u32 %v616, 16
      %v697 = vrot.slane %v695, 5
      %v698 = vor.u32 %v694, %v697
      %v699 = vrot.slane %v698, 4
      %v701 = vshll.u32 %v617, 16
      %v703 = vrot.slane %v701, 5
      %v704 = vsel %vm642, %v699, %v703
      %v705 = vshrl.u32 %v617, 16
      %v707 = vrot.slane %v705, 4
      %v708 = vor.u32 %v707, %v703
      %v709 = vrot.slane %v708, 4
      %v711 = vshll.u32 %v618, 16
      %v713 = vrot.slane %v711, 5
      %v714 = vsel %vm642, %v709, %v713
      %v716 = vshrl.u32 %v619, 16
      %v718 = vrot.slane %v716, 4
      %v719 = vshll.u32 %v619, 16
      %v721 = vrot.slane %v719, 5
      %v722 = vor.u32 %v718, %v721
      %v723 = vrot.slane %v722, 4
      %v725 = vshll.u32 %v620, 16
      %v727 = vrot.slane %v725, 5
      %v728 = vsel %vm642, %v723, %v727
      %v729 = vshrl.u32 %v620, 16
      %v731 = vrot.slane %v729, 4
      %v732 = vor.u32 %v731, %v727
      %v733 = vrot.slane %v732, 4
      %v735 = vshll.u32 %v621, 16
      %v737 = vrot.slane %v735, 5
      %v738 = vsel %vm642, %v733, %v737
      %v740 = vshrl.u32 %v622, 16
      %v742 = vrot.slane %v740, 4
      %v743 = vshll.u32 %v622, 16
      %v745 = vrot.slane %v743, 5
      %v746 = vor.u32 %v742, %v745
      %v747 = vrot.slane %v746, 4
      %v749 = vshll.u32 %v623, 16
      %v751 = vrot.slane %v749, 5
      %v752 = vsel %vm642, %v747, %v751
      %v753 = vshrl.u32 %v623, 16
      %v755 = vrot.slane %v753, 4
      %v756 = vor.u32 %v755, %v751
      %v757 = vrot.slane %v756, 4
      %v759 = vshll.u32 %v624, 16
      %v761 = vrot.slane %v759, 5
      %v762 = vsel %vm642, %v757, %v761
      %v764 = vshrl.u32 %v625, 16
      %v766 = vrot.slane %v764, 4
      %v767 = vshll.u32 %v625, 16
      %v769 = vrot.slane %v767, 5
      %v770 = vor.u32 %v766, %v769
      %v771 = vrot.slane %v770, 4
      %v773 = vshll.u32 %v626, 16
      %v775 = vrot.slane %v773, 5
      %v776 = vsel %vm642, %v771, %v775
      %v777 = vshrl.u32 %v626, 16
      %v779 = vrot.slane %v777, 4
      %v780 = vor.u32 %v779, %v775
      %v781 = vrot.slane %v780, 4
      %v783 = vshll.u32 %v627, 16
      %v785 = vrot.slane %v783, 5
      %v786 = vsel %vm642, %v781, %v785
      %v788 = vshrl.u32 %v628, 16
      %v790 = vrot.slane %v788, 4
      %v791 = vshll.u32 %v628, 16
      %v793 = vrot.slane %v791, 5
      %v794 = vor.u32 %v790, %v793
      %v795 = vrot.slane %v794, 4
      %v797 = vshll.u32 %v629, 16
      %v799 = vrot.slane %v797, 5
      %v800 = vsel %vm642, %v795, %v799
      %v801 = vshrl.u32 %v629, 16
      %v803 = vrot.slane %v801, 4
      %v804 = vor.u32 %v803, %v799
      %v805 = vrot.slane %v804, 4
      %v807 = vshll.u32 %v630, 16
      %v809 = vrot.slane %v807, 5
      %v810 = vsel %vm642, %v805, %v809
      %v812 = vshrl.u32 %v631, 16
      %v814 = vrot.slane %v812, 4
      %v815 = vshll.u32 %v631, 16
      %v817 = vrot.slane %v815, 5
      %v818 = vor.u32 %v814, %v817
      %v819 = vrot.slane %v818, 4
      %v821 = vshll.u32 %v632, 16
      %v823 = vrot.slane %v821, 5
      %v824 = vsel %vm642, %v819, %v823
      %v825 = vshrl.u32 %v632, 16
      %v827 = vrot.slane %v825, 4
      %v828 = vor.u32 %v827, %v823
      %v829 = vrot.slane %v828, 4
      %v831 = vshll.u32 %v633, 16
      %v833 = vrot.slane %v831, 5
      %v834 = vsel %vm642, %v829, %v833
      %vm859 = vcmask 1042432
      %vm860 = vcmask 1046532
      %vm861 = vmor %vm859, %vm860
      %v862 = vrot.slane %v610, 5
      %v863 = vrot.slane %v862, 4
      %v864 = vrot.slane %v611, 5
      %v865 = vsel %vm861, %v863, %v864
      %v866 = vrot.slane %v864, 4
      %v867 = vrot.slane %v612, 5
      %v868 = vsel %vm861, %v866, %v867
      %v869 = vrot.slane %v613, 5
      %v870 = vrot.slane %v869, 4
      %v871 = vrot.slane %v614, 5
      %v872 = vsel %vm861, %v870, %v871
      %v873 = vrot.slane %v871, 4
      %v874 = vrot.slane %v615, 5
      %v875 = vsel %vm861, %v873, %v874
      %v876 = vrot.slane %v616, 5
      %v877 = vrot.slane %v876, 4
      %v878 = vrot.slane %v617, 5
      %v879 = vsel %vm861, %v877, %v878
      %v880 = vrot.slane %v878, 4
      %v881 = vrot.slane %v618, 5
      %v882 = vsel %vm861, %v880, %v881
      %v883 = vrot.slane %v619, 5
      %v884 = vrot.slane %v883, 4
      %v885 = vrot.slane %v620, 5
      %v886 = vsel %vm861, %v884, %v885
      %v887 = vrot.slane %v885, 4
      %v888 = vrot.slane %v621, 5
      %v889 = vsel %vm861, %v887, %v888
      %v890 = vrot.slane %v622, 5
      %v891 = vrot.slane %v890, 4
      %v892 = vrot.slane %v623, 5
      %v893 = vsel %vm861, %v891, %v892
      %v894 = vrot.slane %v892, 4
      %v895 = vrot.slane %v624, 5
      %v896 = vsel %vm861, %v894, %v895
      %v897 = vrot.slane %v625, 5
      %v898 = vrot.slane %v897, 4
      %v899 = vrot.slane %v626, 5
      %v900 = vsel %vm861, %v898, %v899
      %v901 = vrot.slane %v899, 4
      %v902 = vrot.slane %v627, 5
      %v903 = vsel %vm861, %v901, %v902
      %v904 = vrot.slane %v628, 5
      %v905 = vrot.slane %v904, 4
      %v906 = vrot.slane %v629, 5
      %v907 = vsel %vm861, %v905, %v906
      %v908 = vrot.slane %v906, 4
      %v909 = vrot.slane %v630, 5
      %v910 = vsel %vm861, %v908, %v909
      %v911 = vrot.slane %v631, 5
      %v912 = vrot.slane %v911, 4
      %v913 = vrot.slane %v632, 5
      %v914 = vsel %vm861, %v912, %v913
      %v915 = vrot.slane %v913, 4
      %v916 = vrot.slane %v633, 5
      %v917 = vsel %vm861, %v915, %v916
      %v919 = vshrl.u32 %v634, 16
      %v921 = vrot.slane %v919, 4
      %v922 = vshll.u32 %v634, 16
      %v924 = vrot.slane %v922, 5
      %v925 = vor.u32 %v921, %v924
      %v926 = vrot.slane %v925, 4
      %v928 = vshll.u32 %v635, 16
      %v930 = vrot.slane %v928, 5
      %v931 = vsel %vm642, %v926, %v930
      %v932 = vshrl.u32 %v635, 16
      %v934 = vrot.slane %v932, 4
      %v935 = vor.u32 %v934, %v930
      %v936 = vrot.slane %v935, 4
      %v938 = vshll.u32 %v636, 16
      %v940 = vrot.slane %v938, 5
      %v941 = vsel %vm642, %v936, %v940
      %v945 = vrot.slane %v634, 5
      %v946 = vrot.slane %v945, 4
      %v947 = vrot.slane %v635, 5
      %v948 = vsel %vm861, %v946, %v947
      %v949 = vrot.slane %v947, 4
      %v950 = vrot.slane %v636, 5
      %v951 = vsel %vm861, %v949, %v950
      %v953 = vshrl.u32 %v637, 16
      %v955 = vrot.slane %v953, 4
      %v956 = vshll.u32 %v637, 16
      %v958 = vrot.slane %v956, 5
      %v959 = vor.u32 %v955, %v958
      %v960 = vrot.slane %v959, 4
      %v962 = vshll.u32 %v638, 16
      %v964 = vrot.slane %v962, 5
      %v965 = vsel %vm642, %v960, %v964
      %v966 = vshrl.u32 %v638, 16
      %v968 = vrot.slane %v966, 4
      %v969 = vor.u32 %v968, %v964
      %v970 = vrot.slane %v969, 4
      %v972 = vshll.u32 %v639, 16
      %v974 = vrot.slane %v972, 5
      %v975 = vsel %vm642, %v970, %v974
      %v979 = vrot.slane %v637, 5
      %v980 = vrot.slane %v979, 4
      %v981 = vrot.slane %v638, 5
      %v982 = vsel %vm861, %v980, %v981
      %v983 = vrot.slane %v981, 4
      %v984 = vrot.slane %v639, 5
      %v985 = vsel %vm861, %v983, %v984
      %v986 = vunpack.c.l.b16 %v610
      %v987 = vunpack.c.l.b16 %v611
      %v988 = vunpack.c.l.b16 %v613
      %v989 = vunpack.c.l.b16 %v614
      %v990 = vunpack.c.l.b16 %v616
      %v991 = vunpack.c.l.b16 %v617
      %v992 = vunpack.c.l.b16 %v619
      %v993 = vunpack.c.l.b16 %v620
      %v994 = vunpack.c.l.b16 %v622
      %v995 = vunpack.c.l.b16 %v623
      %v996 = vunpack.c.l.b16 %v625
      %v997 = vunpack.c.l.b16 %v626
      %v998 = vunpack.c.l.b16 %v628
      %v999 = vunpack.c.l.b16 %v629
      %v1000 = vunpack.c.l.b16 %v631
      %v1001 = vunpack.c.l.b16 %v632
      %v1002 = vpack.c.b16 %v987, %v986
      %v1003 = vpack.c.b16 %v989, %v988
      %v1004 = vpack.c.b16 %v991, %v990
      %v1005 = vpack.c.b16 %v993, %v992
      %v1006 = vpack.c.b16 %v995, %v994
      %v1007 = vpack.c.b16 %v997, %v996
      %v1008 = vpack.c.b16 %v999, %v998
      %v1009 = vpack.c.b16 %v1001, %v1000
      %v1018 = vunpack.c.l.b16 %v656
      %v1019 = vunpack.c.l.b16 %v666
      %v1020 = vunpack.c.l.b16 %v680
      %v1021 = vunpack.c.l.b16 %v690
      %v1022 = vunpack.c.l.b16 %v704
      %v1023 = vunpack.c.l.b16 %v714
      %v1024 = vunpack.c.l.b16 %v728
      %v1025 = vunpack.c.l.b16 %v738
      %v1026 = vunpack.c.l.b16 %v752
      %v1027 = vunpack.c.l.b16 %v762
      %v1028 = vunpack.c.l.b16 %v776
      %v1029 = vunpack.c.l.b16 %v786
      %v1030 = vunpack.c.l.b16 %v800
      %v1031 = vunpack.c.l.b16 %v810
      %v1032 = vunpack.c.l.b16 %v824
      %v1033 = vunpack.c.l.b16 %v834
      %v1034 = vpack.c.b16 %v1019, %v1018
      %v1035 = vpack.c.b16 %v1021, %v1020
      %v1036 = vpack.c.b16 %v1023, %v1022
      %v1037 = vpack.c.b16 %v1025, %v1024
      %v1038 = vpack.c.b16 %v1027, %v1026
      %v1039 = vpack.c.b16 %v1029, %v1028
      %v1040 = vpack.c.b16 %v1031, %v1030
      %v1041 = vpack.c.b16 %v1033, %v1032
      %v1050 = vunpack.c.l.b16 %v865
      %v1051 = vunpack.c.l.b16 %v868
      %v1052 = vunpack.c.l.b16 %v872
      %v1053 = vunpack.c.l.b16 %v875
      %v1054 = vunpack.c.l.b16 %v879
      %v1055 = vunpack.c.l.b16 %v882
      %v1056 = vunpack.c.l.b16 %v886
      %v1057 = vunpack.c.l.b16 %v889
      %v1058 = vunpack.c.l.b16 %v893
      %v1059 = vunpack.c.l.b16 %v896
      %v1060 = vunpack.c.l.b16 %v900
      %v1061 = vunpack.c.l.b16 %v903
      %v1062 = vunpack.c.l.b16 %v907
      %v1063 = vunpack.c.l.b16 %v910
      %v1064 = vunpack.c.l.b16 %v914
      %v1065 = vunpack.c.l.b16 %v917
      %v1066 = vpack.c.b16 %v1051, %v1050
      %v1067 = vpack.c.b16 %v1053, %v1052
      %v1068 = vpack.c.b16 %v1055, %v1054
      %v1069 = vpack.c.b16 %v1057, %v1056
      %v1070 = vpack.c.b16 %v1059, %v1058
      %v1071 = vpack.c.b16 %v1061, %v1060
      %v1072 = vpack.c.b16 %v1063, %v1062
      %v1073 = vpack.c.b16 %v1065, %v1064
      %v1082 = vunpack.c.l.b16 %v634
      %v1083 = vunpack.c.l.b16 %v635
      %v1084 = vpack.c.b16 %v1083, %v1082
      %v1086 = vunpack.c.l.b16 %v931
      %v1087 = vunpack.c.l.b16 %v941
      %v1088 = vpack.c.b16 %v1087, %v1086
      %v1090 = vunpack.c.l.b16 %v948
      %v1091 = vunpack.c.l.b16 %v951
      %v1092 = vpack.c.b16 %v1091, %v1090
      %v1094 = vunpack.c.l.b16 %v637
      %v1095 = vunpack.c.l.b16 %v638
      %v1096 = vpack.c.b16 %v1095, %v1094
      %v1098 = vunpack.c.l.b16 %v965
      %v1099 = vunpack.c.l.b16 %v975
      %v1100 = vpack.c.b16 %v1099, %v1098
      %v1102 = vunpack.c.l.b16 %v982
      %v1103 = vunpack.c.l.b16 %v985
      %v1104 = vpack.c.b16 %v1103, %v1102
      %v1106 = vld [vmem:[%s1] sm:$0xf]
      %v1107 = vld [vmem:[%s1 + $0x4] sm:$0xf]
      %v1108 = vld [vmem:[%s1 + $0x8] sm:$0xf]
      %v1109 = vld [vmem:[%s1 + $0xc] sm:$0xf]
      %v1110 = vld [vmem:[%s1 + $0x10] sm:$0xf]
      %v1111 = vld [vmem:[%s1 + $0x14] sm:$0xf]
      %v1112 = vld [vmem:[%s1 + $0x18] sm:$0xf]
      %v1113 = vld [vmem:[%s1 + $0x1c] sm:$0xf]
      %v1114 = vld [vmem:[%s1 + $0x20] sm:$0xf]
      %v1115 = vld [vmem:[%s1 + $0x24] sm:$0xf]
      %v1116 = vld [vmem:[%s1 + $0x28] sm:$0xf]
      %v1117 = vld [vmem:[%s1 + $0x2c] sm:$0xf]
      %v1118 = vld [vmem:[%s1 + $0x30] sm:$0xf]
      %v1119 = vld [vmem:[%s1 + $0x34] sm:$0xf]
      %v1120 = vld [vmem:[%s1 + $0x38] sm:$0xf]
      %v1121 = vld [vmem:[%s1 + $0x3c] sm:$0xf]
      %v1122 = vld [vmem:[%s1 + $0x40] sm:$0xf]
      %v1123 = vld [vmem:[%s1 + $0x44] sm:$0xf]
      %v1124 = vld [vmem:[%s1 + $0x48] sm:$0xf]
      %v1125 = vld [vmem:[%s1 + $0x4c] sm:$0xf]
      %v1126 = vld [vmem:[%s1 + $0x50] sm:$0xf]
      %v1127 = vld [vmem:[%s1 + $0x54] sm:$0xf]
      %v1128 = vld [vmem:[%s1 + $0x58] sm:$0xf]
      %v1129 = vld [vmem:[%s1 + $0x5c] sm:$0xf]
      %v1130 = vld [vmem:[%s1 + $0x60] sm:$0xf]
      %v1131 = vld [vmem:[%s1 + $0x64] sm:$0xf]
      %v1132 = vld [vmem:[%s1 + $0x68] sm:$0xf]
      %v1133 = vld [vmem:[%s1 + $0x6c] sm:$0xf]
      %v1134 = vld [vmem:[%s1 + $0x70] sm:$0xf]
      %v1135 = vld [vmem:[%s1 + $0x74] sm:$0xf]
      %v1136 = vld [vmem:[%s1 + $0x78] sm:$0xf]
      %v1137 = vld [vmem:[%s1 + $0x7c] sm:$0xf]
      %v1138 = vld [vmem:[%s1 + $0x80] sm:$0xf]
      %v1139 = vld [vmem:[%s1 + $0x84] sm:$0xf]
      %v1140 = vld [vmem:[%s1 + $0x88] sm:$0xf]
      %v1141 = vld [vmem:[%s1 + $0x8c] sm:$0xf]
      %v1142 = vld [vmem:[%s1 + $0x90] sm:$0xf]
      %v1143 = vld [vmem:[%s1 + $0x94] sm:$0xf]
      %v1144 = vld [vmem:[%s1 + $0x98] sm:$0xf]
      %v1145 = vld [vmem:[%s1 + $0x9c] sm:$0xf]
      %v1146 = vld [vmem:[%s1 + $0xa0] sm:$0xf]
      %v1147 = vld [vmem:[%s1 + $0xa4] sm:$0xf]
      %v1148 = vld [vmem:[%s1 + $0xa8] sm:$0xf]
      %v1149 = vld [vmem:[%s1 + $0xac] sm:$0xf]
      %v1150 = vld [vmem:[%s1 + $0xb0] sm:$0xf]
      %v1151 = vld [vmem:[%s1 + $0xb4] sm:$0xf]
      %v1152 = vld [vmem:[%s1 + $0xb8] sm:$0xf]
      %v1153 = vld [vmem:[%s1 + $0xbc] sm:$0xf]
      %v1154 = vld [vmem:[%s1 + $0xc0] sm:$0xf]
      %v1155 = vld [vmem:[%s1 + $0xc4] sm:$0xf]
      %v1156 = vld [vmem:[%s1 + $0xc8] sm:$0xf]
      %v1157 = vld [vmem:[%s1 + $0xcc] sm:$0xf]
      %v1158 = vld [vmem:[%s1 + $0xd0] sm:$0xf]
      %v1159 = vld [vmem:[%s1 + $0xd4] sm:$0xf]
      %v1160 = vld [vmem:[%s1 + $0xd8] sm:$0xf]
      %v1161 = vld [vmem:[%s1 + $0xdc] sm:$0xf]
      %v1162 = vld [vmem:[%s1 + $0xe0] sm:$0xf]
      %v1163 = vld [vmem:[%s1 + $0xe4] sm:$0xf]
      %v1164 = vld [vmem:[%s1 + $0xe8] sm:$0xf]
      %v1165 = vld [vmem:[%s1 + $0xec] sm:$0xf]
      %v1166 = vld [vmem:[%s1 + $0xf0] sm:$0xf]
      %v1167 = vld [vmem:[%s1 + $0xf4] sm:$0xf]
      %v1168 = vld [vmem:[%s1 + $0xf8] sm:$0xf]
      %v1169 = vld [vmem:[%s1 + $0xfc] sm:$0xf]
      %v1170 = vld [vmem:[%s1 + $0x100] sm:$0xf]
      %v1171 = vld [vmem:[%s1 + $0x104] sm:$0xf]
      %v1172 = vld [vmem:[%s1 + $0x108] sm:$0xf]
      %v1173 = vld [vmem:[%s1 + $0x10c] sm:$0xf]
      %v1174 = vld [vmem:[%s1 + $0x110] sm:$0xf]
      %v1175 = vld [vmem:[%s1 + $0x114] sm:$0xf]
      %v1176 = vld [vmem:[%s1 + $0x118] sm:$0xf]
      %v1177 = vld [vmem:[%s1 + $0x11c] sm:$0xf]
      %v1178 = vld [vmem:[%s1 + $0x120] sm:$0xf]
      %v1179 = vld [vmem:[%s1 + $0x124] sm:$0xf]
      %v1180 = vld [vmem:[%s1 + $0x128] sm:$0xf]
      %v1181 = vld [vmem:[%s1 + $0x12c] sm:$0xf]
      %v1182 = vld [vmem:[%s1 + $0x130] sm:$0xf]
      %v1183 = vld [vmem:[%s1 + $0x134] sm:$0xf]
      %v1184 = vld [vmem:[%s1 + $0x138] sm:$0xf]
      %v1185 = vld [vmem:[%s1 + $0x13c] sm:$0xf]
      %v1186 = vld [vmem:[%s1 + $0x140] sm:$0xf]
      %v1187 = vld [vmem:[%s1 + $0x144] sm:$0xf]
      %v1188 = vld [vmem:[%s1 + $0x148] sm:$0xf]
      %v1189 = vld [vmem:[%s1 + $0x14c] sm:$0xf]
      %v1190 = vld [vmem:[%s1 + $0x150] sm:$0xf]
      %v1191 = vld [vmem:[%s1 + $0x154] sm:$0xf]
      %v1192 = vld [vmem:[%s1 + $0x158] sm:$0xf]
      %v1193 = vld [vmem:[%s1 + $0x15c] sm:$0xf]
      %v1194 = vld [vmem:[%s1 + $0x160] sm:$0xf]
      %v1195 = vld [vmem:[%s1 + $0x164] sm:$0xf]
      %v1196 = vld [vmem:[%s1 + $0x168] sm:$0xf]
      %v1197 = vld [vmem:[%s1 + $0x16c] sm:$0xf]
      %v1198 = vld [vmem:[%s1 + $0x170] sm:$0xf]
      %v1199 = vld [vmem:[%s1 + $0x174] sm:$0xf]
      %v1200 = vld [vmem:[%s1 + $0x178] sm:$0xf]
      %v1201 = vld [vmem:[%s1 + $0x17c] sm:$0xf]
      %v1202 = vld [vmem:[%s1 + $0x180] sm:$0xf]
      %v1203 = vld [vmem:[%s1 + $0x184] sm:$0xf]
      %v1204 = vld [vmem:[%s1 + $0x188] sm:$0xf]
      %v1205 = vld [vmem:[%s1 + $0x18c] sm:$0xf]
      %v1206 = vld [vmem:[%s1 + $0x190] sm:$0xf]
      %v1207 = vld [vmem:[%s1 + $0x194] sm:$0xf]
      %v1208 = vld [vmem:[%s1 + $0x198] sm:$0xf]
      %v1209 = vld [vmem:[%s1 + $0x19c] sm:$0xf]
      %v1210 = vld [vmem:[%s1 + $0x1a0] sm:$0xf]
      %v1211 = vld [vmem:[%s1 + $0x1a4] sm:$0xf]
      %v1212 = vld [vmem:[%s1 + $0x1a8] sm:$0xf]
      %v1213 = vld [vmem:[%s1 + $0x1ac] sm:$0xf]
      %v1214 = vld [vmem:[%s1 + $0x1b0] sm:$0xf]
      %v1215 = vld [vmem:[%s1 + $0x1b4] sm:$0xf]
      %v1216 = vld [vmem:[%s1 + $0x1b8] sm:$0xf]
      %v1217 = vld [vmem:[%s1 + $0x1bc] sm:$0xf]
      %v1218 = vld [vmem:[%s1 + $0x1c0] sm:$0xf]
      %v1219 = vld [vmem:[%s1 + $0x1c4] sm:$0xf]
      %v1220 = vld [vmem:[%s1 + $0x1c8] sm:$0xf]
      %v1221 = vld [vmem:[%s1 + $0x1cc] sm:$0xf]
      %v1222 = vld [vmem:[%s1 + $0x1d0] sm:$0xf]
      %v1223 = vld [vmem:[%s1 + $0x1d4] sm:$0xf]
      %v1224 = vld [vmem:[%s1 + $0x1d8] sm:$0xf]
      %v1225 = vld [vmem:[%s1 + $0x1dc] sm:$0xf]
      %v1226 = vld [vmem:[%s1 + $0x1e0] sm:$0xf]
      %v1227 = vld [vmem:[%s1 + $0x1e4] sm:$0xf]
      %v1228 = vld [vmem:[%s1 + $0x1e8] sm:$0xf]
      %v1229 = vld [vmem:[%s1 + $0x1ec] sm:$0xf]
      %v1230 = vld [vmem:[%s1 + $0x1f0] sm:$0xf]
      %v1231 = vld [vmem:[%s1 + $0x1f4] sm:$0xf]
      %v1232 = vld [vmem:[%s1 + $0x1f8] sm:$0xf]
      %v1233 = vld [vmem:[%s1 + $0x1fc] sm:$0xf]
      %v1234 = vld [vmem:[%s1 + $0x200] sm:$0xf]
      %v1235 = vld [vmem:[%s1 + $0x204] sm:$0xf]
      %v1236 = vld [vmem:[%s1 + $0x208] sm:$0xf]
      %v1237 = vld [vmem:[%s1 + $0x20c] sm:$0xf]
      %v1238 = vld [vmem:[%s1 + $0x210] sm:$0xf]
      %v1239 = vld [vmem:[%s1 + $0x214] sm:$0xf]
      %v1240 = vld [vmem:[%s1 + $0x218] sm:$0xf]
      %v1241 = vld [vmem:[%s1 + $0x21c] sm:$0xf]
      %v1242 = vld [vmem:[%s1 + $0x220] sm:$0xf]
      %v1243 = vld [vmem:[%s1 + $0x224] sm:$0xf]
      %v1244 = vld [vmem:[%s1 + $0x228] sm:$0xf]
      %v1245 = vld [vmem:[%s1 + $0x22c] sm:$0xf]
      %v1246 = vld [vmem:[%s1 + $0x230] sm:$0xf]
      %v1247 = vld [vmem:[%s1 + $0x234] sm:$0xf]
      %v1248 = vld [vmem:[%s1 + $0x238] sm:$0xf]
      %v1249 = vld [vmem:[%s1 + $0x23c] sm:$0xf]
      %v1394 = vunpack.c.l.b16 %v1106
      %v1395 = vunpack.c.l.b16 %v1107
      %v1396 = vunpack.c.l.b16 %v1108
      %v1397 = vunpack.c.l.b16 %v1109
      %v1398 = vunpack.c.l.b16 %v1110
      %v1399 = vunpack.c.l.b16 %v1111
      %v1400 = vunpack.c.l.b16 %v1112
      %v1401 = vunpack.c.l.b16 %v1113
      %v1402 = vunpack.c.l.b16 %v1114
      %v1403 = vunpack.c.l.b16 %v1115
      %v1404 = vunpack.c.l.b16 %v1116
      %v1405 = vunpack.c.l.b16 %v1117
      %v1406 = vunpack.c.l.b16 %v1118
      %v1407 = vunpack.c.l.b16 %v1119
      %v1408 = vunpack.c.l.b16 %v1120
      %v1409 = vunpack.c.l.b16 %v1121
      %v1410 = vunpack.c.l.b16 %v1122
      %v1411 = vunpack.c.l.b16 %v1123
      %v1412 = vunpack.c.l.b16 %v1124
      %v1413 = vunpack.c.l.b16 %v1125
      %v1414 = vunpack.c.l.b16 %v1126
      %v1415 = vunpack.c.l.b16 %v1127
      %v1416 = vunpack.c.l.b16 %v1128
      %v1417 = vunpack.c.l.b16 %v1129
      %v1418 = vunpack.c.l.b16 %v1130
      %v1419 = vunpack.c.l.b16 %v1131
      %v1420 = vunpack.c.l.b16 %v1132
      %v1421 = vunpack.c.l.b16 %v1133
      %v1422 = vunpack.c.l.b16 %v1134
      %v1423 = vunpack.c.l.b16 %v1135
      %v1424 = vunpack.c.l.b16 %v1136
      %v1425 = vunpack.c.l.b16 %v1137
      %v1426 = vunpack.c.l.b16 %v1138
      %v1427 = vunpack.c.l.b16 %v1139
      %v1428 = vunpack.c.l.b16 %v1140
      %v1429 = vunpack.c.l.b16 %v1141
      %v1430 = vunpack.c.l.b16 %v1142
      %v1431 = vunpack.c.l.b16 %v1143
      %v1432 = vunpack.c.l.b16 %v1144
      %v1433 = vunpack.c.l.b16 %v1145
      %v1434 = vunpack.c.l.b16 %v1146
      %v1435 = vunpack.c.l.b16 %v1147
      %v1436 = vunpack.c.l.b16 %v1148
      %v1437 = vunpack.c.l.b16 %v1149
      %v1438 = vunpack.c.l.b16 %v1150
      %v1439 = vunpack.c.l.b16 %v1151
      %v1440 = vunpack.c.l.b16 %v1152
      %v1441 = vunpack.c.l.b16 %v1153
      %v1442 = vunpack.c.l.b16 %v1154
      %v1443 = vunpack.c.l.b16 %v1155
      %v1444 = vunpack.c.l.b16 %v1156
      %v1445 = vunpack.c.l.b16 %v1157
      %v1446 = vunpack.c.l.b16 %v1158
      %v1447 = vunpack.c.l.b16 %v1159
      %v1448 = vunpack.c.l.b16 %v1160
      %v1449 = vunpack.c.l.b16 %v1161
      %v1450 = vunpack.c.l.b16 %v1162
      %v1451 = vunpack.c.l.b16 %v1163
      %v1452 = vunpack.c.l.b16 %v1164
      %v1453 = vunpack.c.l.b16 %v1165
      %v1454 = vunpack.c.l.b16 %v1166
      %v1455 = vunpack.c.l.b16 %v1167
      %v1456 = vunpack.c.l.b16 %v1168
      %v1457 = vunpack.c.l.b16 %v1169
      %v1458 = vunpack.c.l.b16 %v1170
      %v1459 = vunpack.c.l.b16 %v1171
      %v1460 = vunpack.c.l.b16 %v1172
      %v1461 = vunpack.c.l.b16 %v1173
      %v1462 = vunpack.c.l.b16 %v1174
      %v1463 = vunpack.c.l.b16 %v1175
      %v1464 = vunpack.c.l.b16 %v1176
      %v1465 = vunpack.c.l.b16 %v1177
      %v1466 = vunpack.c.l.b16 %v1178
      %v1467 = vunpack.c.l.b16 %v1179
      %v1468 = vunpack.c.l.b16 %v1180
      %v1469 = vunpack.c.l.b16 %v1181
      %v1470 = vunpack.c.l.b16 %v1182
      %v1471 = vunpack.c.l.b16 %v1183
      %v1472 = vunpack.c.l.b16 %v1184
      %v1473 = vunpack.c.l.b16 %v1185
      %v1474 = vunpack.c.l.b16 %v1186
      %v1475 = vunpack.c.l.b16 %v1187
      %v1476 = vunpack.c.l.b16 %v1188
      %v1477 = vunpack.c.l.b16 %v1189
      %v1478 = vunpack.c.l.b16 %v1190
      %v1479 = vunpack.c.l.b16 %v1191
      %v1480 = vunpack.c.l.b16 %v1192
      %v1481 = vunpack.c.l.b16 %v1193
      %v1482 = vunpack.c.l.b16 %v1194
      %v1483 = vunpack.c.l.b16 %v1195
      %v1484 = vunpack.c.l.b16 %v1196
      %v1485 = vunpack.c.l.b16 %v1197
      %v1486 = vunpack.c.l.b16 %v1198
      %v1487 = vunpack.c.l.b16 %v1199
      %v1488 = vunpack.c.l.b16 %v1200
      %v1489 = vunpack.c.l.b16 %v1201
      %v1490 = vunpack.c.l.b16 %v1202
      %v1491 = vunpack.c.l.b16 %v1203
      %v1492 = vunpack.c.l.b16 %v1204
      %v1493 = vunpack.c.l.b16 %v1205
      %v1494 = vunpack.c.l.b16 %v1206
      %v1495 = vunpack.c.l.b16 %v1207
      %v1496 = vunpack.c.l.b16 %v1208
      %v1497 = vunpack.c.l.b16 %v1209
      %v1498 = vunpack.c.l.b16 %v1210
      %v1499 = vunpack.c.l.b16 %v1211
      %v1500 = vunpack.c.l.b16 %v1212
      %v1501 = vunpack.c.l.b16 %v1213
      %v1502 = vunpack.c.l.b16 %v1214
      %v1503 = vunpack.c.l.b16 %v1215
      %v1504 = vunpack.c.l.b16 %v1216
      %v1505 = vunpack.c.l.b16 %v1217
      %v1506 = vunpack.c.l.b16 %v1218
      %v1507 = vunpack.c.l.b16 %v1219
      %v1508 = vunpack.c.l.b16 %v1220
      %v1509 = vunpack.c.l.b16 %v1221
      %v1510 = vunpack.c.l.b16 %v1222
      %v1511 = vunpack.c.l.b16 %v1223
      %v1512 = vunpack.c.l.b16 %v1224
      %v1513 = vunpack.c.l.b16 %v1225
      %v1514 = vunpack.c.l.b16 %v1226
      %v1515 = vunpack.c.l.b16 %v1227
      %v1516 = vunpack.c.l.b16 %v1228
      %v1517 = vunpack.c.l.b16 %v1229
      %v1518 = vunpack.c.l.b16 %v1230
      %v1519 = vunpack.c.l.b16 %v1231
      %v1520 = vunpack.c.l.b16 %v1232
      %v1521 = vunpack.c.l.b16 %v1233
      %v1522 = vunpack.c.l.b16 %v1234
      %v1523 = vunpack.c.l.b16 %v1235
      %v1524 = vunpack.c.l.b16 %v1236
      %v1525 = vunpack.c.l.b16 %v1237
      %v1526 = vunpack.c.l.b16 %v1238
      %v1527 = vunpack.c.l.b16 %v1239
      %v1528 = vunpack.c.l.b16 %v1240
      %v1529 = vunpack.c.l.b16 %v1241
      %v1530 = vunpack.c.l.b16 %v1242
      %v1531 = vunpack.c.l.b16 %v1243
      %v1532 = vunpack.c.l.b16 %v1244
      %v1533 = vunpack.c.l.b16 %v1245
      %v1534 = vunpack.c.l.b16 %v1246
      %v1535 = vunpack.c.l.b16 %v1247
      %v1536 = vunpack.c.l.b16 %v1248
      %v1537 = vunpack.c.l.b16 %v1249
      %v1538 = vpack.c.b16 %v1395, %v1394
      %v1539 = vpack.c.b16 %v1397, %v1396
      %v1540 = vpack.c.b16 %v1399, %v1398
      %v1541 = vpack.c.b16 %v1401, %v1400
      %v1542 = vpack.c.b16 %v1403, %v1402
      %v1543 = vpack.c.b16 %v1405, %v1404
      %v1544 = vpack.c.b16 %v1407, %v1406
      %v1545 = vpack.c.b16 %v1409, %v1408
      %v1546 = vpack.c.b16 %v1411, %v1410
      %v1547 = vpack.c.b16 %v1413, %v1412
      %v1548 = vpack.c.b16 %v1415, %v1414
      %v1549 = vpack.c.b16 %v1417, %v1416
      %v1550 = vpack.c.b16 %v1419, %v1418
      %v1551 = vpack.c.b16 %v1421, %v1420
      %v1552 = vpack.c.b16 %v1423, %v1422
      %v1553 = vpack.c.b16 %v1425, %v1424
      %v1554 = vpack.c.b16 %v1427, %v1426
      %v1555 = vpack.c.b16 %v1429, %v1428
      %v1556 = vpack.c.b16 %v1431, %v1430
      %v1557 = vpack.c.b16 %v1433, %v1432
      %v1558 = vpack.c.b16 %v1435, %v1434
      %v1559 = vpack.c.b16 %v1437, %v1436
      %v1560 = vpack.c.b16 %v1439, %v1438
      %v1561 = vpack.c.b16 %v1441, %v1440
      %v1562 = vpack.c.b16 %v1443, %v1442
      %v1563 = vpack.c.b16 %v1445, %v1444
      %v1564 = vpack.c.b16 %v1447, %v1446
      %v1565 = vpack.c.b16 %v1449, %v1448
      %v1566 = vpack.c.b16 %v1451, %v1450
      %v1567 = vpack.c.b16 %v1453, %v1452
      %v1568 = vpack.c.b16 %v1455, %v1454
      %v1569 = vpack.c.b16 %v1457, %v1456
      %v1570 = vpack.c.b16 %v1459, %v1458
      %v1571 = vpack.c.b16 %v1461, %v1460
      %v1572 = vpack.c.b16 %v1463, %v1462
      %v1573 = vpack.c.b16 %v1465, %v1464
      %v1574 = vpack.c.b16 %v1467, %v1466
      %v1575 = vpack.c.b16 %v1469, %v1468
      %v1576 = vpack.c.b16 %v1471, %v1470
      %v1577 = vpack.c.b16 %v1473, %v1472
      %v1578 = vpack.c.b16 %v1475, %v1474
      %v1579 = vpack.c.b16 %v1477, %v1476
      %v1580 = vpack.c.b16 %v1479, %v1478
      %v1581 = vpack.c.b16 %v1481, %v1480
      %v1582 = vpack.c.b16 %v1483, %v1482
      %v1583 = vpack.c.b16 %v1485, %v1484
      %v1584 = vpack.c.b16 %v1487, %v1486
      %v1585 = vpack.c.b16 %v1489, %v1488
      %v1586 = vpack.c.b16 %v1491, %v1490
      %v1587 = vpack.c.b16 %v1493, %v1492
      %v1588 = vpack.c.b16 %v1495, %v1494
      %v1589 = vpack.c.b16 %v1497, %v1496
      %v1590 = vpack.c.b16 %v1499, %v1498
      %v1591 = vpack.c.b16 %v1501, %v1500
      %v1592 = vpack.c.b16 %v1503, %v1502
      %v1593 = vpack.c.b16 %v1505, %v1504
      %v1594 = vpack.c.b16 %v1507, %v1506
      %v1595 = vpack.c.b16 %v1509, %v1508
      %v1596 = vpack.c.b16 %v1511, %v1510
      %v1597 = vpack.c.b16 %v1513, %v1512
      %v1598 = vpack.c.b16 %v1515, %v1514
      %v1599 = vpack.c.b16 %v1517, %v1516
      %v1600 = vpack.c.b16 %v1519, %v1518
      %v1601 = vpack.c.b16 %v1521, %v1520
      %v1602 = vpack.c.b16 %v1523, %v1522
      %v1603 = vpack.c.b16 %v1525, %v1524
      %v1604 = vpack.c.b16 %v1527, %v1526
      %v1605 = vpack.c.b16 %v1529, %v1528
      %v1606 = vpack.c.b16 %v1531, %v1530
      %v1607 = vpack.c.b16 %v1533, %v1532
      %v1608 = vpack.c.b16 %v1535, %v1534
      %v1609 = vpack.c.b16 %v1537, %v1536
      %1682 = vmatpush.bf16.msra.mxu0 %v1545
      %1683 = vmatpush.bf16.msra.mxu0 %v1544
      %1684 = vmatpush.bf16.msra.mxu0 %v1543
      %1685 = vmatpush.bf16.msra.mxu0 %v1542
      %1686 = vmatpush.bf16.msra.mxu0 %v1541
      %1687 = vmatpush.bf16.msra.mxu0 %v1540
      %1688 = vmatpush.bf16.msra.mxu0 %v1539
      %1689 = vmatpush.bf16.msra.mxu0 %v1538
      %1690 = vmatmul.bf16.gmra.mxu0 %v1002
      %v1691 = vpop.f32.mrf.mxu0
      %v1692 = vadd.f32 0.0, %v1691
      %v1693 = vpop.f32.mrf.mxu0
      %v1694 = vadd.f32 0.0, %v1693
      %1695 = vmatmul.bf16.gmra.mxu0 %v1003
      %v1696 = vpop.f32.mrf.mxu0
      %v1697 = vadd.f32 0.0, %v1696
      %v1698 = vpop.f32.mrf.mxu0
      %v1699 = vadd.f32 0.0, %v1698
      %1700 = vmatmul.bf16.gmra.mxu0 %v1004
      %v1701 = vpop.f32.mrf.mxu0
      %v1702 = vadd.f32 0.0, %v1701
      %v1703 = vpop.f32.mrf.mxu0
      %v1704 = vadd.f32 0.0, %v1703
      %1705 = vmatmul.bf16.gmra.mxu0 %v1005
      %v1706 = vpop.f32.mrf.mxu0
      %v1707 = vadd.f32 0.0, %v1706
      %v1708 = vpop.f32.mrf.mxu0
      %v1709 = vadd.f32 0.0, %v1708
      %1710 = vmatmul.bf16.gmra.mxu0 %v1006
      %v1711 = vpop.f32.mrf.mxu0
      %v1712 = vadd.f32 0.0, %v1711
      %v1713 = vpop.f32.mrf.mxu0
      %v1714 = vadd.f32 0.0, %v1713
      %1715 = vmatmul.bf16.gmra.mxu0 %v1007
      %v1716 = vpop.f32.mrf.mxu0
      %v1717 = vadd.f32 0.0, %v1716
      %v1718 = vpop.f32.mrf.mxu0
      %v1719 = vadd.f32 0.0, %v1718
      %1720 = vmatmul.bf16.gmra.mxu0 %v1008
      %v1721 = vpop.f32.mrf.mxu0
      %v1722 = vadd.f32 0.0, %v1721
      %v1723 = vpop.f32.mrf.mxu0
      %v1724 = vadd.f32 0.0, %v1723
      %1725 = vmatmul.bf16.gmra.mxu0 %v1009
      %v1726 = vpop.f32.mrf.mxu0
      %v1727 = vadd.f32 0.0, %v1726
      %v1728 = vpop.f32.mrf.mxu0
      %v1729 = vadd.f32 0.0, %v1728
      %1730 = vdwg.mxu0
      %1731 = vmatpush.bf16.msra.mxu0 %v1553
      %1732 = vmatpush.bf16.msra.mxu0 %v1552
      %1733 = vmatpush.bf16.msra.mxu0 %v1551
      %1734 = vmatpush.bf16.msra.mxu0 %v1550
      %1735 = vmatpush.bf16.msra.mxu0 %v1549
      %1736 = vmatpush.bf16.msra.mxu0 %v1548
      %1737 = vmatpush.bf16.msra.mxu0 %v1547
      %1738 = vmatpush.bf16.msra.mxu0 %v1546
      %1739 = vmatmul.bf16.gmra.mxu0 %v1034
      %v1740 = vpop.f32.mrf.mxu0
      %v1741 = vadd.f32 %v1692, %v1740
      %v1742 = vpop.f32.mrf.mxu0
      %v1743 = vadd.f32 %v1694, %v1742
      %1744 = vmatmul.bf16.gmra.mxu0 %v1035
      %v1745 = vpop.f32.mrf.mxu0
      %v1746 = vadd.f32 %v1697, %v1745
      %v1747 = vpop.f32.mrf.mxu0
      %v1748 = vadd.f32 %v1699, %v1747
      %1749 = vmatmul.bf16.gmra.mxu0 %v1036
      %v1750 = vpop.f32.mrf.mxu0
      %v1751 = vadd.f32 %v1702, %v1750
      %v1752 = vpop.f32.mrf.mxu0
      %v1753 = vadd.f32 %v1704, %v1752
      %1754 = vmatmul.bf16.gmra.mxu0 %v1037
      %v1755 = vpop.f32.mrf.mxu0
      %v1756 = vadd.f32 %v1707, %v1755
      %v1757 = vpop.f32.mrf.mxu0
      %v1758 = vadd.f32 %v1709, %v1757
      %1759 = vmatmul.bf16.gmra.mxu0 %v1038
      %v1760 = vpop.f32.mrf.mxu0
      %v1761 = vadd.f32 %v1712, %v1760
      %v1762 = vpop.f32.mrf.mxu0
      %v1763 = vadd.f32 %v1714, %v1762
      %1764 = vmatmul.bf16.gmra.mxu0 %v1039
      %v1765 = vpop.f32.mrf.mxu0
      %v1766 = vadd.f32 %v1717, %v1765
      %v1767 = vpop.f32.mrf.mxu0
      %v1768 = vadd.f32 %v1719, %v1767
      %1769 = vmatmul.bf16.gmra.mxu0 %v1040
      %v1770 = vpop.f32.mrf.mxu0
      %v1771 = vadd.f32 %v1722, %v1770
      %v1772 = vpop.f32.mrf.mxu0
      %v1773 = vadd.f32 %v1724, %v1772
      %1774 = vmatmul.bf16.gmra.mxu0 %v1041
      %v1775 = vpop.f32.mrf.mxu0
      %v1776 = vadd.f32 %v1727, %v1775
      %v1777 = vpop.f32.mrf.mxu0
      %v1778 = vadd.f32 %v1729, %v1777
      %1779 = vdwg.mxu0
      %1780 = vmatpush.bf16.msra.mxu0 %v1561
      %1781 = vmatpush.bf16.msra.mxu0 %v1560
      %1782 = vmatpush.bf16.msra.mxu0 %v1559
      %1783 = vmatpush.bf16.msra.mxu0 %v1558
      %1784 = vmatpush.bf16.msra.mxu0 %v1557
      %1785 = vmatpush.bf16.msra.mxu0 %v1556
      %1786 = vmatpush.bf16.msra.mxu0 %v1555
      %1787 = vmatpush.bf16.msra.mxu0 %v1554
      %1788 = vmatmul.bf16.gmra.mxu0 %v1066
      %v1789 = vpop.f32.mrf.mxu0
      %v1790 = vadd.f32 %v1741, %v1789
      %v1791 = vpop.f32.mrf.mxu0
      %v1792 = vadd.f32 %v1743, %v1791
      %1793 = vmatmul.bf16.gmra.mxu0 %v1067
      %v1794 = vpop.f32.mrf.mxu0
      %v1795 = vadd.f32 %v1746, %v1794
      %v1796 = vpop.f32.mrf.mxu0
      %v1797 = vadd.f32 %v1748, %v1796
      %1798 = vmatmul.bf16.gmra.mxu0 %v1068
      %v1799 = vpop.f32.mrf.mxu0
      %v1800 = vadd.f32 %v1751, %v1799
      %v1801 = vpop.f32.mrf.mxu0
      %v1802 = vadd.f32 %v1753, %v1801
      %1803 = vmatmul.bf16.gmra.mxu0 %v1069
      %v1804 = vpop.f32.mrf.mxu0
      %v1805 = vadd.f32 %v1756, %v1804
      %v1806 = vpop.f32.mrf.mxu0
      %v1807 = vadd.f32 %v1758, %v1806
      %1808 = vmatmul.bf16.gmra.mxu0 %v1070
      %v1809 = vpop.f32.mrf.mxu0
      %v1810 = vadd.f32 %v1761, %v1809
      %v1811 = vpop.f32.mrf.mxu0
      %v1812 = vadd.f32 %v1763, %v1811
      %1813 = vmatmul.bf16.gmra.mxu0 %v1071
      %v1814 = vpop.f32.mrf.mxu0
      %v1815 = vadd.f32 %v1766, %v1814
      %v1816 = vpop.f32.mrf.mxu0
      %v1817 = vadd.f32 %v1768, %v1816
      %1818 = vmatmul.bf16.gmra.mxu0 %v1072
      %v1819 = vpop.f32.mrf.mxu0
      %v1820 = vadd.f32 %v1771, %v1819
      %v1821 = vpop.f32.mrf.mxu0
      %v1822 = vadd.f32 %v1773, %v1821
      %1823 = vmatmul.bf16.gmra.mxu0 %v1073
      %v1824 = vpop.f32.mrf.mxu0
      %v1825 = vadd.f32 %v1776, %v1824
      %v1826 = vpop.f32.mrf.mxu0
      %v1827 = vadd.f32 %v1778, %v1826
      %1828 = vdwg.mxu0
      %1829 = vmatpush.bf16.msra.mxu0 %v1569
      %1830 = vmatpush.bf16.msra.mxu0 %v1568
      %1831 = vmatpush.bf16.msra.mxu0 %v1567
      %1832 = vmatpush.bf16.msra.mxu0 %v1566
      %1833 = vmatpush.bf16.msra.mxu0 %v1565
      %1834 = vmatpush.bf16.msra.mxu0 %v1564
      %1835 = vmatpush.bf16.msra.mxu0 %v1563
      %1836 = vmatpush.bf16.msra.mxu0 %v1562
      %1837 = vmatmul.bf16.gmra.mxu0 %v1003
      %v1838 = vpop.f32.mrf.mxu0
      %v1839 = vadd.f32 %v1790, %v1838
      %v1840 = vpop.f32.mrf.mxu0
      %v1841 = vadd.f32 %v1792, %v1840
      %1842 = vmatmul.bf16.gmra.mxu0 %v1004
      %v1843 = vpop.f32.mrf.mxu0
      %v1844 = vadd.f32 %v1795, %v1843
      %v1845 = vpop.f32.mrf.mxu0
      %v1846 = vadd.f32 %v1797, %v1845
      %1847 = vmatmul.bf16.gmra.mxu0 %v1005
      %v1848 = vpop.f32.mrf.mxu0
      %v1849 = vadd.f32 %v1800, %v1848
      %v1850 = vpop.f32.mrf.mxu0
      %v1851 = vadd.f32 %v1802, %v1850
      %1852 = vmatmul.bf16.gmra.mxu0 %v1006
      %v1853 = vpop.f32.mrf.mxu0
      %v1854 = vadd.f32 %v1805, %v1853
      %v1855 = vpop.f32.mrf.mxu0
      %v1856 = vadd.f32 %v1807, %v1855
      %1857 = vmatmul.bf16.gmra.mxu0 %v1007
      %v1858 = vpop.f32.mrf.mxu0
      %v1859 = vadd.f32 %v1810, %v1858
      %v1860 = vpop.f32.mrf.mxu0
      %v1861 = vadd.f32 %v1812, %v1860
      %1862 = vmatmul.bf16.gmra.mxu0 %v1008
      %v1863 = vpop.f32.mrf.mxu0
      %v1864 = vadd.f32 %v1815, %v1863
      %v1865 = vpop.f32.mrf.mxu0
      %v1866 = vadd.f32 %v1817, %v1865
      %1867 = vmatmul.bf16.gmra.mxu0 %v1009
      %v1868 = vpop.f32.mrf.mxu0
      %v1869 = vadd.f32 %v1820, %v1868
      %v1870 = vpop.f32.mrf.mxu0
      %v1871 = vadd.f32 %v1822, %v1870
      %1872 = vmatmul.bf16.gmra.mxu0 %v1084
      %v1873 = vpop.f32.mrf.mxu0
      %v1874 = vadd.f32 %v1825, %v1873
      %v1875 = vpop.f32.mrf.mxu0
      %v1876 = vadd.f32 %v1827, %v1875
      %1877 = vdwg.mxu0
      %1878 = vmatpush.bf16.msra.mxu0 %v1577
      %1879 = vmatpush.bf16.msra.mxu0 %v1576
      %1880 = vmatpush.bf16.msra.mxu0 %v1575
      %1881 = vmatpush.bf16.msra.mxu0 %v1574
      %1882 = vmatpush.bf16.msra.mxu0 %v1573
      %1883 = vmatpush.bf16.msra.mxu0 %v1572
      %1884 = vmatpush.bf16.msra.mxu0 %v1571
      %1885 = vmatpush.bf16.msra.mxu0 %v1570
      %1886 = vmatmul.bf16.gmra.mxu0 %v1035
      %v1887 = vpop.f32.mrf.mxu0
      %v1888 = vadd.f32 %v1839, %v1887
      %v1889 = vpop.f32.mrf.mxu0
      %v1890 = vadd.f32 %v1841, %v1889
      %1891 = vmatmul.bf16.gmra.mxu0 %v1036
      %v1892 = vpop.f32.mrf.mxu0
      %v1893 = vadd.f32 %v1844, %v1892
      %v1894 = vpop.f32.mrf.mxu0
      %v1895 = vadd.f32 %v1846, %v1894
      %1896 = vmatmul.bf16.gmra.mxu0 %v1037
      %v1897 = vpop.f32.mrf.mxu0
      %v1898 = vadd.f32 %v1849, %v1897
      %v1899 = vpop.f32.mrf.mxu0
      %v1900 = vadd.f32 %v1851, %v1899
      %1901 = vmatmul.bf16.gmra.mxu0 %v1038
      %v1902 = vpop.f32.mrf.mxu0
      %v1903 = vadd.f32 %v1854, %v1902
      %v1904 = vpop.f32.mrf.mxu0
      %v1905 = vadd.f32 %v1856, %v1904
      %1906 = vmatmul.bf16.gmra.mxu0 %v1039
      %v1907 = vpop.f32.mrf.mxu0
      %v1908 = vadd.f32 %v1859, %v1907
      %v1909 = vpop.f32.mrf.mxu0
      %v1910 = vadd.f32 %v1861, %v1909
      %1911 = vmatmul.bf16.gmra.mxu0 %v1040
      %v1912 = vpop.f32.mrf.mxu0
      %v1913 = vadd.f32 %v1864, %v1912
      %v1914 = vpop.f32.mrf.mxu0
      %v1915 = vadd.f32 %v1866, %v1914
      %1916 = vmatmul.bf16.gmra.mxu0 %v1041
      %v1917 = vpop.f32.mrf.mxu0
      %v1918 = vadd.f32 %v1869, %v1917
      %v1919 = vpop.f32.mrf.mxu0
      %v1920 = vadd.f32 %v1871, %v1919
      %1921 = vmatmul.bf16.gmra.mxu0 %v1088
      %v1922 = vpop.f32.mrf.mxu0
      %v1923 = vadd.f32 %v1874, %v1922
      %v1924 = vpop.f32.mrf.mxu0
      %v1925 = vadd.f32 %v1876, %v1924
      %1926 = vdwg.mxu0
      %1927 = vmatpush.bf16.msra.mxu0 %v1585
      %1928 = vmatpush.bf16.msra.mxu0 %v1584
      %1929 = vmatpush.bf16.msra.mxu0 %v1583
      %1930 = vmatpush.bf16.msra.mxu0 %v1582
      %1931 = vmatpush.bf16.msra.mxu0 %v1581
      %1932 = vmatpush.bf16.msra.mxu0 %v1580
      %1933 = vmatpush.bf16.msra.mxu0 %v1579
      %1934 = vmatpush.bf16.msra.mxu0 %v1578
      %1935 = vmatmul.bf16.gmra.mxu0 %v1067
      %v1936 = vpop.f32.mrf.mxu0
      %v1937 = vadd.f32 %v1888, %v1936
      %v1938 = vpop.f32.mrf.mxu0
      %v1939 = vadd.f32 %v1890, %v1938
      %1940 = vmatmul.bf16.gmra.mxu0 %v1068
      %v1941 = vpop.f32.mrf.mxu0
      %v1942 = vadd.f32 %v1893, %v1941
      %v1943 = vpop.f32.mrf.mxu0
      %v1944 = vadd.f32 %v1895, %v1943
      %1945 = vmatmul.bf16.gmra.mxu0 %v1069
      %v1946 = vpop.f32.mrf.mxu0
      %v1947 = vadd.f32 %v1898, %v1946
      %v1948 = vpop.f32.mrf.mxu0
      %v1949 = vadd.f32 %v1900, %v1948
      %1950 = vmatmul.bf16.gmra.mxu0 %v1070
      %v1951 = vpop.f32.mrf.mxu0
      %v1952 = vadd.f32 %v1903, %v1951
      %v1953 = vpop.f32.mrf.mxu0
      %v1954 = vadd.f32 %v1905, %v1953
      %1955 = vmatmul.bf16.gmra.mxu0 %v1071
      %v1956 = vpop.f32.mrf.mxu0
      %v1957 = vadd.f32 %v1908, %v1956
      %v1958 = vpop.f32.mrf.mxu0
      %v1959 = vadd.f32 %v1910, %v1958
      %1960 = vmatmul.bf16.gmra.mxu0 %v1072
      %v1961 = vpop.f32.mrf.mxu0
      %v1962 = vadd.f32 %v1913, %v1961
      %v1963 = vpop.f32.mrf.mxu0
      %v1964 = vadd.f32 %v1915, %v1963
      %1965 = vmatmul.bf16.gmra.mxu0 %v1073
      %v1966 = vpop.f32.mrf.mxu0
      %v1967 = vadd.f32 %v1918, %v1966
      %v1968 = vpop.f32.mrf.mxu0
      %v1969 = vadd.f32 %v1920, %v1968
      %1970 = vmatmul.bf16.gmra.mxu0 %v1092
      %v1971 = vpop.f32.mrf.mxu0
      %v1972 = vadd.f32 %v1923, %v1971
      %v1973 = vpop.f32.mrf.mxu0
      %v1974 = vadd.f32 %v1925, %v1973
      %1975 = vdwg.mxu0
      %1976 = vmatpush.bf16.msra.mxu0 %v1593
      %1977 = vmatpush.bf16.msra.mxu0 %v1592
      %1978 = vmatpush.bf16.msra.mxu0 %v1591
      %1979 = vmatpush.bf16.msra.mxu0 %v1590
      %1980 = vmatpush.bf16.msra.mxu0 %v1589
      %1981 = vmatpush.bf16.msra.mxu0 %v1588
      %1982 = vmatpush.bf16.msra.mxu0 %v1587
      %1983 = vmatpush.bf16.msra.mxu0 %v1586
      %1984 = vmatmul.bf16.gmra.mxu0 %v1004
      %v1985 = vpop.f32.mrf.mxu0
      %v1986 = vadd.f32 %v1937, %v1985
      %v1987 = vpop.f32.mrf.mxu0
      %v1988 = vadd.f32 %v1939, %v1987
      %1989 = vmatmul.bf16.gmra.mxu0 %v1005
      %v1990 = vpop.f32.mrf.mxu0
      %v1991 = vadd.f32 %v1942, %v1990
      %v1992 = vpop.f32.mrf.mxu0
      %v1993 = vadd.f32 %v1944, %v1992
      %1994 = vmatmul.bf16.gmra.mxu0 %v1006
      %v1995 = vpop.f32.mrf.mxu0
      %v1996 = vadd.f32 %v1947, %v1995
      %v1997 = vpop.f32.mrf.mxu0
      %v1998 = vadd.f32 %v1949, %v1997
      %1999 = vmatmul.bf16.gmra.mxu0 %v1007
      %v2000 = vpop.f32.mrf.mxu0
      %v2001 = vadd.f32 %v1952, %v2000
      %v2002 = vpop.f32.mrf.mxu0
      %v2003 = vadd.f32 %v1954, %v2002
      %2004 = vmatmul.bf16.gmra.mxu0 %v1008
      %v2005 = vpop.f32.mrf.mxu0
      %v2006 = vadd.f32 %v1957, %v2005
      %v2007 = vpop.f32.mrf.mxu0
      %v2008 = vadd.f32 %v1959, %v2007
      %2009 = vmatmul.bf16.gmra.mxu0 %v1009
      %v2010 = vpop.f32.mrf.mxu0
      %v2011 = vadd.f32 %v1962, %v2010
      %v2012 = vpop.f32.mrf.mxu0
      %v2013 = vadd.f32 %v1964, %v2012
      %2014 = vmatmul.bf16.gmra.mxu0 %v1084
      %v2015 = vpop.f32.mrf.mxu0
      %v2016 = vadd.f32 %v1967, %v2015
      %v2017 = vpop.f32.mrf.mxu0
      %v2018 = vadd.f32 %v1969, %v2017
      %2019 = vmatmul.bf16.gmra.mxu0 %v1096
      %v2020 = vpop.f32.mrf.mxu0
      %v2021 = vadd.f32 %v1972, %v2020
      %v2022 = vpop.f32.mrf.mxu0
      %v2023 = vadd.f32 %v1974, %v2022
      %2024 = vdwg.mxu0
      %2025 = vmatpush.bf16.msra.mxu0 %v1601
      %2026 = vmatpush.bf16.msra.mxu0 %v1600
      %2027 = vmatpush.bf16.msra.mxu0 %v1599
      %2028 = vmatpush.bf16.msra.mxu0 %v1598
      %2029 = vmatpush.bf16.msra.mxu0 %v1597
      %2030 = vmatpush.bf16.msra.mxu0 %v1596
      %2031 = vmatpush.bf16.msra.mxu0 %v1595
      %2032 = vmatpush.bf16.msra.mxu0 %v1594
      %2033 = vmatmul.bf16.gmra.mxu0 %v1036
      %v2034 = vpop.f32.mrf.mxu0
      %v2035 = vadd.f32 %v1986, %v2034
      %v2036 = vpop.f32.mrf.mxu0
      %v2037 = vadd.f32 %v1988, %v2036
      %2038 = vmatmul.bf16.gmra.mxu0 %v1037
      %v2039 = vpop.f32.mrf.mxu0
      %v2040 = vadd.f32 %v1991, %v2039
      %v2041 = vpop.f32.mrf.mxu0
      %v2042 = vadd.f32 %v1993, %v2041
      %2043 = vmatmul.bf16.gmra.mxu0 %v1038
      %v2044 = vpop.f32.mrf.mxu0
      %v2045 = vadd.f32 %v1996, %v2044
      %v2046 = vpop.f32.mrf.mxu0
      %v2047 = vadd.f32 %v1998, %v2046
      %2048 = vmatmul.bf16.gmra.mxu0 %v1039
      %v2049 = vpop.f32.mrf.mxu0
      %v2050 = vadd.f32 %v2001, %v2049
      %v2051 = vpop.f32.mrf.mxu0
      %v2052 = vadd.f32 %v2003, %v2051
      %2053 = vmatmul.bf16.gmra.mxu0 %v1040
      %v2054 = vpop.f32.mrf.mxu0
      %v2055 = vadd.f32 %v2006, %v2054
      %v2056 = vpop.f32.mrf.mxu0
      %v2057 = vadd.f32 %v2008, %v2056
      %2058 = vmatmul.bf16.gmra.mxu0 %v1041
      %v2059 = vpop.f32.mrf.mxu0
      %v2060 = vadd.f32 %v2011, %v2059
      %v2061 = vpop.f32.mrf.mxu0
      %v2062 = vadd.f32 %v2013, %v2061
      %2063 = vmatmul.bf16.gmra.mxu0 %v1088
      %v2064 = vpop.f32.mrf.mxu0
      %v2065 = vadd.f32 %v2016, %v2064
      %v2066 = vpop.f32.mrf.mxu0
      %v2067 = vadd.f32 %v2018, %v2066
      %2068 = vmatmul.bf16.gmra.mxu0 %v1100
      %v2069 = vpop.f32.mrf.mxu0
      %v2070 = vadd.f32 %v2021, %v2069
      %v2071 = vpop.f32.mrf.mxu0
      %v2072 = vadd.f32 %v2023, %v2071
      %2073 = vdwg.mxu0
      %2074 = vmatpush.bf16.msra.mxu0 %v1609
      %2075 = vmatpush.bf16.msra.mxu0 %v1608
      %2076 = vmatpush.bf16.msra.mxu0 %v1607
      %2077 = vmatpush.bf16.msra.mxu0 %v1606
      %2078 = vmatpush.bf16.msra.mxu0 %v1605
      %2079 = vmatpush.bf16.msra.mxu0 %v1604
      %2080 = vmatpush.bf16.msra.mxu0 %v1603
      %2081 = vmatpush.bf16.msra.mxu0 %v1602
      %2082 = vmatmul.bf16.gmra.mxu0 %v1068
      %v2083 = vpop.f32.mrf.mxu0
      %v2084 = vadd.f32 %v2035, %v2083
      %v2085 = vpop.f32.mrf.mxu0
      %v2086 = vadd.f32 %v2037, %v2085
      %2087 = vmatmul.bf16.gmra.mxu0 %v1069
      %v2088 = vpop.f32.mrf.mxu0
      %v2089 = vadd.f32 %v2040, %v2088
      %v2090 = vpop.f32.mrf.mxu0
      %v2091 = vadd.f32 %v2042, %v2090
      %2092 = vmatmul.bf16.gmra.mxu0 %v1070
      %v2093 = vpop.f32.mrf.mxu0
      %v2094 = vadd.f32 %v2045, %v2093
      %v2095 = vpop.f32.mrf.mxu0
      %v2096 = vadd.f32 %v2047, %v2095
      %2097 = vmatmul.bf16.gmra.mxu0 %v1071
      %v2098 = vpop.f32.mrf.mxu0
      %v2099 = vadd.f32 %v2050, %v2098
      %v2100 = vpop.f32.mrf.mxu0
      %v2101 = vadd.f32 %v2052, %v2100
      %2102 = vmatmul.bf16.gmra.mxu0 %v1072
      %v2103 = vpop.f32.mrf.mxu0
      %v2104 = vadd.f32 %v2055, %v2103
      %v2105 = vpop.f32.mrf.mxu0
      %v2106 = vadd.f32 %v2057, %v2105
      %2107 = vmatmul.bf16.gmra.mxu0 %v1073
      %v2108 = vpop.f32.mrf.mxu0
      %v2109 = vadd.f32 %v2060, %v2108
      %v2110 = vpop.f32.mrf.mxu0
      %v2111 = vadd.f32 %v2062, %v2110
      %2112 = vmatmul.bf16.gmra.mxu0 %v1092
      %v2113 = vpop.f32.mrf.mxu0
      %v2114 = vadd.f32 %v2065, %v2113
      %v2115 = vpop.f32.mrf.mxu0
      %v2116 = vadd.f32 %v2067, %v2115
      %2117 = vmatmul.bf16.gmra.mxu0 %v1104
      %v2118 = vpop.f32.mrf.mxu0
      %v2119 = vadd.f32 %v2070, %v2118
      %v2120 = vpop.f32.mrf.mxu0
      %v2121 = vadd.f32 %v2072, %v2120
      %2122 = vdwg.mxu0
      %v2123 = vadd.f32 %v2084, %v2086
      %v2124 = vadd.f32 %v2123, %v2089
      %v2125 = vadd.f32 %v2124, %v2091
      %v2126 = vadd.f32 %v2125, %v2094
      %v2127 = vadd.f32 %v2126, %v2096
      %v2128 = vadd.f32 %v2127, %v2099
      %v2129 = vadd.f32 %v2128, %v2101
      %v2130 = vadd.f32 %v2129, %v2104
      %v2131 = vadd.f32 %v2130, %v2106
      %v2132 = vadd.f32 %v2131, %v2109
      %v2133 = vadd.f32 %v2132, %v2111
      %v2134 = vadd.f32 %v2133, %v2114
      %v2135 = vadd.f32 %v2134, %v2116
      %v2136 = vadd.f32 %v2135, %v2119
      %v2137 = vadd.f32 %v2136, %v2121
      %v2138 = vrot.slane %v2137, 4
      %v2139 = vadd.f32 %v2137, %v2138
      %v2140 = vrot.slane %v2139, 2
      %v2141 = vadd.f32 %v2139, %v2140
      %v2142 = vrot.slane %v2141, 1
      %v2143 = vadd.f32 %v2141, %v2142
      %v2144 = vmul.f32 %v2084, %v2084
      %v2145 = vmul.f32 %v2086, %v2086
      %v2146 = vmul.f32 %v2089, %v2089
      %v2147 = vmul.f32 %v2091, %v2091
      %v2148 = vmul.f32 %v2094, %v2094
      %v2149 = vmul.f32 %v2096, %v2096
      %v2150 = vmul.f32 %v2099, %v2099
      %v2151 = vmul.f32 %v2101, %v2101
      %v2152 = vmul.f32 %v2104, %v2104
      %v2153 = vmul.f32 %v2106, %v2106
      %v2154 = vmul.f32 %v2109, %v2109
      %v2155 = vmul.f32 %v2111, %v2111
      %v2156 = vmul.f32 %v2114, %v2114
      %v2157 = vmul.f32 %v2116, %v2116
      %v2158 = vmul.f32 %v2119, %v2119
      %v2159 = vmul.f32 %v2121, %v2121
      %v2160 = vadd.f32 %v2144, %v2145
      %v2161 = vadd.f32 %v2160, %v2146
      %v2162 = vadd.f32 %v2161, %v2147
      %v2163 = vadd.f32 %v2162, %v2148
      %v2164 = vadd.f32 %v2163, %v2149
      %v2165 = vadd.f32 %v2164, %v2150
      %v2166 = vadd.f32 %v2165, %v2151
      %v2167 = vadd.f32 %v2166, %v2152
      %v2168 = vadd.f32 %v2167, %v2153
      %v2169 = vadd.f32 %v2168, %v2154
      %v2170 = vadd.f32 %v2169, %v2155
      %v2171 = vadd.f32 %v2170, %v2156
      %v2172 = vadd.f32 %v2171, %v2157
      %v2173 = vadd.f32 %v2172, %v2158
      %v2174 = vadd.f32 %v2173, %v2159
      %v2175 = vrot.slane %v2174, 4
      %v2176 = vadd.f32 %v2174, %v2175
      %v2177 = vrot.slane %v2176, 2
      %v2178 = vadd.f32 %v2176, %v2177
      %v2179 = vrot.slane %v2178, 1
      %v2180 = vadd.f32 %v2178, %v2179
      %vm2181 = vcmask 1040384
      %v2182 = vsel %vm2181, %v2143, %v2180
      %2183 = vst [vmem:[%s222] sm:$0x3] %v2182
      %v2200 = vrot.slane %v2084, 7
      %v2201 = vrot.slane %v2086, 7
      %v2202 = vsel %vm2181, %v2200, %v2201
      %v2203 = vrot.slane %v2089, 7
      %v2204 = vrot.slane %v2091, 7
      %v2205 = vsel %vm2181, %v2203, %v2204
      %v2206 = vrot.slane %v2094, 7
      %v2207 = vrot.slane %v2096, 7
      %v2208 = vsel %vm2181, %v2206, %v2207
      %v2209 = vrot.slane %v2099, 7
      %v2210 = vrot.slane %v2101, 7
      %v2211 = vsel %vm2181, %v2209, %v2210
      %v2212 = vrot.slane %v2104, 7
      %v2213 = vrot.slane %v2106, 7
      %v2214 = vsel %vm2181, %v2212, %v2213
      %v2215 = vrot.slane %v2109, 7
      %v2216 = vrot.slane %v2111, 7
      %v2217 = vsel %vm2181, %v2215, %v2216
      %v2218 = vrot.slane %v2114, 7
      %v2219 = vrot.slane %v2116, 7
      %v2220 = vsel %vm2181, %v2218, %v2219
      %v2221 = vrot.slane %v2119, 7
      %v2222 = vrot.slane %v2121, 7
      %v2223 = vsel %vm2181, %v2221, %v2222
      %v2248 = vsel %vm2181, 0.0, %v2200
      %v2249 = vsel %vm2181, 0.0, %v2203
      %v2250 = vsel %vm2181, 0.0, %v2206
      %v2251 = vsel %vm2181, 0.0, %v2209
      %v2252 = vsel %vm2181, 0.0, %v2212
      %v2253 = vsel %vm2181, 0.0, %v2215
      %v2254 = vsel %vm2181, 0.0, %v2218
      %v2255 = vsel %vm2181, 0.0, %v2221
      %v2256 = vsel %vm2181, %v2201, 0.0
      %v2257 = vsel %vm2181, %v2204, 0.0
      %v2258 = vsel %vm2181, %v2207, 0.0
      %v2259 = vsel %vm2181, %v2210, 0.0
      %v2260 = vsel %vm2181, %v2213, 0.0
      %v2261 = vsel %vm2181, %v2216, 0.0
      %v2262 = vsel %vm2181, %v2219, 0.0
      %v2263 = vsel %vm2181, %v2222, 0.0
      %2264 = vst [vmem:[%s215] sm:$0xff] %v2248
      %2265 = vst [vmem:[%s215 + $0x8] sm:$0xff] %v2202
      %2266 = vst [vmem:[%s215 + $0x10] sm:$0x3] %v2256
      %2267 = vst [vmem:[%s215 + $0x18] sm:$0xff] %v2249
      %2268 = vst [vmem:[%s215 + $0x20] sm:$0xff] %v2205
      %2269 = vst [vmem:[%s215 + $0x28] sm:$0x3] %v2257
      %2270 = vst [vmem:[%s215 + $0x30] sm:$0xff] %v2250
      %2271 = vst [vmem:[%s215 + $0x38] sm:$0xff] %v2208
      %2272 = vst [vmem:[%s215 + $0x40] sm:$0x3] %v2258
      %2273 = vst [vmem:[%s215 + $0x48] sm:$0xff] %v2251
      %2274 = vst [vmem:[%s215 + $0x50] sm:$0xff] %v2211
      %2275 = vst [vmem:[%s215 + $0x58] sm:$0x3] %v2259
      %2276 = vst [vmem:[%s215 + $0x60] sm:$0xff] %v2252
      %2277 = vst [vmem:[%s215 + $0x68] sm:$0xff] %v2214
      %2278 = vst [vmem:[%s215 + $0x70] sm:$0x3] %v2260
      %2279 = vst [vmem:[%s215 + $0x78] sm:$0xff] %v2253
      %2280 = vst [vmem:[%s215 + $0x80] sm:$0xff] %v2217
      %2281 = vst [vmem:[%s215 + $0x88] sm:$0x3] %v2261
      %2282 = vst [vmem:[%s215 + $0x90] sm:$0xff] %v2254
      %2283 = vst [vmem:[%s215 + $0x98] sm:$0xff] %v2220
      %2284 = vst [vmem:[%s215 + $0xa0] sm:$0x3] %v2262
      %2285 = vst [vmem:[%s215 + $0xa8] sm:$0xff] %v2255
      %2286 = vst [vmem:[%s215 + $0xb0] sm:$0xff] %v2223
      %2287 = vst [vmem:[%s215 + $0xb8] sm:$0x3] %v2263
      %s2288 = smul.u32 8, %s22
      %p2289 = scmp.lt.s32.totalorder %s21, 1
      %s2290 = scalar_select %p2289, %s21, 1
      %p2291 = scmp.lt.s32.totalorder %s2288, 15
      %s2292 = scalar_select %p2291, %s2288, 15
      %s2293 = smul.addr %s2292, 3
      %s2294 = smul.addr %s2290, 48
      %s2295 = sadd.s32 %s2293, %s2294
      %s2296 = smul.addr %s2295, 8
      %s2297 = scalar_lea.vmem %s4, %s2296
      %s2298 = smul.u32 %s21, 2
      %s2299 = sadd.s32 %s2298, %s22
      %p2300 = scmp.lt.s32.totalorder %s2299, 3
      %s2301 = scalar_select %p2300, %s2299, 3
      %s2302 = smul.addr %s2301, 2
      %s2303 = scalar_lea.vmem %s5, %s2302
      // Predicated region
      $region99: #{double_conv_forward.4} parent=31 // pred_check
        %p2304 = pneg %p112
      $region100: #{double_conv_forward.4} parent=31 // pred_check_branch
        %2306 = sbr.rel (%p2304) target = $region102
      $region101: #{double_conv_forward.4} parent=31 // pred_region
        %s2307 = smul.u32 8, %s22
      $region102: #{double_conv_forward.4} parent=31 // pred_fallthru
        _
      // Predicated region
      $region103: #{double_conv_forward.4} parent=31 // pred_check
        %p2308 = pneg %p142
      $region104: #{double_conv_forward.4} parent=31 // pred_check_branch
        %2310 = sbr.rel (%p2308) target = $region106
      $region105: #{double_conv_forward.4} parent=31 // pred_region
        %s2311 = smul.u32 %s21, 2
        %s2312 = sadd.s32 %s2311, %s22
      $region106: #{double_conv_forward.4} parent=31 // pred_fallthru
        _
    $region32: #{double_conv_forward.4} parent=5 // pred_fallthru
      _
    %p2313 = scmp.le.s32.totalorder 2, %s12
    // Predicated region
    $region107: #{double_conv_forward.4} parent=5 // pred_check
      %p2314 = pneg %p2313
    $region108: #{double_conv_forward.4} parent=5 // pred_check_branch
      %2316 = sbr.rel (%p2314) target = $region110
    $region109: #{double_conv_forward.4} parent=5 // pred_region
      %s2317 = ssub.s32 %s12, 2
      // Predicated region
      $region111: #{double_conv_forward.4} parent=109 // pred_check
        %p2318 = pneg %p118
      $region112: #{double_conv_forward.4} parent=109 // pred_check_branch
        %2320 = sbr.rel (%p2318) target = $region114
      $region113: #{double_conv_forward.4} parent=109 // pred_region
        %s2321 = smul.u32 8, %s24
        %p2322 = scmp.lt.s32.totalorder %s23, 1
        %s2323 = scalar_select %p2322, %s23, 1
        %p2324 = scmp.lt.s32.totalorder %s2321, 15
        %s2325 = scalar_select %p2324, %s2321, 15
        %s2326 = smul.addr %s2325, 3
        %s2327 = smul.addr %s2323, 48
        %s2328 = sadd.s32 %s2326, %s2327
        %s2329 = smul.addr %s2328, 8
        %s2330 = scalar_lea.vmem %s4, %s2329
      $region114: #{double_conv_forward.4} parent=109 // pred_fallthru
        _
      // Predicated region
      $region115: #{double_conv_forward.4} parent=109 // pred_check
        %p2331 = pneg %p148
      $region116: #{double_conv_forward.4} parent=109 // pred_check_branch
        %2333 = sbr.rel (%p2331) target = $region118
      $region117: #{double_conv_forward.4} parent=109 // pred_region
        %s2334 = smul.u32 %s23, 2
        %s2335 = sadd.s32 %s2334, %s24
        %p2336 = scmp.lt.s32.totalorder %s2335, 3
        %s2337 = scalar_select %p2336, %s2335, 3
        %s2338 = smul.addr %s2337, 2
        %s2339 = scalar_lea.vmem %s5, %s2338
      $region118: #{double_conv_forward.4} parent=109 // pred_fallthru
        _
    $region110: #{double_conv_forward.4} parent=5 // pred_fallthru
      _
  $region6: #{double_conv_forward.4} parent=0 // loop_footer
    %s16 = sadd.s32 1, %s12
  $region7: #{double_conv_forward.4} parent=0 // loop_footer_branch
    %11 = sbr.rel target = $region3
  $region8: #{double_conv_forward.4} parent=0 // loop_exit
    _
  %2340 = vsyncmov [#allocation3]
  %s2341 = vpop.sfrf %2340
  %p2342 = scmp.eq.s32.totalorder %s2341, 0
  %p2343 = pneg %p2342
  %2345 = shalt.err (%p2343)
  %s2346 = scalar_lea.sflag [#allocation3], 1
  %2347 = vsyncmov %s2346
  %s2348 = vpop.sfrf %2347
  %p2349 = scmp.eq.s32.totalorder %s2348, 0
  %p2350 = pneg %p2349
  %2352 = shalt.err (%p2350)
  %s2353 = scalar_lea.sflag [#allocation3], 2
  %2354 = vsyncmov %s2353
  %s2355 = vpop.sfrf %2354
  %p2356 = scmp.eq.s32.totalorder %s2355, 0
  %p2357 = pneg %p2356
  %2359 = shalt.err (%p2357)

</llo_original>
